<compile_context>
chip_gen: v6e
topology: v6e:2x2x1
jax: 0.10.0
libtpu: 0.0.40
codegen_flags: <defaults>
</compile_context>

<pallas_src>
import functools
import math

import jax
import jax.numpy as jnp
from jax import lax
from jax.experimental import pallas as pl
from jax.experimental.pallas import tpu as pltpu

EPS = 1e-5
NEG_INF = -1e30


def _rmsnorm(h, w):
    var = jnp.mean(h * h, axis=-1, keepdims=True)
    return h * lax.rsqrt(var + EPS) * w


def _rope(t, cos, sin):
    """apply_rotary_pos_emb for a single (S, head_dim) slab."""
    half = t.shape[-1] // 2
    rot = jnp.concatenate([-t[:, half:], t[:, :half]], axis=-1)  # rotate_half
    return t * cos + rot * sin


# ----------------------------------------------------------------------------
# Pallas kernels
# ----------------------------------------------------------------------------
def _decoder_layer_kernel(x_ref, cos_ref, sin_ref, ln1_ref, wqkv_ref, wo_ref,
                          ln2_ref, wgu_ref, wd_ref, o_ref, *,
                          num_heads, inter_pad):
    """One (batch, layer) grid step: full decoder layer (attn + SwiGLU MLP).

    The output block (1, S, H) keeps the same index across the layer axis
    ('arbitrary'), so the f32 residual stays VMEM-resident: it is initialized
    from the embedding block at layer 0 and carried layer to layer.
    """
    layer = pl.program_id(1)

    @pl.when(layer == 0)
    def _():
        o_ref[0] = x_ref[0]                       # residual enters VMEM once

    x = o_ref[0]                                  # (S, H) f32 residual
    S, H = x.shape
    hd = H // num_heads
    scale = 1.0 / math.sqrt(hd)
    cos = cos_ref[...]                            # (S, hd) f32
    sin = sin_ref[...]

    # ---- attention ---------------------------------------------------------
    h = _rmsnorm(x, ln1_ref[0]).astype(jnp.bfloat16)                   # (S, H)
    qkv = jnp.dot(h, wqkv_ref[0], preferred_element_type=jnp.float32)  # (S,3H)
    q_all = qkv[:, :H] * scale     # fold 1/sqrt(hd) into q (RoPE is linear)
    k_all = qkv[:, H:2 * H]
    v_all = qkv[:, 2 * H:]

    row = lax.broadcasted_iota(jnp.int32, (S, S), 0)
    col = lax.broadcasted_iota(jnp.int32, (S, S), 1)
    causal = col <= row

    attn_heads = []
    for hh in range(num_heads):    # static unroll; fine for small num_heads
        q = _rope(q_all[:, hh * hd:(hh + 1) * hd], cos, sin)
        k = _rope(k_all[:, hh * hd:(hh + 1) * hd], cos, sin)
        v = v_all[:, hh * hd:(hh + 1) * hd]
        s = lax.dot_general(q.astype(jnp.bfloat16), k.astype(jnp.bfloat16),
                            (((1,), (1,)), ((), ())),
                            preferred_element_type=jnp.float32)        # (S, S)
        s = jnp.where(causal, s, NEG_INF)
        s = s - jnp.max(s, axis=-1, keepdims=True)
        p = jnp.exp(s)
        p = p / jnp.sum(p, axis=-1, keepdims=True)
        attn_heads.append(
            jnp.dot(p.astype(jnp.bfloat16), v.astype(jnp.bfloat16),
                    preferred_element_type=jnp.float32))               # (S,hd)
    attn = jnp.concatenate(attn_heads, axis=-1)                        # (S, H)
    x1 = x + jnp.dot(attn.astype(jnp.bfloat16), wo_ref[0],
                     preferred_element_type=jnp.float32)

    # ---- SwiGLU MLP (gate/up fused into one matmul) -------------------------
    h2 = _rmsnorm(x1, ln2_ref[0]).astype(jnp.bfloat16)
    gu = jnp.dot(h2, wgu_ref[0], preferred_element_type=jnp.float32)   # (S,2I)
    g = gu[:, :inter_pad]
    u = gu[:, inter_pad:]
    g = g * jax.nn.sigmoid(g)                                          # SiLU
    o_ref[0] = x1 + jnp.dot((g * u).astype(jnp.bfloat16), wd_ref[0],
                            preferred_element_type=jnp.float32)


def _lm_head_kernel(x_ref, nw_ref, wt_ref, o_ref):
    """Final RMSNorm + tied lm_head for one batch; norm computed once."""
    h = _rmsnorm(x_ref[0], nw_ref[...]).astype(jnp.bfloat16)
    o_ref[0] = jnp.dot(h, wt_ref[...],
                       preferred_element_type=jnp.float32).astype(o_ref.dtype)


# ----------------------------------------------------------------------------
# Wrappers
# ----------------------------------------------------------------------------
def decoder_stack_pallas(x, cos, sin, ln1s, wqkvs, wos, ln2s, wgus, wds, *,
                         num_heads):
    B, S, H = x.shape
    L = wqkvs.shape[0]
    hd = H // num_heads
    assert num_heads * hd == H
    inter_pad = wds.shape[1]
    kernel = functools.partial(_decoder_layer_kernel,
                               num_heads=num_heads, inter_pad=inter_pad)
    return pl.pallas_call(
        kernel,
        out_shape=jax.ShapeDtypeStruct((B, S, H), x.dtype),
        grid=(B, L),
        in_specs=[
            pl.BlockSpec((1, S, H), lambda b, l: (b, 0, 0)),          # residual
            pl.BlockSpec((S, hd), lambda b, l: (0, 0)),               # cos
            pl.BlockSpec((S, hd), lambda b, l: (0, 0)),               # sin
            pl.BlockSpec((1, 1, H), lambda b, l: (l, 0, 0)),          # ln1 w
            pl.BlockSpec((1, H, 3 * H), lambda b, l: (l, 0, 0)),      # wqkv
            pl.BlockSpec((1, H, H), lambda b, l: (l, 0, 0)),          # wo
            pl.BlockSpec((1, 1, H), lambda b, l: (l, 0, 0)),          # ln2 w
            pl.BlockSpec((1, H, 2 * inter_pad), lambda b, l: (l, 0, 0)),  # g|u
            pl.BlockSpec((1, inter_pad, H), lambda b, l: (l, 0, 0)),  # down
        ],
        out_specs=pl.BlockSpec((1, S, H), lambda b, l: (b, 0, 0)),
        compiler_params=pltpu.CompilerParams(
            dimension_semantics=("parallel", "arbitrary")),
    )(x, cos, sin, ln1s, wqkvs, wos, ln2s, wgus, wds)


def lm_head_pallas(x_text, norm_w, emb_t):
    B, T, H = x_text.shape
    V = emb_t.shape[1]
    return pl.pallas_call(
        _lm_head_kernel,
        out_shape=jax.ShapeDtypeStruct((B, T, V), jnp.float32),
        grid=(B,),
        in_specs=[
            pl.BlockSpec((1, T, H), lambda b: (b, 0, 0)),     # text hidden
            pl.BlockSpec((1, H), lambda b: (0, 0)),           # final norm w
            pl.BlockSpec((H, V), lambda b: (0, 0)),           # tied emb.T
        ],
        out_specs=pl.BlockSpec((1, T, V), lambda b: (b, 0, 0)),
        compiler_params=pltpu.CompilerParams(
            dimension_semantics=("parallel",)),
    )(x_text, norm_w, emb_t)


def retriever_vl_forward(input_ids, img_feats, params, *, num_heads):
    """RetrieverVL.forward(input_ids, images, labels=None, img_encoded=True)."""
    emb = params["emb"]                                   # (V, H) bf16, tied
    tok_emb = jnp.take(emb, input_ids, axis=0).astype(jnp.float32)
    x = jnp.concatenate([img_feats, tok_emb], axis=1)     # (B, S_img+T, H) f32
    x = decoder_stack_pallas(x, params["cos"], params["sin"],
                             params["ln1s"], params["wqkvs"], params["wos"],
                             params["ln2s"], params["wgus"], params["wds"],
                             num_heads=num_heads)
    x_text = x[:, -input_ids.shape[1]:, :]                # keep text positions
    return lm_head_pallas(x_text, params["norm_w"], params["emb_t"])


# ----------------------------------------------------------------------------
# Pure-JAX reference (mirrors the PyTorch semantics) for validation
# ----------------------------------------------------------------------------
def _ref_decoder_layer(x, cos, sin, lp, num_heads):
    B, S, H = x.shape
    hd = H // num_heads
    h = _rmsnorm(x, lp["ln1"][0])
    q, k, v = h @ lp["wq"], h @ lp["wk"], h @ lp["wv"]

    def heads(t):
        return t.reshape(B, S, num_heads, hd).transpose(0, 2, 1, 3)

    def rope(t):
        half = hd // 2
        rot = jnp.concatenate([-t[..., half:], t[..., :half]], axis=-1)
        return t * cos[None, None] + rot * sin[None, None]

    qh, kh, vh = heads(q), heads(k), heads(v)
    qh, kh = rope(qh), rope(kh)
    s = jnp.einsum("bhqd,bhkd->bhqk", qh, kh) / math.sqrt(hd)
    mask = jnp.tril(jnp.ones((S, S), bool))
    s = jnp.where(mask, s, NEG_INF)
    p = jax.nn.softmax(s, axis=-1)
    o = jnp.einsum("bhqk,bhkd->bhqd", p, vh).transpose(0, 2, 1, 3).reshape(B, S, H)
    x1 = x + o @ lp["wo"]
    h2 = _rmsnorm(x1, lp["ln2"][0])
    g = jax.nn.silu(h2 @ lp["wg"])
    u = h2 @ lp["wu"]
    return x1 + (g * u) @ lp["wd"]


def _ref_forward(input_ids, img_feats, rp, num_heads):
    emb = rp["emb"]
    tok = jnp.take(emb, input_ids, axis=0)
    x = jnp.concatenate([img_feats, tok], axis=1)
    for lp in rp["layers"]:
        x = _ref_decoder_layer(x, rp["cos_h"], rp["sin_h"], lp, num_heads)
    x = _rmsnorm(x, rp["norm_w"][0])
    x = x[:, -input_ids.shape[1]:, :]
    return x @ emb.T


# ----------------------------------------------------------------------------
# Main
# ----------------------------------------------------------------------------
if __name__ == "__main__":
    # Small config consistent with the module; lane-friendly dims.
    B, T_TEXT, S_IMG = 2, 8, 8
    H, NH, NUM_LAYERS, VOCAB = 256, 2, 2, 256
    HD = H // NH                       # 128 -> lane-aligned head dim
    S = S_IMG + T_TEXT                 # 16
    I_RAW = int(H * 2.68)              # 686 (module definition)
    I_PAD = ((I_RAW + 127) // 128) * 128   # 768, lane-aligned padding

    key = jax.random.PRNGKey(0)
    keys = iter(jax.random.split(key, 64))

    def w(shape, std=0.02):
        return (std * jax.random.normal(next(keys), shape)).astype(jnp.float32)

    def to_bf16(a):
        return a.astype(jnp.bfloat16)

    # RoPE cache (RotaryEmbedding, base=10000) over the head dim.
    inv_freq = 1.0 / (10000.0 ** (jnp.arange(0, HD, 2, dtype=jnp.float32) / HD))
    t = jnp.arange(S, dtype=jnp.float32)
    freqs = jnp.einsum("i,j->ij", t, inv_freq)             # (S, HD/2)
    ang = jnp.concatenate([freqs, freqs], axis=-1)         # (S, HD)
    cos_h = jnp.cos(ang)
    sin_h = jnp.sin(ang)

    wqkv_list, wo_list, wgu_list, wd_list, layers_ref = [], [], [], [], []
    for _ in range(NUM_LAYERS):
        wq, wk, wv, wo_ = w((H, H)), w((H, H)), w((H, H)), w((H, H))
        wg, wu, wd_ = w((H, I_RAW)), w((H, I_RAW)), w((I_RAW, H))
        wq_b, wk_b, wv_b, wo_b = map(to_bf16, (wq, wk, wv, wo_))
        wg_b, wu_b, wd_b = map(to_bf16, (wg, wu, wd_))
        # Zero-pad the SwiGLU intermediate dim to a multiple of 128 so the
        # fused gate|up / down tiles are lane-dense; padded columns/rows are
        # zero so the math is unchanged.
        wg_p = jnp.zeros((H, I_PAD), jnp.bfloat16).at[:, :I_RAW].set(wg_b)
        wu_p = jnp.zeros((H, I_PAD), jnp.bfloat16).at[:, :I_RAW].set(wu_b)
        wd_p = jnp.zeros((I_PAD, H), jnp.bfloat16).at[:I_RAW, :].set(wd_b)
        wqkv_list.append(jnp.concatenate([wq_b, wk_b, wv_b], axis=1))   # (H,3H)
        wo_list.append(wo_b)
        wgu_list.append(jnp.concatenate([wg_p, wu_p], axis=1))          # (H,2I)
        wd_list.append(wd_p)
        layers_ref.append(dict(
            ln1=jnp.ones((1, H), jnp.float32),
            wq=wq_b.astype(jnp.float32), wk=wk_b.astype(jnp.float32),
            wv=wv_b.astype(jnp.float32), wo=wo_b.astype(jnp.float32),
            ln2=jnp.ones((1, H), jnp.float32),
            wg=wg_b.astype(jnp.float32), wu=wu_b.astype(jnp.float32),
            wd=wd_b.astype(jnp.float32)))

    emb32 = w((VOCAB, H))                 # token_embedding, tied with lm_head
    emb_b = to_bf16(emb32)

    params = dict(
        emb=emb_b, emb_t=emb_b.T,
        ln1s=jnp.ones((NUM_LAYERS, 1, H), jnp.float32),
        wqkvs=jnp.stack(wqkv_list),                   # (L, H, 3H) bf16
        wos=jnp.stack(wo_list),                       # (L, H, H)  bf16
        ln2s=jnp.ones((NUM_LAYERS, 1, H), jnp.float32),
        wgus=jnp.stack(wgu_list),                     # (L, H, 2*I_PAD) bf16
        wds=jnp.stack(wd_list),                       # (L, I_PAD, H) bf16
        norm_w=jnp.ones((1, H), jnp.float32),
        cos=cos_h, sin=sin_h)
    ref_params = dict(emb=emb_b.astype(jnp.float32), layers=layers_ref,
                      norm_w=jnp.ones((1, H), jnp.float32),
                      cos_h=cos_h, sin_h=sin_h)

    input_ids = jax.random.randint(next(keys), (B, T_TEXT), 0, VOCAB)
    # Pre-encoded image features (img_encoded=True path).
    img_feats = (0.02 * jax.random.normal(next(keys), (B, S_IMG, H))
                 ).astype(jnp.float32)

    logits = retriever_vl_forward(input_ids, img_feats, params, num_heads=NH)
    logits = jax.block_until_ready(logits)
    assert logits.shape == (B, T_TEXT, VOCAB)

    ref = _ref_forward(input_ids, img_feats, ref_params, NH)
    max_err = float(jnp.max(jnp.abs(logits - ref)))
    assert max_err < 5e-2, f"mismatch vs reference: {max_err}"

    print("KERNEL_OK")
</pallas_src>

<mosaic_0001>
module attributes {stable_mosaic.version = 11 : i64} {
  func.func @_decoder_layer_kernel(%arg0: i32, %arg1: i32, %arg2: memref<1x16x256xf32, #tpu.memory_space<vmem>>, %arg3: memref<16x128xf32, #tpu.memory_space<vmem>>, %arg4: memref<16x128xf32, #tpu.memory_space<vmem>>, %arg5: memref<1x1x256xf32, #tpu.memory_space<vmem>>, %arg6: memref<1x256x768xbf16, #tpu.memory_space<vmem>>, %arg7: memref<1x256x256xbf16, #tpu.memory_space<vmem>>, %arg8: memref<1x1x256xf32, #tpu.memory_space<vmem>>, %arg9: memref<1x256x1536xbf16, #tpu.memory_space<vmem>>, %arg10: memref<1x768x256xbf16, #tpu.memory_space<vmem>>, %arg11: memref<1x16x256xf32, #tpu.memory_space<vmem>>) attributes {dimension_semantics = [#tpu.dimension_semantics<parallel>, #tpu.dimension_semantics<arbitrary>], iteration_bounds = array<i64: 2, 2>, scalar_prefetch = 0 : i64, scratch_operands = 0 : i64, tpu.core_type = #tpu.core_type<tc>, window_params = [{transform_indices = @transform_0, window_bounds = array<i64: 1, 16, 256>}, {pipeline_mode = #tpu.pipeline_mode<synchronous>, transform_indices = @transform_1, window_bounds = array<i64: 16, 128>}, {pipeline_mode = #tpu.pipeline_mode<synchronous>, transform_indices = @transform_2, window_bounds = array<i64: 16, 128>}, {transform_indices = @transform_3, window_bounds = array<i64: 1, 1, 256>}, {transform_indices = @transform_4, window_bounds = array<i64: 1, 256, 768>}, {transform_indices = @transform_5, window_bounds = array<i64: 1, 256, 256>}, {transform_indices = @transform_6, window_bounds = array<i64: 1, 1, 256>}, {transform_indices = @transform_7, window_bounds = array<i64: 1, 256, 1536>}, {transform_indices = @transform_8, window_bounds = array<i64: 1, 768, 256>}, {transform_indices = @transform_9, window_bounds = array<i64: 1, 16, 256>}]} {
    %c0_i32 = arith.constant 0 : i32
    %0 = arith.cmpi eq, %arg1, %c0_i32 : i32
    %1 = arith.extui %0 : i1 to i32
    %c0_i32_0 = arith.constant 0 : i32
    %2 = arith.cmpi ne, %1, %c0_i32_0 : i32
    scf.if %2 {
      %c0_53 = arith.constant 0 : index
      %c0_54 = arith.constant 0 : index
      %c0_55 = arith.constant 0 : index
      %146 = vector.load %arg2[%c0_53, %c0_54, %c0_55] : memref<1x16x256xf32, #tpu.memory_space<vmem>>, vector<1x16x256xf32>
      %147 = vector.shape_cast %146 : vector<1x16x256xf32> to vector<16x256xf32>
      %c0_56 = arith.constant 0 : index
      %c0_57 = arith.constant 0 : index
      %c0_58 = arith.constant 0 : index
      %148 = vector.load %arg11[%c0_56, %c0_57, %c0_58] : memref<1x16x256xf32, #tpu.memory_space<vmem>>, vector<1x16x256xf32>
      %149 = vector.shape_cast %148 : vector<1x16x256xf32> to vector<16x256xf32>
      %150 = vector.shape_cast %147 : vector<16x256xf32> to vector<1x16x256xf32>
      tpu.vector_store %arg11[%c0_56, %c0_57, %c0_58], %150 {strides = array<i32>} : memref<1x16x256xf32, #tpu.memory_space<vmem>>, vector<1x16x256xf32>,
    } else {
    }
    %c0 = arith.constant 0 : index
    %c0_1 = arith.constant 0 : index
    %c0_2 = arith.constant 0 : index
    %3 = vector.load %arg11[%c0, %c0_1, %c0_2] : memref<1x16x256xf32, #tpu.memory_space<vmem>>, vector<1x16x256xf32>
    %4 = vector.shape_cast %3 : vector<1x16x256xf32> to vector<16x256xf32>
    %c0_3 = arith.constant 0 : index
    %c0_4 = arith.constant 0 : index
    %5 = vector.load %arg3[%c0_3, %c0_4] : memref<16x128xf32, #tpu.memory_space<vmem>>, vector<16x128xf32>
    %c0_5 = arith.constant 0 : index
    %c0_6 = arith.constant 0 : index
    %6 = vector.load %arg4[%c0_5, %c0_6] : memref<16x128xf32, #tpu.memory_space<vmem>>, vector<16x128xf32>
    %c0_7 = arith.constant 0 : index
    %c0_8 = arith.constant 0 : index
    %c0_9 = arith.constant 0 : index
    %7 = vector.load %arg5[%c0_7, %c0_8, %c0_9] : memref<1x1x256xf32, #tpu.memory_space<vmem>>, vector<1x1x256xf32>
    %8 = vector.shape_cast %7 : vector<1x1x256xf32> to vector<1x256xf32>
    %9 = arith.mulf %4, %4 : vector<16x256xf32>
    %cst = arith.constant dense<0.000000e+00> : vector<16xf32>
    %10 = vector.multi_reduction <add>, %9, %cst [1] : vector<16x256xf32> to vector<16xf32>
    %11 = vector.shape_cast %10 : vector<16xf32> to vector<16x1xf32>
    %cst_10 = arith.constant 2.560000e+02 : f32
    %12 = vector.broadcast %cst_10 : f32 to vector<16x1xf32>
    %13 = arith.divf %11, %12 : vector<16x1xf32>
    %cst_11 = arith.constant 9.99999974E-6 : f32
    %14 = vector.broadcast %cst_11 : f32 to vector<16x1xf32>
    %15 = arith.addf %13, %14 : vector<16x1xf32>
    %16 = math.rsqrt %15 : vector<16x1xf32>
    %17 = vector.broadcast %16 : vector<16x1xf32> to vector<16x256xf32>
    %18 = arith.mulf %4, %17 : vector<16x256xf32>
    %19 = vector.broadcast %8 : vector<1x256xf32> to vector<16x256xf32>
    %20 = arith.mulf %18, %19 : vector<16x256xf32>
    %21 = arith.truncf %20 : vector<16x256xf32> to vector<16x256xbf16>
    %c0_12 = arith.constant 0 : index
    %c0_13 = arith.constant 0 : index
    %c0_14 = arith.constant 0 : index
    %22 = vector.load %arg6[%c0_12, %c0_13, %c0_14] : memref<1x256x768xbf16, #tpu.memory_space<vmem>>, vector<1x256x768xbf16>
    %23 = vector.shape_cast %22 : vector<1x256x768xbf16> to vector<256x768xbf16>
    %cst_15 = arith.constant dense<0.000000e+00> : vector<16x768xf32>
    %24 = tpu.matmul %21, %23, %cst_15 {dimension_numbers = #tpu.dot_dimension_numbers<[1], [0], [0], [1], [0, 0, 1, 1], [], []>} : vector<16x256xbf16>, vector<256x768xbf16>, vector<16x768xf32> -> vector<16x768xf32>
    %25 = vector.extract_strided_slice %24 {offsets = [0, 0], sizes = [16, 256], strides = [1, 1]} : vector<16x768xf32> to vector<16x256xf32>
    %cst_16 = arith.constant 0.0883883461 : f32
    %26 = vector.broadcast %cst_16 : f32 to vector<16x256xf32>
    %27 = arith.mulf %25, %26 : vector<16x256xf32>
    %28 = vector.extract_strided_slice %24 {offsets = [0, 256], sizes = [16, 256], strides = [1, 1]} : vector<16x768xf32> to vector<16x256xf32>
    %29 = vector.extract_strided_slice %24 {offsets = [0, 512], sizes = [16, 256], strides = [1, 1]} : vector<16x768xf32> to vector<16x256xf32>
    %30 = tpu.iota {dimensions = array<i32: 0>} : vector<16x16xi32>
    %31 = tpu.iota {dimensions = array<i32: 1>} : vector<16x16xi32>
    %32 = arith.cmpi sle, %31, %30 : vector<16x16xi32>
    %33 = vector.extract_strided_slice %27 {offsets = [0, 0], sizes = [16, 128], strides = [1, 1]} : vector<16x256xf32> to vector<16x128xf32>
    %34 = vector.extract_strided_slice %33 {offsets = [0, 64], sizes = [16, 64], strides = [1, 1]} : vector<16x128xf32> to vector<16x64xf32>
    %cst_17 = arith.constant 0.000000e+00 : f32
    %35 = vector.broadcast %cst_17 : f32 to vector<16x64xf32>
    %36 = arith.subf %35, %34 : vector<16x64xf32>
    %37 = vector.extract_strided_slice %33 {offsets = [0, 0], sizes = [16, 64], strides = [1, 1]} : vector<16x128xf32> to vector<16x64xf32>
    %38 = tpu.concatenate %36, %37 in 1 : vector<16x64xf32>, vector<16x64xf32> -> vector<16x128xf32>
    %39 = arith.mulf %33, %5 : vector<16x128xf32>
    %40 = arith.mulf %38, %6 : vector<16x128xf32>
    %41 = arith.addf %39, %40 : vector<16x128xf32>
    %42 = vector.extract_strided_slice %28 {offsets = [0, 0], sizes = [16, 128], strides = [1, 1]} : vector<16x256xf32> to vector<16x128xf32>
    %43 = vector.extract_strided_slice %42 {offsets = [0, 64], sizes = [16, 64], strides = [1, 1]} : vector<16x128xf32> to vector<16x64xf32>
    %cst_18 = arith.constant 0.000000e+00 : f32
    %44 = vector.broadcast %cst_18 : f32 to vector<16x64xf32>
    %45 = arith.subf %44, %43 : vector<16x64xf32>
    %46 = vector.extract_strided_slice %42 {offsets = [0, 0], sizes = [16, 64], strides = [1, 1]} : vector<16x128xf32> to vector<16x64xf32>
    %47 = tpu.concatenate %45, %46 in 1 : vector<16x64xf32>, vector<16x64xf32> -> vector<16x128xf32>
    %48 = arith.mulf %42, %5 : vector<16x128xf32>
    %49 = arith.mulf %47, %6 : vector<16x128xf32>
    %50 = arith.addf %48, %49 : vector<16x128xf32>
    %51 = vector.extract_strided_slice %29 {offsets = [0, 0], sizes = [16, 128], strides = [1, 1]} : vector<16x256xf32> to vector<16x128xf32>
    %52 = arith.truncf %41 : vector<16x128xf32> to vector<16x128xbf16>
    %53 = arith.truncf %50 : vector<16x128xf32> to vector<16x128xbf16>
    %cst_19 = arith.constant dense<0.000000e+00> : vector<16x16xf32>
    %54 = tpu.matmul %52, %53, %cst_19 {dimension_numbers = #tpu.dot_dimension_numbers<[1], [1], [0], [0], [0, 0, 1, 0], [], []>} : vector<16x128xbf16>, vector<16x128xbf16>, vector<16x16xf32> -> vector<16x16xf32>
    %cst_20 = arith.constant -1.000000e+30 : f32
    %55 = vector.broadcast %cst_20 : f32 to vector<16x16xf32>
    %56 = arith.select %32, %54, %55 : vector<16x16xi1>, vector<16x16xf32>
    %cst_21 = arith.constant dense<0xFF800000> : vector<16xf32>
    %57 = vector.multi_reduction <maximumf>, %56, %cst_21 [1] : vector<16x16xf32> to vector<16xf32>
    %58 = vector.shape_cast %57 : vector<16xf32> to vector<16x1xf32>
    %59 = vector.broadcast %58 : vector<16x1xf32> to vector<16x16xf32>
    %60 = arith.subf %56, %59 : vector<16x16xf32>
    %61 = math.exp %60 : vector<16x16xf32>
    %cst_22 = arith.constant dense<0.000000e+00> : vector<16xf32>
    %62 = vector.multi_reduction <add>, %61, %cst_22 [1] : vector<16x16xf32> to vector<16xf32>
    %63 = vector.shape_cast %62 : vector<16xf32> to vector<16x1xf32>
    %64 = vector.broadcast %63 : vector<16x1xf32> to vector<16x16xf32>
    %65 = arith.divf %61, %64 : vector<16x16xf32>
    %66 = arith.truncf %65 : vector<16x16xf32> to vector<16x16xbf16>
    %67 = arith.truncf %51 : vector<16x128xf32> to vector<16x128xbf16>
    %cst_23 = arith.constant dense<0.000000e+00> : vector<16x128xf32>
    %68 = tpu.matmul %66, %67, %cst_23 {dimension_numbers = #tpu.dot_dimension_numbers<[1], [0], [0], [1], [0, 0, 1, 1], [], []>} : vector<16x16xbf16>, vector<16x128xbf16>, vector<16x128xf32> -> vector<16x128xf32>
    %69 = vector.extract_strided_slice %27 {offsets = [0, 128], sizes = [16, 128], strides = [1, 1]} : vector<16x256xf32> to vector<16x128xf32>
    %70 = vector.extract_strided_slice %69 {offsets = [0, 64], sizes = [16, 64], strides = [1, 1]} : vector<16x128xf32> to vector<16x64xf32>
    %cst_24 = arith.constant 0.000000e+00 : f32
    %71 = vector.broadcast %cst_24 : f32 to vector<16x64xf32>
    %72 = arith.subf %71, %70 : vector<16x64xf32>
    %73 = vector.extract_strided_slice %69 {offsets = [0, 0], sizes = [16, 64], strides = [1, 1]} : vector<16x128xf32> to vector<16x64xf32>
    %74 = tpu.concatenate %72, %73 in 1 : vector<16x64xf32>, vector<16x64xf32> -> vector<16x128xf32>
    %75 = arith.mulf %69, %5 : vector<16x128xf32>
    %76 = arith.mulf %74, %6 : vector<16x128xf32>
    %77 = arith.addf %75, %76 : vector<16x128xf32>
    %78 = vector.extract_strided_slice %28 {offsets = [0, 128], sizes = [16, 128], strides = [1, 1]} : vector<16x256xf32> to vector<16x128xf32>
    %79 = vector.extract_strided_slice %78 {offsets = [0, 64], sizes = [16, 64], strides = [1, 1]} : vector<16x128xf32> to vector<16x64xf32>
    %cst_25 = arith.constant 0.000000e+00 : f32
    %80 = vector.broadcast %cst_25 : f32 to vector<16x64xf32>
    %81 = arith.subf %80, %79 : vector<16x64xf32>
    %82 = vector.extract_strided_slice %78 {offsets = [0, 0], sizes = [16, 64], strides = [1, 1]} : vector<16x128xf32> to vector<16x64xf32>
    %83 = tpu.concatenate %81, %82 in 1 : vector<16x64xf32>, vector<16x64xf32> -> vector<16x128xf32>
    %84 = arith.mulf %78, %5 : vector<16x128xf32>
    %85 = arith.mulf %83, %6 : vector<16x128xf32>
    %86 = arith.addf %84, %85 : vector<16x128xf32>
    %87 = vector.extract_strided_slice %29 {offsets = [0, 128], sizes = [16, 128], strides = [1, 1]} : vector<16x256xf32> to vector<16x128xf32>
    %88 = arith.truncf %77 : vector<16x128xf32> to vector<16x128xbf16>
    %89 = arith.truncf %86 : vector<16x128xf32> to vector<16x128xbf16>
    %cst_26 = arith.constant dense<0.000000e+00> : vector<16x16xf32>
    %90 = tpu.matmul %88, %89, %cst_26 {dimension_numbers = #tpu.dot_dimension_numbers<[1], [1], [0], [0], [0, 0, 1, 0], [], []>} : vector<16x128xbf16>, vector<16x128xbf16>, vector<16x16xf32> -> vector<16x16xf32>
    %cst_27 = arith.constant -1.000000e+30 : f32
    %91 = vector.broadcast %cst_27 : f32 to vector<16x16xf32>
    %92 = arith.select %32, %90, %91 : vector<16x16xi1>, vector<16x16xf32>
    %cst_28 = arith.constant dense<0xFF800000> : vector<16xf32>
    %93 = vector.multi_reduction <maximumf>, %92, %cst_28 [1] : vector<16x16xf32> to vector<16xf32>
    %94 = vector.shape_cast %93 : vector<16xf32> to vector<16x1xf32>
    %95 = vector.broadcast %94 : vector<16x1xf32> to vector<16x16xf32>
    %96 = arith.subf %92, %95 : vector<16x16xf32>
    %97 = math.exp %96 : vector<16x16xf32>
    %cst_29 = arith.constant dense<0.000000e+00> : vector<16xf32>
    %98 = vector.multi_reduction <add>, %97, %cst_29 [1] : vector<16x16xf32> to vector<16xf32>
    %99 = vector.shape_cast %98 : vector<16xf32> to vector<16x1xf32>
    %100 = vector.broadcast %99 : vector<16x1xf32> to vector<16x16xf32>
    %101 = arith.divf %97, %100 : vector<16x16xf32>
    %102 = arith.truncf %101 : vector<16x16xf32> to vector<16x16xbf16>
    %103 = arith.truncf %87 : vector<16x128xf32> to vector<16x128xbf16>
    %cst_30 = arith.constant dense<0.000000e+00> : vector<16x128xf32>
    %104 = tpu.matmul %102, %103, %cst_30 {dimension_numbers = #tpu.dot_dimension_numbers<[1], [0], [0], [1], [0, 0, 1, 1], [], []>} : vector<16x16xbf16>, vector<16x128xbf16>, vector<16x128xf32> -> vector<16x128xf32>
    %105 = tpu.concatenate %68, %104 in 1 : vector<16x128xf32>, vector<16x128xf32> -> vector<16x256xf32>
    %106 = arith.truncf %105 : vector<16x256xf32> to vector<16x256xbf16>
    %c0_31 = arith.constant 0 : index
    %c0_32 = arith.constant 0 : index
    %c0_33 = arith.constant 0 : index
    %107 = vector.load %arg7[%c0_31, %c0_32, %c0_33] : memref<1x256x256xbf16, #tpu.memory_space<vmem>>, vector<1x256x256xbf16>
    %108 = vector.shape_cast %107 : vector<1x256x256xbf16> to vector<256x256xbf16>
    %cst_34 = arith.constant dense<0.000000e+00> : vector<16x256xf32>
    %109 = tpu.matmul %106, %108, %cst_34 {dimension_numbers = #tpu.dot_dimension_numbers<[1], [0], [0], [1], [0, 0, 1, 1], [], []>} : vector<16x256xbf16>, vector<256x256xbf16>, vector<16x256xf32> -> vector<16x256xf32>
    %110 = arith.addf %4, %109 : vector<16x256xf32>
    %c0_35 = arith.constant 0 : index
    %c0_36 = arith.constant 0 : index
    %c0_37 = arith.constant 0 : index
    %111 = vector.load %arg8[%c0_35, %c0_36, %c0_37] : memref<1x1x256xf32, #tpu.memory_space<vmem>>, vector<1x1x256xf32>
    %112 = vector.shape_cast %111 : vector<1x1x256xf32> to vector<1x256xf32>
    %113 = arith.mulf %110, %110 : vector<16x256xf32>
    %cst_38 = arith.constant dense<0.000000e+00> : vector<16xf32>
    %114 = vector.multi_reduction <add>, %113, %cst_38 [1] : vector<16x256xf32> to vector<16xf32>
    %115 = vector.shape_cast %114 : vector<16xf32> to vector<16x1xf32>
    %cst_39 = arith.constant 2.560000e+02 : f32
    %116 = vector.broadcast %cst_39 : f32 to vector<16x1xf32>
    %117 = arith.divf %115, %116 : vector<16x1xf32>
    %cst_40 = arith.constant 9.99999974E-6 : f32
    %118 = vector.broadcast %cst_40 : f32 to vector<16x1xf32>
    %119 = arith.addf %117, %118 : vector<16x1xf32>
    %120 = math.rsqrt %119 : vector<16x1xf32>
    %121 = vector.broadcast %120 : vector<16x1xf32> to vector<16x256xf32>
    %122 = arith.mulf %110, %121 : vector<16x256xf32>
    %123 = vector.broadcast %112 : vector<1x256xf32> to vector<16x256xf32>
    %124 = arith.mulf %122, %123 : vector<16x256xf32>
    %125 = arith.truncf %124 : vector<16x256xf32> to vector<16x256xbf16>
    %c0_41 = arith.constant 0 : index
    %c0_42 = arith.constant 0 : index
    %c0_43 = arith.constant 0 : index
    %126 = vector.load %arg9[%c0_41, %c0_42, %c0_43] : memref<1x256x1536xbf16, #tpu.memory_space<vmem>>, vector<1x256x1536xbf16>
    %127 = vector.shape_cast %126 : vector<1x256x1536xbf16> to vector<256x1536xbf16>
    %cst_44 = arith.constant dense<0.000000e+00> : vector<16x1536xf32>
    %128 = tpu.matmul %125, %127, %cst_44 {dimension_numbers = #tpu.dot_dimension_numbers<[1], [0], [0], [1], [0, 0, 1, 1], [], []>} : vector<16x256xbf16>, vector<256x1536xbf16>, vector<16x1536xf32> -> vector<16x1536xf32>
    %129 = vector.extract_strided_slice %128 {offsets = [0, 0], sizes = [16, 768], strides = [1, 1]} : vector<16x1536xf32> to vector<16x768xf32>
    %130 = vector.extract_strided_slice %128 {offsets = [0, 768], sizes = [16, 768], strides = [1, 1]} : vector<16x1536xf32> to vector<16x768xf32>
    %131 = arith.negf %129 : vector<16x768xf32>
    %132 = math.exp %131 : vector<16x768xf32>
    %cst_45 = arith.constant 1.000000e+00 : f32
    %133 = vector.broadcast %cst_45 : f32 to vector<16x768xf32>
    %134 = arith.addf %133, %132 : vector<16x768xf32>
    %135 = arith.divf %133, %134 : vector<16x768xf32>
    %136 = arith.mulf %129, %135 : vector<16x768xf32>
    %137 = arith.mulf %136, %130 : vector<16x768xf32>
    %138 = arith.truncf %137 : vector<16x768xf32> to vector<16x768xbf16>
    %c0_46 = arith.constant 0 : index
    %c0_47 = arith.constant 0 : index
    %c0_48 = arith.constant 0 : index
    %139 = vector.load %arg10[%c0_46, %c0_47, %c0_48] : memref<1x768x256xbf16, #tpu.memory_space<vmem>>, vector<1x768x256xbf16>
    %140 = vector.shape_cast %139 : vector<1x768x256xbf16> to vector<768x256xbf16>
    %cst_49 = arith.constant dense<0.000000e+00> : vector<16x256xf32>
    %141 = tpu.matmul %138, %140, %cst_49 {dimension_numbers = #tpu.dot_dimension_numbers<[1], [0], [0], [1], [0, 0, 1, 1], [], []>} : vector<16x768xbf16>, vector<768x256xbf16>, vector<16x256xf32> -> vector<16x256xf32>
    %142 = arith.addf %110, %141 : vector<16x256xf32>
    %c0_50 = arith.constant 0 : index
    %c0_51 = arith.constant 0 : index
    %c0_52 = arith.constant 0 : index
    %143 = vector.load %arg11[%c0_50, %c0_51, %c0_52] : memref<1x16x256xf32, #tpu.memory_space<vmem>>, vector<1x16x256xf32>
    %144 = vector.shape_cast %143 : vector<1x16x256xf32> to vector<16x256xf32>
    %145 = vector.shape_cast %142 : vector<16x256xf32> to vector<1x16x256xf32>
    tpu.vector_store %arg11[%c0_50, %c0_51, %c0_52], %145 {strides = array<i32>} : memref<1x16x256xf32, #tpu.memory_space<vmem>>, vector<1x16x256xf32>,
    return
  }
  func.func @transform_0(%arg0: i32, %arg1: i32) -> (i32, i32, i32) {
    %c0_i32 = arith.constant 0 : i32
    %c0_i32_0 = arith.constant 0 : i32
    %c0_i32_1 = arith.constant 0 : i32
    return %arg0, %c0_i32, %c0_i32_0 : i32, i32, i32
  }
  func.func @transform_1(%arg0: i32, %arg1: i32) -> (i32, i32) {
    %c0_i32 = arith.constant 0 : i32
    %c0_i32_0 = arith.constant 0 : i32
    %c0_i32_1 = arith.constant 0 : i32
    return %c0_i32, %c0_i32_0 : i32, i32
  }
  func.func @transform_2(%arg0: i32, %arg1: i32) -> (i32, i32) {
    %c0_i32 = arith.constant 0 : i32
    %c0_i32_0 = arith.constant 0 : i32
    %c0_i32_1 = arith.constant 0 : i32
    return %c0_i32, %c0_i32_0 : i32, i32
  }
  func.func @transform_3(%arg0: i32, %arg1: i32) -> (i32, i32, i32) {
    %c0_i32 = arith.constant 0 : i32
    %c0_i32_0 = arith.constant 0 : i32
    %c0_i32_1 = arith.constant 0 : i32
    return %arg1, %c0_i32, %c0_i32_0 : i32, i32, i32
  }
  func.func @transform_4(%arg0: i32, %arg1: i32) -> (i32, i32, i32) {
    %c0_i32 = arith.constant 0 : i32
    %c0_i32_0 = arith.constant 0 : i32
    %c0_i32_1 = arith.constant 0 : i32
    return %arg1, %c0_i32, %c0_i32_0 : i32, i32, i32
  }
  func.func @transform_5(%arg0: i32, %arg1: i32) -> (i32, i32, i32) {
    %c0_i32 = arith.constant 0 : i32
    %c0_i32_0 = arith.constant 0 : i32
    %c0_i32_1 = arith.constant 0 : i32
    return %arg1, %c0_i32, %c0_i32_0 : i32, i32, i32
  }
  func.func @transform_6(%arg0: i32, %arg1: i32) -> (i32, i32, i32) {
    %c0_i32 = arith.constant 0 : i32
    %c0_i32_0 = arith.constant 0 : i32
    %c0_i32_1 = arith.constant 0 : i32
    return %arg1, %c0_i32, %c0_i32_0 : i32, i32, i32
  }
  func.func @transform_7(%arg0: i32, %arg1: i32) -> (i32, i32, i32) {
    %c0_i32 = arith.constant 0 : i32
    %c0_i32_0 = arith.constant 0 : i32
    %c0_i32_1 = arith.constant 0 : i32
    return %arg1, %c0_i32, %c0_i32_0 : i32, i32, i32
  }
  func.func @transform_8(%arg0: i32, %arg1: i32) -> (i32, i32, i32) {
    %c0_i32 = arith.constant 0 : i32
    %c0_i32_0 = arith.constant 0 : i32
    %c0_i32_1 = arith.constant 0 : i32
    return %arg1, %c0_i32, %c0_i32_0 : i32, i32, i32
  }
  func.func @transform_9(%arg0: i32, %arg1: i32) -> (i32, i32, i32) {
    %c0_i32 = arith.constant 0 : i32
    %c0_i32_0 = arith.constant 0 : i32
    %c0_i32_1 = arith.constant 0 : i32
    return %arg0, %c0_i32, %c0_i32_0 : i32, i32, i32
  }
}

</mosaic_0001>

<llo_original>
// kernel: tpu_custom_call.1
$region0: #{tpu_custom_call.1}
  #allocation0 [shape = 'u32[]', space=smem, size = 0x4, offset = 0x4, fixed_abs, tag = 'smem constant byte address 0x4 - core index']
  #allocation1 [shape = 'u32[144,128]{1,0:T(1,128)}', space=vmem, size = 0x12000, scoped, tag = 'internal scratch']
  %s0 = inlined_call_operand.hbm [shape: f32[2,16,256], index: 0, kind: input, shape index: {}]
  %s1 = inlined_call_operand.hbm [shape: f32[16,128], index: 1, kind: input, shape index: {}]
  %s2 = inlined_call_operand.hbm [shape: f32[16,128], index: 2, kind: input, shape index: {}]
  %s3 = inlined_call_operand.hbm [shape: f32[2,1,256], index: 3, kind: input, shape index: {}]
  %s4 = inlined_call_operand.hbm [shape: bf16[2,256,768], index: 4, kind: input, shape index: {}]
  %s5 = inlined_call_operand.hbm [shape: bf16[2,256,256], index: 5, kind: input, shape index: {}]
  %s6 = inlined_call_operand.hbm [shape: f32[2,1,256], index: 6, kind: input, shape index: {}]
  %s7 = inlined_call_operand.hbm [shape: bf16[2,256,1536], index: 7, kind: input, shape index: {}]
  %s8 = inlined_call_operand.hbm [shape: bf16[2,768,256], index: 8, kind: input, shape index: {}]
  %s9 = inlined_call_operand.hbm [shape: f32[2,16,256], index: 9, kind: output, shape index: {}]
  %s10 = sld [smem:[#allocation0]]
  $region109: #{tpu_custom_call.1} parent=0
    _
  %s12 = ssub.s32 1, %s10
  %s13 = scalar_select 0, %s12, %s10
  $region1: #{tpu_custom_call.1} parent=0
    #allocation2 [shape = 'u8[32768]{0}', space=vmem, size = 0x8000, scoped, tag = 'input window, operand 0']
    #allocation3 [shape = 's32[2]{0}', space=sflag, size = 0x8, scoped, tag = 'scoped memory for tpu_custom_call.1']
    #allocation4 [shape = 's32[2]{0}', space=sflag, size = 0x8, scoped, tag = 'scoped memory for tpu_custom_call.1']
    #allocation5 [shape = 'u8[8192]{0}', space=vmem, size = 0x2000, scoped, tag = 'input window, operand 1, single buffered']
    #allocation6 [shape = 's32[1]{0}', space=sflag, size = 0x4, scoped, tag = 'scoped memory for tpu_custom_call.1']
    #allocation7 [shape = 'u8[8192]{0}', space=vmem, size = 0x2000, scoped, tag = 'input window, operand 2, single buffered']
    #allocation8 [shape = 'u8[2048]{0}', space=vmem, size = 0x800, scoped, tag = 'input window, operand 3']
    #allocation9 [shape = 's32[2]{0}', space=sflag, size = 0x8, scoped, tag = 'scoped memory for tpu_custom_call.1']
    #allocation10 [shape = 'u8[786432]{0}', space=vmem, size = 0xc0000, scoped, tag = 'input window, operand 4']
    #allocation11 [shape = 'u8[262144]{0}', space=vmem, size = 0x40000, scoped, tag = 'input window, operand 5']
    #allocation12 [shape = 's32[2]{0}', space=sflag, size = 0x8, scoped, tag = 'scoped memory for tpu_custom_call.1']
    #allocation13 [shape = 'u8[2048]{0}', space=vmem, size = 0x800, scoped, tag = 'input window, operand 6']
    #allocation14 [shape = 'u8[1572864]{0}', space=vmem, size = 0x180000, scoped, tag = 'input window, operand 7']
    #allocation15 [shape = 's32[2]{0}', space=sflag, size = 0x8, scoped, tag = 'scoped memory for tpu_custom_call.1']
    #allocation16 [shape = 'u8[786432]{0}', space=vmem, size = 0xc0000, scoped, tag = 'input window, operand 8']
    #allocation17 [shape = 'u8[32768]{0}', space=vmem, size = 0x8000, scoped, tag = 'output window, operand 0']
    %14 = vsyncpa [#allocation3], 0
    %s15 = scalar_lea.sflag [#allocation3], 1
    %16 = vsyncpa %s15, 0
    %17 = vsyncpa [#allocation6], 0
    %18 = vsyncpa [#allocation9], 0
    %s19 = scalar_lea.sflag [#allocation9], 1
    %20 = vsyncpa %s19, 0
    %21 = vsyncpa [#allocation12], 0
    %s22 = scalar_lea.sflag [#allocation12], 1
    %23 = vsyncpa %s22, 0
    %24 = vsyncpa [#allocation15], 0
    %s25 = scalar_lea.sflag [#allocation15], 1
    %26 = vsyncpa %s25, 0
    %27 = vsyncpa [#allocation4], 0
    %s28 = scalar_lea.sflag [#allocation4], 1
    %29 = vsyncpa %s28, 0
    loop: start=0, step=1, limit=6
    $region2: #{tpu_custom_call.1} parent=1 // loop_pre_header
      _
    $region3: #{tpu_custom_call.1} parent=1 // loop_header
      %s31 = sphi 0, %s35
      %p32 = scmp.ge.s32.totalorder %s31, 6
      %s38 = sphi 0, %s50
      %s39 = sphi 0, %s46
      %s40 = sphi 0, %s38
      %s41 = sphi 0, %s39
      %s42 = sphi 0, %s40
      %s43 = sphi 0, %s41
      %s53 = sphi 0, %s55
      %s56 = sphi 0, %s53
      %s57 = sphi 0, %s56
      %s73 = sphi 0, %s57
      %s77 = sphi 0, %s77
      %s79 = sphi 0, %s77
      %s80 = sphi 0, %s79
      %s94 = sphi 0, %s80
      %s98 = sphi 0, %s98
      %s100 = sphi 0, %s98
      %s101 = sphi 0, %s100
      %s115 = sphi 0, %s101
      %s121 = sphi 0, %s123
      %s124 = sphi 0, %s121
      %s125 = sphi 0, %s124
      %s141 = sphi 0, %s125
      %s147 = sphi 0, %s149
      %s150 = sphi 0, %s147
      %s151 = sphi 0, %s150
      %s167 = sphi 0, %s151
      %s173 = sphi 0, %s175
      %s176 = sphi 0, %s173
      %s177 = sphi 0, %s176
      %s193 = sphi 0, %s177
      %s199 = sphi 0, %s201
      %s202 = sphi 0, %s199
      %s203 = sphi 0, %s202
      %s219 = sphi 0, %s203
      %s225 = sphi 0, %s227
      %s228 = sphi 0, %s225
      %s229 = sphi 0, %s228
      %s245 = sphi 0, %s229
      %s251 = sphi 0, %s253
      %s254 = sphi 0, %s251
      %s255 = sphi 0, %s254
      %s271 = sphi 0, %s255
      %s277 = sphi 0, %s279
      %s280 = sphi 0, %s277
      %s281 = sphi 0, %s280
      %s297 = sphi 0, %s281
    $region4: #{tpu_custom_call.1} parent=1 // loop_header_branch
      %34 = sbr.rel (%p32) target = $region8
    $region5: #{tpu_custom_call.1} parent=1 // loop_body
      %s36 = ssub.s32 %s31, 1
      %s37 = ssub.s32 %s31, 2
      %s44 = sadd.s32 1, %s39
      %p45 = scmp.ge.s32.totalorder %s44, 2
      %s46 = scalar_select %p45, 0, %s44
      %s47 = sadd.s32 1, %s38
      %s48 = scalar_select %p45, %s47, %s38
      %p49 = scmp.ge.s32.totalorder %s48, 2
      %s50 = scalar_select %p49, 0, %s48
      %s51 = ssub.s32 %s38, %s50
      %p52 = scmp.eq.s32.totalorder %s51, 0
      %s54 = sadd.s32 %s53, 1
      %s55 = scalar_select %p52, %s53, %s54
      %p58 = pneg %p52
      %p59 = scmp.eq.s32.totalorder %s31, 3
      %p60 = por %p58, %p59
      %p61 = scmp.ne.s32.totalorder %s53, %s56
      %p62 = scmp.eq.s32.totalorder %s31, 0
      %p63 = por %p61, %p62
      %p64 = scmp.ne.s32.totalorder %s53, %s56
      %p65 = scmp.eq.s32.totalorder %s36, 3
      %p66 = por %p64, %p65
      %p67 = scmp.ne.s32.totalorder %s56, %s57
      %p68 = scmp.eq.s32.totalorder %s36, 0
      %p69 = por %p67, %p68
      %p70 = scmp.ne.s32.totalorder %s56, %s57
      %p71 = scmp.eq.s32.totalorder %s37, 3
      %p72 = por %p70, %p71
      %p74 = scmp.ne.s32.totalorder %s57, %s73
      %p75 = scmp.eq.s32.totalorder %s37, 0
      %p76 = por %p74, %p75
      %s78 = sadd.s32 %s77, 1
      %p81 = scmp.eq.s32.totalorder %s31, 3
      %p82 = scmp.ne.s32.totalorder %s77, %s79
      %p83 = scmp.eq.s32.totalorder %s31, 0
      %p84 = por %p82, %p83
      %p85 = scmp.ne.s32.totalorder %s77, %s79
      %p86 = scmp.eq.s32.totalorder %s36, 3
      %p87 = por %p85, %p86
      %p88 = scmp.ne.s32.totalorder %s79, %s80
      %p89 = scmp.eq.s32.totalorder %s36, 0
      %p90 = por %p88, %p89
      %p91 = scmp.ne.s32.totalorder %s79, %s80
      %p92 = scmp.eq.s32.totalorder %s37, 3
      %p93 = por %p91, %p92
      %p95 = scmp.ne.s32.totalorder %s80, %s94
      %p96 = scmp.eq.s32.totalorder %s37, 0
      %p97 = por %p95, %p96
      %s99 = sadd.s32 %s98, 1
      %p102 = scmp.eq.s32.totalorder %s31, 3
      %p103 = scmp.ne.s32.totalorder %s98, %s100
      %p104 = scmp.eq.s32.totalorder %s31, 0
      %p105 = por %p103, %p104
      %p106 = scmp.ne.s32.totalorder %s98, %s100
      %p107 = scmp.eq.s32.totalorder %s36, 3
      %p108 = por %p106, %p107
      %p109 = scmp.ne.s32.totalorder %s100, %s101
      %p110 = scmp.eq.s32.totalorder %s36, 0
      %p111 = por %p109, %p110
      %p112 = scmp.ne.s32.totalorder %s100, %s101
      %p113 = scmp.eq.s32.totalorder %s37, 3
      %p114 = por %p112, %p113
      %p116 = scmp.ne.s32.totalorder %s101, %s115
      %p117 = scmp.eq.s32.totalorder %s37, 0
      %p118 = por %p116, %p117
      %s119 = ssub.s32 %s39, %s46
      %p120 = scmp.eq.s32.totalorder %s119, 0
      %s122 = sadd.s32 %s121, 1
      %s123 = scalar_select %p120, %s121, %s122
      %p126 = pneg %p120
      %p127 = scmp.eq.s32.totalorder %s31, 3
      %p128 = por %p126, %p127
      %p129 = scmp.ne.s32.totalorder %s121, %s124
      %p130 = scmp.eq.s32.totalorder %s31, 0
      %p131 = por %p129, %p130
      %p132 = scmp.ne.s32.totalorder %s121, %s124
      %p133 = scmp.eq.s32.totalorder %s36, 3
      %p134 = por %p132, %p133
      %p135 = scmp.ne.s32.totalorder %s124, %s125
      %p136 = scmp.eq.s32.totalorder %s36, 0
      %p137 = por %p135, %p136
      %p138 = scmp.ne.s32.totalorder %s124, %s125
      %p139 = scmp.eq.s32.totalorder %s37, 3
      %p140 = por %p138, %p139
      %p142 = scmp.ne.s32.totalorder %s125, %s141
      %p143 = scmp.eq.s32.totalorder %s37, 0
      %p144 = por %p142, %p143
      %s145 = ssub.s32 %s39, %s46
      %p146 = scmp.eq.s32.totalorder %s145, 0
      %s148 = sadd.s32 %s147, 1
      %s149 = scalar_select %p146, %s147, %s148
      %p152 = pneg %p146
      %p153 = scmp.eq.s32.totalorder %s31, 3
      %p154 = por %p152, %p153
      %p155 = scmp.ne.s32.totalorder %s147, %s150
      %p156 = scmp.eq.s32.totalorder %s31, 0
      %p157 = por %p155, %p156
      %p158 = scmp.ne.s32.totalorder %s147, %s150
      %p159 = scmp.eq.s32.totalorder %s36, 3
      %p160 = por %p158, %p159
      %p161 = scmp.ne.s32.totalorder %s150, %s151
      %p162 = scmp.eq.s32.totalorder %s36, 0
      %p163 = por %p161, %p162
      %p164 = scmp.ne.s32.totalorder %s150, %s151
      %p165 = scmp.eq.s32.totalorder %s37, 3
      %p166 = por %p164, %p165
      %p168 = scmp.ne.s32.totalorder %s151, %s167
      %p169 = scmp.eq.s32.totalorder %s37, 0
      %p170 = por %p168, %p169
      %s171 = ssub.s32 %s39, %s46
      %p172 = scmp.eq.s32.totalorder %s171, 0
      %s174 = sadd.s32 %s173, 1
      %s175 = scalar_select %p172, %s173, %s174
      %p178 = pneg %p172
      %p179 = scmp.eq.s32.totalorder %s31, 3
      %p180 = por %p178, %p179
      %p181 = scmp.ne.s32.totalorder %s173, %s176
      %p182 = scmp.eq.s32.totalorder %s31, 0
      %p183 = por %p181, %p182
      %p184 = scmp.ne.s32.totalorder %s173, %s176
      %p185 = scmp.eq.s32.totalorder %s36, 3
      %p186 = por %p184, %p185
      %p187 = scmp.ne.s32.totalorder %s176, %s177
      %p188 = scmp.eq.s32.totalorder %s36, 0
      %p189 = por %p187, %p188
      %p190 = scmp.ne.s32.totalorder %s176, %s177
      %p191 = scmp.eq.s32.totalorder %s37, 3
      %p192 = por %p190, %p191
      %p194 = scmp.ne.s32.totalorder %s177, %s193
      %p195 = scmp.eq.s32.totalorder %s37, 0
      %p196 = por %p194, %p195
      %s197 = ssub.s32 %s39, %s46
      %p198 = scmp.eq.s32.totalorder %s197, 0
      %s200 = sadd.s32 %s199, 1
      %s201 = scalar_select %p198, %s199, %s200
      %p204 = pneg %p198
      %p205 = scmp.eq.s32.totalorder %s31, 3
      %p206 = por %p204, %p205
      %p207 = scmp.ne.s32.totalorder %s199, %s202
      %p208 = scmp.eq.s32.totalorder %s31, 0
      %p209 = por %p207, %p208
      %p210 = scmp.ne.s32.totalorder %s199, %s202
      %p211 = scmp.eq.s32.totalorder %s36, 3
      %p212 = por %p210, %p211
      %p213 = scmp.ne.s32.totalorder %s202, %s203
      %p214 = scmp.eq.s32.totalorder %s36, 0
      %p215 = por %p213, %p214
      %p216 = scmp.ne.s32.totalorder %s202, %s203
      %p217 = scmp.eq.s32.totalorder %s37, 3
      %p218 = por %p216, %p217
      %p220 = scmp.ne.s32.totalorder %s203, %s219
      %p221 = scmp.eq.s32.totalorder %s37, 0
      %p222 = por %p220, %p221
      %s223 = ssub.s32 %s39, %s46
      %p224 = scmp.eq.s32.totalorder %s223, 0
      %s226 = sadd.s32 %s225, 1
      %s227 = scalar_select %p224, %s225, %s226
      %p230 = pneg %p224
      %p231 = scmp.eq.s32.totalorder %s31, 3
      %p232 = por %p230, %p231
      %p233 = scmp.ne.s32.totalorder %s225, %s228
      %p234 = scmp.eq.s32.totalorder %s31, 0
      %p235 = por %p233, %p234
      %p236 = scmp.ne.s32.totalorder %s225, %s228
      %p237 = scmp.eq.s32.totalorder %s36, 3
      %p238 = por %p236, %p237
      %p239 = scmp.ne.s32.totalorder %s228, %s229
      %p240 = scmp.eq.s32.totalorder %s36, 0
      %p241 = por %p239, %p240
      %p242 = scmp.ne.s32.totalorder %s228, %s229
      %p243 = scmp.eq.s32.totalorder %s37, 3
      %p244 = por %p242, %p243
      %p246 = scmp.ne.s32.totalorder %s229, %s245
      %p247 = scmp.eq.s32.totalorder %s37, 0
      %p248 = por %p246, %p247
      %s249 = ssub.s32 %s39, %s46
      %p250 = scmp.eq.s32.totalorder %s249, 0
      %s252 = sadd.s32 %s251, 1
      %s253 = scalar_select %p250, %s251, %s252
      %p256 = pneg %p250
      %p257 = scmp.eq.s32.totalorder %s31, 3
      %p258 = por %p256, %p257
      %p259 = scmp.ne.s32.totalorder %s251, %s254
      %p260 = scmp.eq.s32.totalorder %s31, 0
      %p261 = por %p259, %p260
      %p262 = scmp.ne.s32.totalorder %s251, %s254
      %p263 = scmp.eq.s32.totalorder %s36, 3
      %p264 = por %p262, %p263
      %p265 = scmp.ne.s32.totalorder %s254, %s255
      %p266 = scmp.eq.s32.totalorder %s36, 0
      %p267 = por %p265, %p266
      %p268 = scmp.ne.s32.totalorder %s254, %s255
      %p269 = scmp.eq.s32.totalorder %s37, 3
      %p270 = por %p268, %p269
      %p272 = scmp.ne.s32.totalorder %s255, %s271
      %p273 = scmp.eq.s32.totalorder %s37, 0
      %p274 = por %p272, %p273
      %s275 = ssub.s32 %s38, %s50
      %p276 = scmp.eq.s32.totalorder %s275, 0
      %s278 = sadd.s32 %s277, 1
      %s279 = scalar_select %p276, %s277, %s278
      %p282 = pneg %p276
      %p283 = scmp.eq.s32.totalorder %s31, 3
      %p284 = por %p282, %p283
      %p285 = scmp.ne.s32.totalorder %s277, %s280
      %p286 = scmp.eq.s32.totalorder %s31, 0
      %p287 = por %p285, %p286
      %p288 = scmp.ne.s32.totalorder %s277, %s280
      %p289 = scmp.eq.s32.totalorder %s36, 3
      %p290 = por %p288, %p289
      %p291 = scmp.ne.s32.totalorder %s280, %s281
      %p292 = scmp.eq.s32.totalorder %s36, 0
      %p293 = por %p291, %p292
      %p294 = scmp.ne.s32.totalorder %s280, %s281
      %p295 = scmp.eq.s32.totalorder %s37, 3
      %p296 = por %p294, %p295
      %p298 = scmp.ne.s32.totalorder %s281, %s297
      %p299 = scmp.eq.s32.totalorder %s37, 0
      %p300 = por %p298, %p299
      %p301 = scmp.le.s32.totalorder 1, %s31
      %p302 = scmp.lt.s32.totalorder %s31, 5
      %p303 = pnand %p301, %p302
      %p304 = pneg %p303
      // Predicated region
      $region9: #{tpu_custom_call.1} parent=5 // pred_check
        _
      $region10: #{tpu_custom_call.1} parent=5 // pred_check_branch
        %306 = sbr.rel (%p303) target = $region12
      $region11: #{tpu_custom_call.1} parent=5 // pred_region
        %s307 = ssub.s32 %s31, 1
        // Predicated region
        $region13: #{tpu_custom_call.1} parent=11 // pred_check
          %p308 = pneg %p90
        $region14: #{tpu_custom_call.1} parent=11 // pred_check_branch
          %310 = sbr.rel (%p308) target = $region16
        $region15: #{tpu_custom_call.1} parent=11 // pred_region
          %s312 = ssub.s32 256, 256
          %313 = vsyncadd [#allocation6], %s312
          %s314 = sshll.u32 [#allocation5], 4
          %s315 = int_to_ptr.vmem [resolvable:$true] %s314
          %320 = dma.hbm_to_vmem [thread:$0]  %s1, 256, %s315, [#allocation6], 128, 128, 8
        $region16: #{tpu_custom_call.1} parent=11 // pred_fallthru
          _
        // Predicated region
        $region17: #{tpu_custom_call.1} parent=11 // pred_check
          %p321 = pneg %p111
        $region18: #{tpu_custom_call.1} parent=11 // pred_check_branch
          %323 = sbr.rel (%p321) target = $region20
        $region19: #{tpu_custom_call.1} parent=11 // pred_region
          %s325 = ssub.s32 256, 256
          %326 = vsyncadd [#allocation6], %s325
          %s327 = sshll.u32 [#allocation7], 4
          %s328 = int_to_ptr.vmem [resolvable:$true] %s327
          %333 = dma.hbm_to_vmem [thread:$0]  %s2, 256, %s328, [#allocation6], 128, 128, 8
        $region20: #{tpu_custom_call.1} parent=11 // pred_fallthru
          _
      $region12: #{tpu_custom_call.1} parent=5 // pred_fallthru
        _
      %p334 = scmp.lt.s32.totalorder %s31, 4
      // Predicated region
      $region21: #{tpu_custom_call.1} parent=5 // pred_check
        %p335 = pneg %p334
      $region22: #{tpu_custom_call.1} parent=5 // pred_check_branch
        %337 = sbr.rel (%p335) target = $region24
      $region23: #{tpu_custom_call.1} parent=5 // pred_region
        // Predicated region
        $region25: #{tpu_custom_call.1} parent=23 // pred_check
          %p338 = pneg %p63
        $region26: #{tpu_custom_call.1} parent=23 // pred_check_branch
          %340 = sbr.rel (%p338) target = $region28
        $region27: #{tpu_custom_call.1} parent=23 // pred_region
          %s341 = sand.u32 %s53, 1
          %s342 = scalar_lea.sflag [#allocation3], %s341
          %s343 = sand.u32 %s53, 1
          %s344 = smul.addr %s343, 32
          %s345 = scalar_lea.vmem [#allocation2], %s344
          %s347 = ssub.s32 512, 512
          %348 = vsyncadd %s342, %s347
          %s349 = smul.addr %s38, 4
          %s350 = smul.addr %s349, 128
          %s351 = scalar_lea.hbm %s0, %s350
          %s352 = sshll.u32 %s345, 4
          %s353 = int_to_ptr.vmem [resolvable:$true] %s352
          %358 = dma.hbm_to_vmem [thread:$0]  %s351, 512, %s353, %s342, 256, 256, 16
        $region28: #{tpu_custom_call.1} parent=23 // pred_fallthru
          _
        // Predicated region
        $region29: #{tpu_custom_call.1} parent=23 // pred_check
          %p359 = pneg %p131
        $region30: #{tpu_custom_call.1} parent=23 // pred_check_branch
          %361 = sbr.rel (%p359) target = $region32
        $region31: #{tpu_custom_call.1} parent=23 // pred_region
          %s362 = sand.u32 %s31, 1
          %s363 = scalar_lea.sflag [#allocation9], %s362
          %s364 = sand.u32 %s121, 1
          %s365 = smul.addr %s364, 2
          %s366 = scalar_lea.vmem [#allocation8], %s365
          %s368 = ssub.s32 32, 32
          %369 = vsyncadd %s363, %s368
          %s370 = smul.addr %s39, 2
          %s371 = smul.addr %s370, 16
          %s372 = scalar_lea.hbm %s3, %s371
          %s374 = sshll.u32 %s366, 4
          %s375 = int_to_ptr.vmem [resolvable:$true] %s374
          %377 = dma.hbm_to_vmem [thread:$0]  %s372, 32, %s375, %s363
        $region32: #{tpu_custom_call.1} parent=23 // pred_fallthru
          _
        // Predicated region
        $region33: #{tpu_custom_call.1} parent=23 // pred_check
          %p378 = pneg %p157
        $region34: #{tpu_custom_call.1} parent=23 // pred_check_branch
          %380 = sbr.rel (%p378) target = $region36
        $region35: #{tpu_custom_call.1} parent=23 // pred_region
          %s381 = sand.u32 %s31, 1
          %s382 = scalar_lea.sflag [#allocation9], %s381
          %s383 = sand.u32 %s147, 1
          %s384 = smul.addr %s383, 768
          %s385 = scalar_lea.vmem [#allocation10], %s384
          %s387 = ssub.s32 12288, 12288
          %388 = vsyncadd %s382, %s387
          %s389 = smul.addr %s39, 192
          %s390 = smul.addr %s389, 64
          %s391 = scalar_lea.hbm %s4, %s390
          %s392 = sshll.u32 %s385, 4
          %s393 = int_to_ptr.vmem [resolvable:$true] %s392
          %398 = dma.hbm_to_vmem [thread:$0]  %s391, 12288, %s393, %s382, 384, 384, 24
        $region36: #{tpu_custom_call.1} parent=23 // pred_fallthru
          _
        // Predicated region
        $region37: #{tpu_custom_call.1} parent=23 // pred_check
          %p399 = pneg %p183
        $region38: #{tpu_custom_call.1} parent=23 // pred_check_branch
          %401 = sbr.rel (%p399) target = $region40
        $region39: #{tpu_custom_call.1} parent=23 // pred_region
          %s402 = sand.u32 %s31, 1
          %s403 = scalar_lea.sflag [#allocation12], %s402
          %s404 = sand.u32 %s173, 1
          %s405 = smul.addr %s404, 256
          %s406 = scalar_lea.vmem [#allocation11], %s405
          %s408 = ssub.s32 4096, 4096
          %409 = vsyncadd %s403, %s408
          %s410 = smul.addr %s39, 64
          %s411 = smul.addr %s410, 64
          %s412 = scalar_lea.hbm %s5, %s411
          %s413 = sshll.u32 %s406, 4
          %s414 = int_to_ptr.vmem [resolvable:$true] %s413
          %419 = dma.hbm_to_vmem [thread:$0]  %s412, 4096, %s414, %s403, 128, 128, 8
        $region40: #{tpu_custom_call.1} parent=23 // pred_fallthru
          _
        // Predicated region
        $region41: #{tpu_custom_call.1} parent=23 // pred_check
          %p420 = pneg %p209
        $region42: #{tpu_custom_call.1} parent=23 // pred_check_branch
          %422 = sbr.rel (%p420) target = $region44
        $region43: #{tpu_custom_call.1} parent=23 // pred_region
          %s423 = sand.u32 %s31, 1
          %s424 = scalar_lea.sflag [#allocation12], %s423
          %s425 = sand.u32 %s199, 1
          %s426 = smul.addr %s425, 2
          %s427 = scalar_lea.vmem [#allocation13], %s426
          %s429 = ssub.s32 32, 32
          %430 = vsyncadd %s424, %s429
          %s431 = smul.addr %s39, 2
          %s432 = smul.addr %s431, 16
          %s433 = scalar_lea.hbm %s6, %s432
          %s435 = sshll.u32 %s427, 4
          %s436 = int_to_ptr.vmem [resolvable:$true] %s435
          %438 = dma.hbm_to_vmem [thread:$0]  %s433, 32, %s436, %s424
        $region44: #{tpu_custom_call.1} parent=23 // pred_fallthru
          _
        // Predicated region
        $region45: #{tpu_custom_call.1} parent=23 // pred_check
          %p439 = pneg %p235
        $region46: #{tpu_custom_call.1} parent=23 // pred_check_branch
          %441 = sbr.rel (%p439) target = $region48
        $region47: #{tpu_custom_call.1} parent=23 // pred_region
          %s442 = sand.u32 %s31, 1
          %s443 = scalar_lea.sflag [#allocation15], %s442
          %s444 = sand.u32 %s225, 1
          %s445 = smul.addr %s444, 1536
          %s446 = scalar_lea.vmem [#allocation14], %s445
          %s448 = ssub.s32 24576, 24576
          %449 = vsyncadd %s443, %s448
          %s450 = smul.addr %s39, 384
          %s451 = smul.addr %s450, 64
          %s452 = scalar_lea.hbm %s7, %s451
          %s453 = sshll.u32 %s446, 4
          %s454 = int_to_ptr.vmem [resolvable:$true] %s453
          %459 = dma.hbm_to_vmem [thread:$0]  %s452, 24576, %s454, %s443, 768, 768, 48
        $region48: #{tpu_custom_call.1} parent=23 // pred_fallthru
          _
        // Predicated region
        $region49: #{tpu_custom_call.1} parent=23 // pred_check
          %p460 = pneg %p261
        $region50: #{tpu_custom_call.1} parent=23 // pred_check_branch
          %462 = sbr.rel (%p460) target = $region52
        $region51: #{tpu_custom_call.1} parent=23 // pred_region
          %s463 = sand.u32 %s31, 1
          %s464 = scalar_lea.sflag [#allocation15], %s463
          %s465 = sand.u32 %s251, 1
          %s466 = smul.addr %s465, 768
          %s467 = scalar_lea.vmem [#allocation16], %s466
          %s469 = ssub.s32 12288, 12288
          %470 = vsyncadd %s464, %s469
          %s471 = smul.addr %s39, 192
          %s472 = smul.addr %s471, 64
          %s473 = scalar_lea.hbm %s8, %s472
          %s474 = sshll.u32 %s467, 4
          %s475 = int_to_ptr.vmem [resolvable:$true] %s474
          %480 = dma.hbm_to_vmem [thread:$0]  %s473, 12288, %s475, %s464, 128, 128, 8
        $region52: #{tpu_custom_call.1} parent=23 // pred_fallthru
          _
      $region24: #{tpu_custom_call.1} parent=5 // pred_fallthru
        _
      %p481 = scmp.le.s32.totalorder 1, %s31
      %p482 = scmp.lt.s32.totalorder %s31, 5
      %p483 = pnand %p481, %p482
      %p484 = pneg %p483
      // Predicated region
      $region53: #{tpu_custom_call.1} parent=5 // pred_check
        _
      $region54: #{tpu_custom_call.1} parent=5 // pred_check_branch
        %486 = sbr.rel (%p483) target = $region56
      $region55: #{tpu_custom_call.1} parent=5 // pred_region
        %s487 = ssub.s32 %s31, 1
        %s488 = sand.u32 %s56, 1
        %s489 = scalar_lea.sflag [#allocation3], %s488
        %s490 = sand.u32 %s56, 1
        %s491 = smul.addr %s490, 32
        %s492 = scalar_lea.vmem [#allocation2], %s491
        // Predicated region
        $region57: #{tpu_custom_call.1} parent=55 // pred_check
          %p493 = pneg %p69
        $region58: #{tpu_custom_call.1} parent=55 // pred_check_branch
          %495 = sbr.rel (%p493) target = $region60
        $region59: #{tpu_custom_call.1} parent=55 // pred_region
          %496 = dma.done %s489, 512
        $region60: #{tpu_custom_call.1} parent=55 // pred_fallthru
          _
        // Predicated region
        $region61: #{tpu_custom_call.1} parent=55 // pred_check
          %p497 = pneg %p90
        $region62: #{tpu_custom_call.1} parent=55 // pred_check_branch
          %499 = sbr.rel (%p497) target = $region64
        $region63: #{tpu_custom_call.1} parent=55 // pred_region
          %500 = dma.done [#allocation6], 256
        $region64: #{tpu_custom_call.1} parent=55 // pred_fallthru
          _
        // Predicated region
        $region65: #{tpu_custom_call.1} parent=55 // pred_check
          %p501 = pneg %p111
        $region66: #{tpu_custom_call.1} parent=55 // pred_check_branch
          %503 = sbr.rel (%p501) target = $region68
        $region67: #{tpu_custom_call.1} parent=55 // pred_region
          %504 = dma.done [#allocation6], 256
        $region68: #{tpu_custom_call.1} parent=55 // pred_fallthru
          _
        %s505 = sand.u32 %s36, 1
        %s506 = scalar_lea.sflag [#allocation9], %s505
        %s507 = sand.u32 %s124, 1
        %s508 = smul.addr %s507, 2
        %s509 = scalar_lea.vmem [#allocation8], %s508
        // Predicated region
        $region69: #{tpu_custom_call.1} parent=55 // pred_check
          %p510 = pneg %p137
        $region70: #{tpu_custom_call.1} parent=55 // pred_check_branch
          %512 = sbr.rel (%p510) target = $region72
        $region71: #{tpu_custom_call.1} parent=55 // pred_region
          %513 = dma.done %s506, 32
        $region72: #{tpu_custom_call.1} parent=55 // pred_fallthru
          _
        %s514 = sand.u32 %s36, 1
        %s515 = scalar_lea.sflag [#allocation9], %s514
        %s516 = sand.u32 %s150, 1
        %s517 = smul.addr %s516, 768
        %s518 = scalar_lea.vmem [#allocation10], %s517
        // Predicated region
        $region73: #{tpu_custom_call.1} parent=55 // pred_check
          %p519 = pneg %p163
        $region74: #{tpu_custom_call.1} parent=55 // pred_check_branch
          %521 = sbr.rel (%p519) target = $region76
        $region75: #{tpu_custom_call.1} parent=55 // pred_region
          %522 = dma.done %s515, 12288
        $region76: #{tpu_custom_call.1} parent=55 // pred_fallthru
          _
        %s523 = sand.u32 %s36, 1
        %s524 = scalar_lea.sflag [#allocation12], %s523
        %s525 = sand.u32 %s176, 1
        %s526 = smul.addr %s525, 256
        %s527 = scalar_lea.vmem [#allocation11], %s526
        // Predicated region
        $region77: #{tpu_custom_call.1} parent=55 // pred_check
          %p528 = pneg %p189
        $region78: #{tpu_custom_call.1} parent=55 // pred_check_branch
          %530 = sbr.rel (%p528) target = $region80
        $region79: #{tpu_custom_call.1} parent=55 // pred_region
          %531 = dma.done %s524, 4096
        $region80: #{tpu_custom_call.1} parent=55 // pred_fallthru
          _
        %s532 = sand.u32 %s36, 1
        %s533 = scalar_lea.sflag [#allocation12], %s532
        %s534 = sand.u32 %s202, 1
        %s535 = smul.addr %s534, 2
        %s536 = scalar_lea.vmem [#allocation13], %s535
        // Predicated region
        $region81: #{tpu_custom_call.1} parent=55 // pred_check
          %p537 = pneg %p215
        $region82: #{tpu_custom_call.1} parent=55 // pred_check_branch
          %539 = sbr.rel (%p537) target = $region84
        $region83: #{tpu_custom_call.1} parent=55 // pred_region
          %540 = dma.done %s533, 32
        $region84: #{tpu_custom_call.1} parent=55 // pred_fallthru
          _
        %s541 = sand.u32 %s36, 1
        %s542 = scalar_lea.sflag [#allocation15], %s541
        %s543 = sand.u32 %s228, 1
        %s544 = smul.addr %s543, 1536
        %s545 = scalar_lea.vmem [#allocation14], %s544
        // Predicated region
        $region85: #{tpu_custom_call.1} parent=55 // pred_check
          %p546 = pneg %p241
        $region86: #{tpu_custom_call.1} parent=55 // pred_check_branch
          %548 = sbr.rel (%p546) target = $region88
        $region87: #{tpu_custom_call.1} parent=55 // pred_region
          %549 = dma.done %s542, 24576
        $region88: #{tpu_custom_call.1} parent=55 // pred_fallthru
          _
        %s550 = sand.u32 %s36, 1
        %s551 = scalar_lea.sflag [#allocation15], %s550
        %s552 = sand.u32 %s254, 1
        %s553 = smul.addr %s552, 768
        %s554 = scalar_lea.vmem [#allocation16], %s553
        // Predicated region
        $region89: #{tpu_custom_call.1} parent=55 // pred_check
          %p555 = pneg %p267
        $region90: #{tpu_custom_call.1} parent=55 // pred_check_branch
          %557 = sbr.rel (%p555) target = $region92
        $region91: #{tpu_custom_call.1} parent=55 // pred_region
          %558 = dma.done %s551, 12288
        $region92: #{tpu_custom_call.1} parent=55 // pred_fallthru
          _
        %s559 = sand.u32 %s56, 1
        %s560 = scalar_lea.sflag [#allocation3], %s559
        %s561 = sand.u32 %s56, 1
        %s562 = smul.addr %s561, 32
        %s563 = scalar_lea.vmem [#allocation2], %s562
        %p564 = pneg %p69
        %p565 = pneg %p66
        %p566 = pneg %p90
        %p567 = pneg %p87
        %p568 = pneg %p111
        %p569 = pneg %p108
        %s570 = sand.u32 %s36, 1
        %s571 = scalar_lea.sflag [#allocation9], %s570
        %s572 = sand.u32 %s124, 1
        %s573 = smul.addr %s572, 2
        %s574 = scalar_lea.vmem [#allocation8], %s573
        %p575 = pneg %p137
        %p576 = pneg %p134
        %s577 = sand.u32 %s36, 1
        %s578 = scalar_lea.sflag [#allocation9], %s577
        %s579 = sand.u32 %s150, 1
        %s580 = smul.addr %s579, 768
        %s581 = scalar_lea.vmem [#allocation10], %s580
        %p582 = pneg %p163
        %p583 = pneg %p160
        %s584 = sand.u32 %s36, 1
        %s585 = scalar_lea.sflag [#allocation12], %s584
        %s586 = sand.u32 %s176, 1
        %s587 = smul.addr %s586, 256
        %s588 = scalar_lea.vmem [#allocation11], %s587
        %p589 = pneg %p189
        %p590 = pneg %p186
        %s591 = sand.u32 %s36, 1
        %s592 = scalar_lea.sflag [#allocation12], %s591
        %s593 = sand.u32 %s202, 1
        %s594 = smul.addr %s593, 2
        %s595 = scalar_lea.vmem [#allocation13], %s594
        %p596 = pneg %p215
        %p597 = pneg %p212
        %s598 = sand.u32 %s36, 1
        %s599 = scalar_lea.sflag [#allocation15], %s598
        %s600 = sand.u32 %s228, 1
        %s601 = smul.addr %s600, 1536
        %s602 = scalar_lea.vmem [#allocation14], %s601
        %p603 = pneg %p241
        %p604 = pneg %p238
        %s605 = sand.u32 %s36, 1
        %s606 = scalar_lea.sflag [#allocation15], %s605
        %s607 = sand.u32 %s254, 1
        %s608 = smul.addr %s607, 768
        %s609 = scalar_lea.vmem [#allocation16], %s608
        %p610 = pneg %p267
        %p611 = pneg %p264
        %p612 = pneg %p293
        %p613 = pneg %p290
        %s614 = sand.u32 %s280, 1
        %s615 = scalar_lea.sflag [#allocation4], %s614
        %s616 = sand.u32 %s280, 1
        %s617 = smul.addr %s616, 32
        %s618 = scalar_lea.vmem [#allocation17], %s617
        %p620 = scmp.eq.s32.totalorder %s41, 0
        // Predicated region
        $region93: #{tpu_custom_call.1} parent=55 // pred_check
          %p621 = pneg %p620
        $region94: #{tpu_custom_call.1} parent=55 // pred_check_branch
          %623 = sbr.rel (%p621) target = $region96
        $region95: #{tpu_custom_call.1} parent=55 // pred_region
          %v624 = vld [vmem:[%s492] sm:$0xff]
          %v625 = vld [vmem:[%s492 + $0x8] sm:$0xff]
          %v626 = vld [vmem:[%s492 + $0x10] sm:$0xff]
          %v627 = vld [vmem:[%s492 + $0x18] sm:$0xff]
          %628 = vst [vmem:[%s618] sm:$0xff] %v624
          %629 = vst [vmem:[%s618 + $0x8] sm:$0xff] %v625
          %630 = vst [vmem:[%s618 + $0x10] sm:$0xff] %v626
          %631 = vst [vmem:[%s618 + $0x18] sm:$0xff] %v627
        $region96: #{tpu_custom_call.1} parent=55 // pred_fallthru
          _
        %v632 = vld [vmem:[%s618] sm:$0xff]
        %v633 = vld [vmem:[%s618 + $0x8] sm:$0xff]
        %v634 = vld [vmem:[%s618 + $0x10] sm:$0xff]
        %v635 = vld [vmem:[%s618 + $0x18] sm:$0xff]
        %v636 = vld [vmem:[#allocation5] sm:$0xff]
        %v637 = vld [vmem:[#allocation5 + $0x8] sm:$0xff]
        %v638 = vld [vmem:[#allocation7] sm:$0xff]
        %v639 = vld [vmem:[#allocation7 + $0x8] sm:$0xff]
        %v640 = vld [vmem:[%s509] sm:$0x3]
        %v641 = vmul.f32 %v632, %v632
        %v642 = vmul.f32 %v633, %v633
        %v643 = vmul.f32 %v634, %v634
        %v644 = vmul.f32 %v635, %v635
        %v645 = vadd.f32 %v641, %v642
        %646 = vadd.xlane.f32.xlu0 %v645
        %v647 = vpop.xlane.xlu0 %646
        %v648 = vadd.f32 %v643, %v644
        %649 = vadd.xlane.f32.xlu0 %v648
        %v650 = vpop.xlane.xlu0 %649
        %v651 = vrcp.pop 256.0
        %v652 = vmul.f32 %v647, %v651
        %v653 = vmul.f32 %v650, %v651
        %v654 = vadd.f32 %v652, 1e-05
        %v655 = vadd.f32 %v653, 1e-05
        %v656 = vrsqrt.pop %v654
        %v657 = vrsqrt.pop %v655
        %v658 = vmul.f32 %v632, %v656
        %v659 = vmul.f32 %v633, %v656
        %v660 = vmul.f32 %v634, %v657
        %v661 = vmul.f32 %v635, %v657
        %v663 = vlaneseq
        %v664 = vshrl.u32 %v663, 7
        %v665 = vsub.s32 0, %v664
        %v666 = vrot.slane %v640, %v665
        %v667 = vlaneseq
        %v668 = vshrl.u32 %v667, 7
        %v669 = vsub.s32 1, %v668
        %v670 = vrot.slane %v640, %v669
        %v673 = vmul.f32 %v658, %v666
        %v674 = vmul.f32 %v659, %v670
        %v675 = vmul.f32 %v660, %v666
        %v676 = vmul.f32 %v661, %v670
        %v677 = vpack.c.bf16 %v675, %v673
        %v678 = vpack.c.bf16 %v676, %v674
        %v679 = vld [vmem:[%s518] sm:$0xff]
        %v680 = vld [vmem:[%s518 + $0x8] sm:$0xff]
        %v681 = vld [vmem:[%s518 + $0x10] sm:$0xff]
        %v682 = vld [vmem:[%s518 + $0x18] sm:$0xff]
        %v683 = vld [vmem:[%s518 + $0x20] sm:$0xff]
        %v684 = vld [vmem:[%s518 + $0x28] sm:$0xff]
        %v685 = vld [vmem:[%s518 + $0x30] sm:$0xff]
        %v686 = vld [vmem:[%s518 + $0x38] sm:$0xff]
        %v687 = vld [vmem:[%s518 + $0x40] sm:$0xff]
        %v688 = vld [vmem:[%s518 + $0x48] sm:$0xff]
        %v689 = vld [vmem:[%s518 + $0x50] sm:$0xff]
        %v690 = vld [vmem:[%s518 + $0x58] sm:$0xff]
        %v691 = vld [vmem:[%s518 + $0x60] sm:$0xff]
        %v692 = vld [vmem:[%s518 + $0x68] sm:$0xff]
        %v693 = vld [vmem:[%s518 + $0x70] sm:$0xff]
        %v694 = vld [vmem:[%s518 + $0x78] sm:$0xff]
        %v695 = vld [vmem:[%s518 + $0x80] sm:$0xff]
        %v696 = vld [vmem:[%s518 + $0x88] sm:$0xff]
        %v697 = vld [vmem:[%s518 + $0x90] sm:$0xff]
        %v698 = vld [vmem:[%s518 + $0x98] sm:$0xff]
        %v699 = vld [vmem:[%s518 + $0xa0] sm:$0xff]
        %v700 = vld [vmem:[%s518 + $0xa8] sm:$0xff]
        %v701 = vld [vmem:[%s518 + $0xb0] sm:$0xff]
        %v702 = vld [vmem:[%s518 + $0xb8] sm:$0xff]
        %v703 = vld [vmem:[%s518 + $0xc0] sm:$0xff]
        %v704 = vld [vmem:[%s518 + $0xc8] sm:$0xff]
        %v705 = vld [vmem:[%s518 + $0xd0] sm:$0xff]
        %v706 = vld [vmem:[%s518 + $0xd8] sm:$0xff]
        %v707 = vld [vmem:[%s518 + $0xe0] sm:$0xff]
        %v708 = vld [vmem:[%s518 + $0xe8] sm:$0xff]
        %v709 = vld [vmem:[%s518 + $0xf0] sm:$0xff]
        %v710 = vld [vmem:[%s518 + $0xf8] sm:$0xff]
        %v711 = vld [vmem:[%s518 + $0x100] sm:$0xff]
        %v712 = vld [vmem:[%s518 + $0x108] sm:$0xff]
        %v713 = vld [vmem:[%s518 + $0x110] sm:$0xff]
        %v714 = vld [vmem:[%s518 + $0x118] sm:$0xff]
        %v715 = vld [vmem:[%s518 + $0x120] sm:$0xff]
        %v716 = vld [vmem:[%s518 + $0x128] sm:$0xff]
        %v717 = vld [vmem:[%s518 + $0x130] sm:$0xff]
        %v718 = vld [vmem:[%s518 + $0x138] sm:$0xff]
        %v719 = vld [vmem:[%s518 + $0x140] sm:$0xff]
        %v720 = vld [vmem:[%s518 + $0x148] sm:$0xff]
        %v721 = vld [vmem:[%s518 + $0x150] sm:$0xff]
        %v722 = vld [vmem:[%s518 + $0x158] sm:$0xff]
        %v723 = vld [vmem:[%s518 + $0x160] sm:$0xff]
        %v724 = vld [vmem:[%s518 + $0x168] sm:$0xff]
        %v725 = vld [vmem:[%s518 + $0x170] sm:$0xff]
        %v726 = vld [vmem:[%s518 + $0x178] sm:$0xff]
        %v727 = vld [vmem:[%s518 + $0x180] sm:$0xff]
        %v728 = vld [vmem:[%s518 + $0x188] sm:$0xff]
        %v729 = vld [vmem:[%s518 + $0x190] sm:$0xff]
        %v730 = vld [vmem:[%s518 + $0x198] sm:$0xff]
        %v731 = vld [vmem:[%s518 + $0x1a0] sm:$0xff]
        %v732 = vld [vmem:[%s518 + $0x1a8] sm:$0xff]
        %v733 = vld [vmem:[%s518 + $0x1b0] sm:$0xff]
        %v734 = vld [vmem:[%s518 + $0x1b8] sm:$0xff]
        %v735 = vld [vmem:[%s518 + $0x1c0] sm:$0xff]
        %v736 = vld [vmem:[%s518 + $0x1c8] sm:$0xff]
        %v737 = vld [vmem:[%s518 + $0x1d0] sm:$0xff]
        %v738 = vld [vmem:[%s518 + $0x1d8] sm:$0xff]
        %v739 = vld [vmem:[%s518 + $0x1e0] sm:$0xff]
        %v740 = vld [vmem:[%s518 + $0x1e8] sm:$0xff]
        %v741 = vld [vmem:[%s518 + $0x1f0] sm:$0xff]
        %v742 = vld [vmem:[%s518 + $0x1f8] sm:$0xff]
        %v743 = vld [vmem:[%s518 + $0x200] sm:$0xff]
        %v744 = vld [vmem:[%s518 + $0x208] sm:$0xff]
        %v745 = vld [vmem:[%s518 + $0x210] sm:$0xff]
        %v746 = vld [vmem:[%s518 + $0x218] sm:$0xff]
        %v747 = vld [vmem:[%s518 + $0x220] sm:$0xff]
        %v748 = vld [vmem:[%s518 + $0x228] sm:$0xff]
        %v749 = vld [vmem:[%s518 + $0x230] sm:$0xff]
        %v750 = vld [vmem:[%s518 + $0x238] sm:$0xff]
        %v751 = vld [vmem:[%s518 + $0x240] sm:$0xff]
        %v752 = vld [vmem:[%s518 + $0x248] sm:$0xff]
        %v753 = vld [vmem:[%s518 + $0x250] sm:$0xff]
        %v754 = vld [vmem:[%s518 + $0x258] sm:$0xff]
        %v755 = vld [vmem:[%s518 + $0x260] sm:$0xff]
        %v756 = vld [vmem:[%s518 + $0x268] sm:$0xff]
        %v757 = vld [vmem:[%s518 + $0x270] sm:$0xff]
        %v758 = vld [vmem:[%s518 + $0x278] sm:$0xff]
        %v759 = vld [vmem:[%s518 + $0x280] sm:$0xff]
        %v760 = vld [vmem:[%s518 + $0x288] sm:$0xff]
        %v761 = vld [vmem:[%s518 + $0x290] sm:$0xff]
        %v762 = vld [vmem:[%s518 + $0x298] sm:$0xff]
        %v763 = vld [vmem:[%s518 + $0x2a0] sm:$0xff]
        %v764 = vld [vmem:[%s518 + $0x2a8] sm:$0xff]
        %v765 = vld [vmem:[%s518 + $0x2b0] sm:$0xff]
        %v766 = vld [vmem:[%s518 + $0x2b8] sm:$0xff]
        %v767 = vld [vmem:[%s518 + $0x2c0] sm:$0xff]
        %v768 = vld [vmem:[%s518 + $0x2c8] sm:$0xff]
        %v769 = vld [vmem:[%s518 + $0x2d0] sm:$0xff]
        %v770 = vld [vmem:[%s518 + $0x2d8] sm:$0xff]
        %v771 = vld [vmem:[%s518 + $0x2e0] sm:$0xff]
        %v772 = vld [vmem:[%s518 + $0x2e8] sm:$0xff]
        %v773 = vld [vmem:[%s518 + $0x2f0] sm:$0xff]
        %v774 = vld [vmem:[%s518 + $0x2f8] sm:$0xff]
        %v871 = vunpack.c.l.b16 %v679
        %v872 = vunpack.c.h.b16 %v679
        %v873 = vunpack.c.l.b16 %v680
        %v874 = vunpack.c.h.b16 %v680
        %v875 = vunpack.c.l.b16 %v681
        %v876 = vunpack.c.h.b16 %v681
        %v877 = vunpack.c.l.b16 %v682
        %v878 = vunpack.c.h.b16 %v682
        %v879 = vunpack.c.l.b16 %v683
        %v880 = vunpack.c.h.b16 %v683
        %v881 = vunpack.c.l.b16 %v684
        %v882 = vunpack.c.h.b16 %v684
        %v883 = vunpack.c.l.b16 %v685
        %v884 = vunpack.c.h.b16 %v685
        %v885 = vunpack.c.l.b16 %v686
        %v886 = vunpack.c.h.b16 %v686
        %v887 = vunpack.c.l.b16 %v687
        %v888 = vunpack.c.h.b16 %v687
        %v889 = vunpack.c.l.b16 %v688
        %v890 = vunpack.c.h.b16 %v688
        %v891 = vunpack.c.l.b16 %v689
        %v892 = vunpack.c.h.b16 %v689
        %v893 = vunpack.c.l.b16 %v690
        %v894 = vunpack.c.h.b16 %v690
        %v895 = vunpack.c.l.b16 %v691
        %v896 = vunpack.c.h.b16 %v691
        %v897 = vunpack.c.l.b16 %v692
        %v898 = vunpack.c.h.b16 %v692
        %v899 = vunpack.c.l.b16 %v693
        %v900 = vunpack.c.h.b16 %v693
        %v901 = vunpack.c.l.b16 %v694
        %v902 = vunpack.c.h.b16 %v694
        %v903 = vunpack.c.l.b16 %v695
        %v904 = vunpack.c.h.b16 %v695
        %v905 = vunpack.c.l.b16 %v696
        %v906 = vunpack.c.h.b16 %v696
        %v907 = vunpack.c.l.b16 %v697
        %v908 = vunpack.c.h.b16 %v697
        %v909 = vunpack.c.l.b16 %v698
        %v910 = vunpack.c.h.b16 %v698
        %v911 = vunpack.c.l.b16 %v699
        %v912 = vunpack.c.h.b16 %v699
        %v913 = vunpack.c.l.b16 %v700
        %v914 = vunpack.c.h.b16 %v700
        %v915 = vunpack.c.l.b16 %v701
        %v916 = vunpack.c.h.b16 %v701
        %v917 = vunpack.c.l.b16 %v702
        %v918 = vunpack.c.h.b16 %v702
        %v919 = vunpack.c.l.b16 %v703
        %v920 = vunpack.c.h.b16 %v703
        %v921 = vunpack.c.l.b16 %v704
        %v922 = vunpack.c.h.b16 %v704
        %v923 = vunpack.c.l.b16 %v705
        %v924 = vunpack.c.h.b16 %v705
        %v925 = vunpack.c.l.b16 %v706
        %v926 = vunpack.c.h.b16 %v706
        %v927 = vunpack.c.l.b16 %v707
        %v928 = vunpack.c.h.b16 %v707
        %v929 = vunpack.c.l.b16 %v708
        %v930 = vunpack.c.h.b16 %v708
        %v931 = vunpack.c.l.b16 %v709
        %v932 = vunpack.c.h.b16 %v709
        %v933 = vunpack.c.l.b16 %v710
        %v934 = vunpack.c.h.b16 %v710
        %v935 = vunpack.c.l.b16 %v711
        %v936 = vunpack.c.h.b16 %v711
        %v937 = vunpack.c.l.b16 %v712
        %v938 = vunpack.c.h.b16 %v712
        %v939 = vunpack.c.l.b16 %v713
        %v940 = vunpack.c.h.b16 %v713
        %v941 = vunpack.c.l.b16 %v714
        %v942 = vunpack.c.h.b16 %v714
        %v943 = vunpack.c.l.b16 %v715
        %v944 = vunpack.c.h.b16 %v715
        %v945 = vunpack.c.l.b16 %v716
        %v946 = vunpack.c.h.b16 %v716
        %v947 = vunpack.c.l.b16 %v717
        %v948 = vunpack.c.h.b16 %v717
        %v949 = vunpack.c.l.b16 %v718
        %v950 = vunpack.c.h.b16 %v718
        %v951 = vunpack.c.l.b16 %v719
        %v952 = vunpack.c.h.b16 %v719
        %v953 = vunpack.c.l.b16 %v720
        %v954 = vunpack.c.h.b16 %v720
        %v955 = vunpack.c.l.b16 %v721
        %v956 = vunpack.c.h.b16 %v721
        %v957 = vunpack.c.l.b16 %v722
        %v958 = vunpack.c.h.b16 %v722
        %v959 = vunpack.c.l.b16 %v723
        %v960 = vunpack.c.h.b16 %v723
        %v961 = vunpack.c.l.b16 %v724
        %v962 = vunpack.c.h.b16 %v724
        %v963 = vunpack.c.l.b16 %v725
        %v964 = vunpack.c.h.b16 %v725
        %v965 = vunpack.c.l.b16 %v726
        %v966 = vunpack.c.h.b16 %v726
        %v967 = vunpack.c.l.b16 %v727
        %v968 = vunpack.c.h.b16 %v727
        %v969 = vunpack.c.l.b16 %v728
        %v970 = vunpack.c.h.b16 %v728
        %v971 = vunpack.c.l.b16 %v729
        %v972 = vunpack.c.h.b16 %v729
        %v973 = vunpack.c.l.b16 %v730
        %v974 = vunpack.c.h.b16 %v730
        %v975 = vunpack.c.l.b16 %v731
        %v976 = vunpack.c.h.b16 %v731
        %v977 = vunpack.c.l.b16 %v732
        %v978 = vunpack.c.h.b16 %v732
        %v979 = vunpack.c.l.b16 %v733
        %v980 = vunpack.c.h.b16 %v733
        %v981 = vunpack.c.l.b16 %v734
        %v982 = vunpack.c.h.b16 %v734
        %v983 = vunpack.c.l.b16 %v735
        %v984 = vunpack.c.h.b16 %v735
        %v985 = vunpack.c.l.b16 %v736
        %v986 = vunpack.c.h.b16 %v736
        %v987 = vunpack.c.l.b16 %v737
        %v988 = vunpack.c.h.b16 %v737
        %v989 = vunpack.c.l.b16 %v738
        %v990 = vunpack.c.h.b16 %v738
        %v991 = vunpack.c.l.b16 %v739
        %v992 = vunpack.c.h.b16 %v739
        %v993 = vunpack.c.l.b16 %v740
        %v994 = vunpack.c.h.b16 %v740
        %v995 = vunpack.c.l.b16 %v741
        %v996 = vunpack.c.h.b16 %v741
        %v997 = vunpack.c.l.b16 %v742
        %v998 = vunpack.c.h.b16 %v742
        %v999 = vunpack.c.l.b16 %v743
        %v1000 = vunpack.c.h.b16 %v743
        %v1001 = vunpack.c.l.b16 %v744
        %v1002 = vunpack.c.h.b16 %v744
        %v1003 = vunpack.c.l.b16 %v745
        %v1004 = vunpack.c.h.b16 %v745
        %v1005 = vunpack.c.l.b16 %v746
        %v1006 = vunpack.c.h.b16 %v746
        %v1007 = vunpack.c.l.b16 %v747
        %v1008 = vunpack.c.h.b16 %v747
        %v1009 = vunpack.c.l.b16 %v748
        %v1010 = vunpack.c.h.b16 %v748
        %v1011 = vunpack.c.l.b16 %v749
        %v1012 = vunpack.c.h.b16 %v749
        %v1013 = vunpack.c.l.b16 %v750
        %v1014 = vunpack.c.h.b16 %v750
        %v1015 = vunpack.c.l.b16 %v751
        %v1016 = vunpack.c.h.b16 %v751
        %v1017 = vunpack.c.l.b16 %v752
        %v1018 = vunpack.c.h.b16 %v752
        %v1019 = vunpack.c.l.b16 %v753
        %v1020 = vunpack.c.h.b16 %v753
        %v1021 = vunpack.c.l.b16 %v754
        %v1022 = vunpack.c.h.b16 %v754
        %v1023 = vunpack.c.l.b16 %v755
        %v1024 = vunpack.c.h.b16 %v755
        %v1025 = vunpack.c.l.b16 %v756
        %v1026 = vunpack.c.h.b16 %v756
        %v1027 = vunpack.c.l.b16 %v757
        %v1028 = vunpack.c.h.b16 %v757
        %v1029 = vunpack.c.l.b16 %v758
        %v1030 = vunpack.c.h.b16 %v758
        %v1031 = vunpack.c.l.b16 %v759
        %v1032 = vunpack.c.h.b16 %v759
        %v1033 = vunpack.c.l.b16 %v760
        %v1034 = vunpack.c.h.b16 %v760
        %v1035 = vunpack.c.l.b16 %v761
        %v1036 = vunpack.c.h.b16 %v761
        %v1037 = vunpack.c.l.b16 %v762
        %v1038 = vunpack.c.h.b16 %v762
        %v1039 = vunpack.c.l.b16 %v763
        %v1040 = vunpack.c.h.b16 %v763
        %v1041 = vunpack.c.l.b16 %v764
        %v1042 = vunpack.c.h.b16 %v764
        %v1043 = vunpack.c.l.b16 %v765
        %v1044 = vunpack.c.h.b16 %v765
        %v1045 = vunpack.c.l.b16 %v766
        %v1046 = vunpack.c.h.b16 %v766
        %v1047 = vunpack.c.l.b16 %v767
        %v1048 = vunpack.c.h.b16 %v767
        %v1049 = vunpack.c.l.b16 %v768
        %v1050 = vunpack.c.h.b16 %v768
        %v1051 = vunpack.c.l.b16 %v769
        %v1052 = vunpack.c.h.b16 %v769
        %v1053 = vunpack.c.l.b16 %v770
        %v1054 = vunpack.c.h.b16 %v770
        %v1055 = vunpack.c.l.b16 %v771
        %v1056 = vunpack.c.h.b16 %v771
        %v1057 = vunpack.c.l.b16 %v772
        %v1058 = vunpack.c.h.b16 %v772
        %v1059 = vunpack.c.l.b16 %v773
        %v1060 = vunpack.c.h.b16 %v773
        %v1061 = vunpack.c.l.b16 %v774
        %v1062 = vunpack.c.h.b16 %v774
        %v1063 = vpack.c.b16 %v877, %v871
        %v1064 = vpack.c.b16 %v878, %v872
        %v1065 = vpack.c.b16 %v879, %v873
        %v1066 = vpack.c.b16 %v880, %v874
        %v1067 = vpack.c.b16 %v881, %v875
        %v1068 = vpack.c.b16 %v882, %v876
        %v1069 = vpack.c.b16 %v889, %v883
        %v1070 = vpack.c.b16 %v890, %v884
        %v1071 = vpack.c.b16 %v891, %v885
        %v1072 = vpack.c.b16 %v892, %v886
        %v1073 = vpack.c.b16 %v893, %v887
        %v1074 = vpack.c.b16 %v894, %v888
        %v1075 = vpack.c.b16 %v901, %v895
        %v1076 = vpack.c.b16 %v902, %v896
        %v1077 = vpack.c.b16 %v903, %v897
        %v1078 = vpack.c.b16 %v904, %v898
        %v1079 = vpack.c.b16 %v905, %v899
        %v1080 = vpack.c.b16 %v906, %v900
        %v1081 = vpack.c.b16 %v913, %v907
        %v1082 = vpack.c.b16 %v914, %v908
        %v1083 = vpack.c.b16 %v915, %v909
        %v1084 = vpack.c.b16 %v916, %v910
        %v1085 = vpack.c.b16 %v917, %v911
        %v1086 = vpack.c.b16 %v918, %v912
        %v1087 = vpack.c.b16 %v925, %v919
        %v1088 = vpack.c.b16 %v926, %v920
        %v1089 = vpack.c.b16 %v927, %v921
        %v1090 = vpack.c.b16 %v928, %v922
        %v1091 = vpack.c.b16 %v929, %v923
        %v1092 = vpack.c.b16 %v930, %v924
        %v1093 = vpack.c.b16 %v937, %v931
        %v1094 = vpack.c.b16 %v938, %v932
        %v1095 = vpack.c.b16 %v939, %v933
        %v1096 = vpack.c.b16 %v940, %v934
        %v1097 = vpack.c.b16 %v941, %v935
        %v1098 = vpack.c.b16 %v942, %v936
        %v1099 = vpack.c.b16 %v949, %v943
        %v1100 = vpack.c.b16 %v950, %v944
        %v1101 = vpack.c.b16 %v951, %v945
        %v1102 = vpack.c.b16 %v952, %v946
        %v1103 = vpack.c.b16 %v953, %v947
        %v1104 = vpack.c.b16 %v954, %v948
        %v1105 = vpack.c.b16 %v961, %v955
        %v1106 = vpack.c.b16 %v962, %v956
        %v1107 = vpack.c.b16 %v963, %v957
        %v1108 = vpack.c.b16 %v964, %v958
        %v1109 = vpack.c.b16 %v965, %v959
        %v1110 = vpack.c.b16 %v966, %v960
        %v1111 = vpack.c.b16 %v973, %v967
        %v1112 = vpack.c.b16 %v974, %v968
        %v1113 = vpack.c.b16 %v975, %v969
        %v1114 = vpack.c.b16 %v976, %v970
        %v1115 = vpack.c.b16 %v977, %v971
        %v1116 = vpack.c.b16 %v978, %v972
        %v1117 = vpack.c.b16 %v985, %v979
        %v1118 = vpack.c.b16 %v986, %v980
        %v1119 = vpack.c.b16 %v987, %v981
        %v1120 = vpack.c.b16 %v988, %v982
        %v1121 = vpack.c.b16 %v989, %v983
        %v1122 = vpack.c.b16 %v990, %v984
        %v1123 = vpack.c.b16 %v997, %v991
        %v1124 = vpack.c.b16 %v998, %v992
        %v1125 = vpack.c.b16 %v999, %v993
        %v1126 = vpack.c.b16 %v1000, %v994
        %v1127 = vpack.c.b16 %v1001, %v995
        %v1128 = vpack.c.b16 %v1002, %v996
        %v1129 = vpack.c.b16 %v1009, %v1003
        %v1130 = vpack.c.b16 %v1010, %v1004
        %v1131 = vpack.c.b16 %v1011, %v1005
        %v1132 = vpack.c.b16 %v1012, %v1006
        %v1133 = vpack.c.b16 %v1013, %v1007
        %v1134 = vpack.c.b16 %v1014, %v1008
        %v1135 = vpack.c.b16 %v1021, %v1015
        %v1136 = vpack.c.b16 %v1022, %v1016
        %v1137 = vpack.c.b16 %v1023, %v1017
        %v1138 = vpack.c.b16 %v1024, %v1018
        %v1139 = vpack.c.b16 %v1025, %v1019
        %v1140 = vpack.c.b16 %v1026, %v1020
        %v1141 = vpack.c.b16 %v1033, %v1027
        %v1142 = vpack.c.b16 %v1034, %v1028
        %v1143 = vpack.c.b16 %v1035, %v1029
        %v1144 = vpack.c.b16 %v1036, %v1030
        %v1145 = vpack.c.b16 %v1037, %v1031
        %v1146 = vpack.c.b16 %v1038, %v1032
        %v1147 = vpack.c.b16 %v1045, %v1039
        %v1148 = vpack.c.b16 %v1046, %v1040
        %v1149 = vpack.c.b16 %v1047, %v1041
        %v1150 = vpack.c.b16 %v1048, %v1042
        %v1151 = vpack.c.b16 %v1049, %v1043
        %v1152 = vpack.c.b16 %v1050, %v1044
        %v1153 = vpack.c.b16 %v1057, %v1051
        %v1154 = vpack.c.b16 %v1058, %v1052
        %v1155 = vpack.c.b16 %v1059, %v1053
        %v1156 = vpack.c.b16 %v1060, %v1054
        %v1157 = vpack.c.b16 %v1061, %v1055
        %v1158 = vpack.c.b16 %v1062, %v1056
        %1255 = vmatprep.subr.bf16.mxu0 %v1106
        %1256 = vmatpush1.bf16.msra.mxu0 %v1105
        %1257 = vmatprep.subr.bf16.mxu0 %v1100
        %1258 = vmatpush1.bf16.msra.mxu0 %v1099
        %1259 = vmatprep.subr.bf16.mxu0 %v1094
        %1260 = vmatpush1.bf16.msra.mxu0 %v1093
        %1261 = vmatprep.subr.bf16.mxu0 %v1088
        %1262 = vmatpush1.bf16.msra.mxu0 %v1087
        %1263 = vmatprep.subr.bf16.mxu0 %v1082
        %1264 = vmatpush1.bf16.msra.mxu0 %v1081
        %1265 = vmatprep.subr.bf16.mxu0 %v1076
        %1266 = vmatpush1.bf16.msra.mxu0 %v1075
        %1267 = vmatprep.subr.bf16.mxu0 %v1070
        %1268 = vmatpush1.bf16.msra.mxu0 %v1069
        %1269 = vmatprep.subr.bf16.mxu0 %v1064
        %1270 = vmatpush1.bf16.msra.mxu0 %v1063
        %1271 = vmatprep.subr.bf16.mxu0 %v1154
        %1272 = vmatpush2.bf16.msra.mxu0 %v1153
        %1273 = vmatprep.subr.bf16.mxu0 %v1148
        %1274 = vmatpush2.bf16.msra.mxu0 %v1147
        %1275 = vmatprep.subr.bf16.mxu0 %v1142
        %1276 = vmatpush2.bf16.msra.mxu0 %v1141
        %1277 = vmatprep.subr.bf16.mxu0 %v1136
        %1278 = vmatpush2.bf16.msra.mxu0 %v1135
        %1279 = vmatprep.subr.bf16.mxu0 %v1130
        %1280 = vmatpush2.bf16.msra.mxu0 %v1129
        %1281 = vmatprep.subr.bf16.mxu0 %v1124
        %1282 = vmatpush2.bf16.msra.mxu0 %v1123
        %1283 = vmatprep.subr.bf16.mxu0 %v1118
        %1284 = vmatpush2.bf16.msra.mxu0 %v1117
        %1285 = vmatprep.subr.bf16.mxu0 %v1112
        %1286 = vmatpush2.bf16.msra.mxu0 %v1111
        %1287 = vmatprep.mubr.bf16.mxu0 %v678
        %1288 = vmatmul.mubr.bf16.gmra.mxu0 %v677
        %v1289 = vpop.f32.mrf.mxu0
        %v1290 = vadd.f32 0.0, %v1289
        %v1291 = vpop.f32.mrf.mxu0
        %v1292 = vadd.f32 0.0, %v1291
        %v1293 = vpop.f32.mrf.mxu0
        %v1294 = vadd.f32 0.0, %v1293
        %v1295 = vpop.f32.mrf.mxu0
        %v1296 = vadd.f32 0.0, %v1295
        %1297 = vdwg.mxu0
        %1298 = vmatprep.subr.bf16.mxu0 %v1108
        %1299 = vmatpush1.bf16.msra.mxu0 %v1107
        %1300 = vmatprep.subr.bf16.mxu0 %v1102
        %1301 = vmatpush1.bf16.msra.mxu0 %v1101
        %1302 = vmatprep.subr.bf16.mxu0 %v1096
        %1303 = vmatpush1.bf16.msra.mxu0 %v1095
        %1304 = vmatprep.subr.bf16.mxu0 %v1090
        %1305 = vmatpush1.bf16.msra.mxu0 %v1089
        %1306 = vmatprep.subr.bf16.mxu0 %v1084
        %1307 = vmatpush1.bf16.msra.mxu0 %v1083
        %1308 = vmatprep.subr.bf16.mxu0 %v1078
        %1309 = vmatpush1.bf16.msra.mxu0 %v1077
        %1310 = vmatprep.subr.bf16.mxu0 %v1072
        %1311 = vmatpush1.bf16.msra.mxu0 %v1071
        %1312 = vmatprep.subr.bf16.mxu0 %v1066
        %1313 = vmatpush1.bf16.msra.mxu0 %v1065
        %1314 = vmatprep.subr.bf16.mxu0 %v1156
        %1315 = vmatpush2.bf16.msra.mxu0 %v1155
        %1316 = vmatprep.subr.bf16.mxu0 %v1150
        %1317 = vmatpush2.bf16.msra.mxu0 %v1149
        %1318 = vmatprep.subr.bf16.mxu0 %v1144
        %1319 = vmatpush2.bf16.msra.mxu0 %v1143
        %1320 = vmatprep.subr.bf16.mxu0 %v1138
        %1321 = vmatpush2.bf16.msra.mxu0 %v1137
        %1322 = vmatprep.subr.bf16.mxu0 %v1132
        %1323 = vmatpush2.bf16.msra.mxu0 %v1131
        %1324 = vmatprep.subr.bf16.mxu0 %v1126
        %1325 = vmatpush2.bf16.msra.mxu0 %v1125
        %1326 = vmatprep.subr.bf16.mxu0 %v1120
        %1327 = vmatpush2.bf16.msra.mxu0 %v1119
        %1328 = vmatprep.subr.bf16.mxu0 %v1114
        %1329 = vmatpush2.bf16.msra.mxu0 %v1113
        %1330 = vmatprep.mubr.bf16.mxu0 %v678
        %1331 = vmatmul.mubr.bf16.gmra.mxu0 %v677
        %v1332 = vpop.f32.mrf.mxu0
        %v1333 = vadd.f32 0.0, %v1332
        %v1334 = vpop.f32.mrf.mxu0
        %v1335 = vadd.f32 0.0, %v1334
        %v1336 = vpop.f32.mrf.mxu0
        %v1337 = vadd.f32 0.0, %v1336
        %v1338 = vpop.f32.mrf.mxu0
        %v1339 = vadd.f32 0.0, %v1338
        %1340 = vdwg.mxu0
        %1341 = vmatprep.subr.bf16.mxu0 %v1110
        %1342 = vmatpush1.bf16.msra.mxu0 %v1109
        %1343 = vmatprep.subr.bf16.mxu0 %v1104
        %1344 = vmatpush1.bf16.msra.mxu0 %v1103
        %1345 = vmatprep.subr.bf16.mxu0 %v1098
        %1346 = vmatpush1.bf16.msra.mxu0 %v1097
        %1347 = vmatprep.subr.bf16.mxu0 %v1092
        %1348 = vmatpush1.bf16.msra.mxu0 %v1091
        %1349 = vmatprep.subr.bf16.mxu0 %v1086
        %1350 = vmatpush1.bf16.msra.mxu0 %v1085
        %1351 = vmatprep.subr.bf16.mxu0 %v1080
        %1352 = vmatpush1.bf16.msra.mxu0 %v1079
        %1353 = vmatprep.subr.bf16.mxu0 %v1074
        %1354 = vmatpush1.bf16.msra.mxu0 %v1073
        %1355 = vmatprep.subr.bf16.mxu0 %v1068
        %1356 = vmatpush1.bf16.msra.mxu0 %v1067
        %1357 = vmatprep.subr.bf16.mxu0 %v1158
        %1358 = vmatpush2.bf16.msra.mxu0 %v1157
        %1359 = vmatprep.subr.bf16.mxu0 %v1152
        %1360 = vmatpush2.bf16.msra.mxu0 %v1151
        %1361 = vmatprep.subr.bf16.mxu0 %v1146
        %1362 = vmatpush2.bf16.msra.mxu0 %v1145
        %1363 = vmatprep.subr.bf16.mxu0 %v1140
        %1364 = vmatpush2.bf16.msra.mxu0 %v1139
        %1365 = vmatprep.subr.bf16.mxu0 %v1134
        %1366 = vmatpush2.bf16.msra.mxu0 %v1133
        %1367 = vmatprep.subr.bf16.mxu0 %v1128
        %1368 = vmatpush2.bf16.msra.mxu0 %v1127
        %1369 = vmatprep.subr.bf16.mxu0 %v1122
        %1370 = vmatpush2.bf16.msra.mxu0 %v1121
        %1371 = vmatprep.subr.bf16.mxu0 %v1116
        %1372 = vmatpush2.bf16.msra.mxu0 %v1115
        %1373 = vmatprep.mubr.bf16.mxu0 %v678
        %1374 = vmatmul.mubr.bf16.gmra.mxu0 %v677
        %v1375 = vpop.f32.mrf.mxu0
        %v1376 = vadd.f32 0.0, %v1375
        %v1377 = vpop.f32.mrf.mxu0
        %v1378 = vadd.f32 0.0, %v1377
        %v1379 = vpop.f32.mrf.mxu0
        %v1380 = vadd.f32 0.0, %v1379
        %v1381 = vpop.f32.mrf.mxu0
        %v1382 = vadd.f32 0.0, %v1381
        %1383 = vdwg.mxu0
        %v1384 = vmul.f32 %v1290, 0.088388346
        %v1385 = vmul.f32 %v1292, 0.088388346
        %v1386 = vmul.f32 %v1294, 0.088388346
        %v1387 = vmul.f32 %v1296, 0.088388346
        %v1388 = vlaneseq
        %v1389 = vshrl.u32 %v1388, 7
        %v1390 = vadd.s32 %v1389, 8
        %v1391 = vlaneseq
        %v1392 = vand.u32 %v1391, 127
        %vm1393 = vcmp.le.s32.totalorder %v1392, %v1389
        %vm1394 = vcmp.le.s32.totalorder %v1392, %v1390
        %v1395 = vsub.f32 0.0, %v1384
        %v1396 = vsub.f32 0.0, %v1386
        %1399 = vrot.lane.b32.xlu0 %v1395, 64
        %v1400 = vpop.permute.xlu0 %1399
        %1401 = vrot.lane.b32.xlu0 %v1396, 64
        %v1402 = vpop.permute.xlu0 %1401
        %1407 = vrot.lane.b32.xlu0 %v1384, 64
        %v1408 = vpop.permute.xlu0 %1407
        %1409 = vrot.lane.b32.xlu0 %v1386, 64
        %v1410 = vpop.permute.xlu0 %1409
        %vm1413 = vcmask 523264
        %v1414 = vsel %vm1413, %v1400, %v1408
        %v1415 = vsel %vm1413, %v1402, %v1410
        %v1416 = vmul.f32 %v1384, %v636
        %v1417 = vmul.f32 %v1386, %v637
        %v1418 = vmul.f32 %v1414, %v638
        %v1419 = vmul.f32 %v1415, %v639
        %v1420 = vadd.f32 %v1416, %v1418
        %v1421 = vadd.f32 %v1417, %v1419
        %v1422 = vsub.f32 0.0, %v1333
        %v1423 = vsub.f32 0.0, %v1337
        %1426 = vrot.lane.b32.xlu0 %v1422, 64
        %v1427 = vpop.permute.xlu0 %1426
        %1428 = vrot.lane.b32.xlu0 %v1423, 64
        %v1429 = vpop.permute.xlu0 %1428
        %1434 = vrot.lane.b32.xlu0 %v1333, 64
        %v1435 = vpop.permute.xlu0 %1434
        %1436 = vrot.lane.b32.xlu0 %v1337, 64
        %v1437 = vpop.permute.xlu0 %1436
        %v1440 = vsel %vm1413, %v1427, %v1435
        %v1441 = vsel %vm1413, %v1429, %v1437
        %v1442 = vmul.f32 %v1333, %v636
        %v1443 = vmul.f32 %v1337, %v637
        %v1444 = vmul.f32 %v1440, %v638
        %v1445 = vmul.f32 %v1441, %v639
        %v1446 = vadd.f32 %v1442, %v1444
        %v1447 = vadd.f32 %v1443, %v1445
        %v1448 = vpack.c.bf16 %v1421, %v1420
        %v1449 = vpack.c.bf16 %v1447, %v1446
        %1450 = vmatprep.subr.bf16.mxu0 0
        %1451 = vmatpush1.bf16.xpose.msra.mxu0 0
        %1452 = vmatprep.subr.bf16.mxu0 0
        %1453 = vmatpush1.bf16.xpose.msra.mxu0 0
        %1454 = vmatprep.subr.bf16.mxu0 0
        %1455 = vmatpush1.bf16.xpose.msra.mxu0 0
        %1456 = vmatprep.subr.bf16.mxu0 0
        %1457 = vmatpush1.bf16.xpose.msra.mxu0 0
        %1458 = vmatprep.subr.bf16.mxu0 0
        %1459 = vmatpush1.bf16.xpose.msra.mxu0 0
        %1460 = vmatprep.subr.bf16.mxu0 0
        %1461 = vmatpush1.bf16.xpose.msra.mxu0 0
        %1462 = vmatprep.subr.bf16.mxu0 0
        %1463 = vmatpush1.bf16.xpose.msra.mxu0 0
        %1464 = vmatprep.subr.bf16.mxu0 0
        %1465 = vmatpush1.bf16.xpose.msra.mxu0 %v1449
        %1466 = vmatprep.subr.bf16.mxu0 0
        %1467 = vmatpush2.bf16.xpose.msra.mxu0 0
        %1468 = vmatprep.subr.bf16.mxu0 0
        %1469 = vmatpush2.bf16.xpose.msra.mxu0 0
        %1470 = vmatprep.subr.bf16.mxu0 0
        %1471 = vmatpush2.bf16.xpose.msra.mxu0 0
        %1472 = vmatprep.subr.bf16.mxu0 0
        %1473 = vmatpush2.bf16.xpose.msra.mxu0 0
        %1474 = vmatprep.subr.bf16.mxu0 0
        %1475 = vmatpush2.bf16.xpose.msra.mxu0 0
        %1476 = vmatprep.subr.bf16.mxu0 0
        %1477 = vmatpush2.bf16.xpose.msra.mxu0 0
        %1478 = vmatprep.subr.bf16.mxu0 0
        %1479 = vmatpush2.bf16.xpose.msra.mxu0 0
        %1480 = vmatprep.subr.bf16.mxu0 0
        %1481 = vmatpush2.bf16.xpose.msra.mxu0 0
        %1482 = vmatprep.mubr.bf16.mxu0 0
        %1483 = vmatmul.mubr.bf16.gmra.mxu0 %v1448
        %v1484 = vpop.f32.mrf.mxu0
        %v1485 = vadd.f32 0.0, %v1484
        %v1486 = vpop.f32.mrf.mxu0
        %v1487 = vpop.f32.mrf.mxu0
        %v1488 = vadd.f32 0.0, %v1487
        %v1489 = vpop.f32.mrf.mxu0
        %1490 = vdwg.mxu0
        %v1491 = vsel %vm1393, %v1485, -1e+30
        %v1492 = vsel %vm1394, %v1488, -1e+30
        %vm1493 = vcmask 130048
        %v1494 = vsel %vm1493, %v1491, -inf
        %1495 = vmax.xlane.f32.xlu0 %v1494
        %v1496 = vpop.xlane.xlu0 %1495
        %v1497 = vsel %vm1493, %v1492, -inf
        %1498 = vmax.xlane.f32.xlu0 %v1497
        %v1499 = vpop.xlane.xlu0 %1498
        %v1500 = vsub.f32 %v1491, %v1496
        %v1501 = vsub.f32 %v1492, %v1499
        %v1502 = vmul.f32 %v1500, 1.442695
        %v1503 = vpow.pop %v1502
        %v1504 = vmul.f32 %v1501, 1.442695
        %v1505 = vpow.pop %v1504
        %v1506 = vsel %vm1493, %v1503, 0.0
        %1507 = vadd.xlane.f32.xlu0 %v1506
        %v1508 = vpop.xlane.xlu0 %1507
        %v1509 = vsel %vm1493, %v1505, 0.0
        %1510 = vadd.xlane.f32.xlu0 %v1509
        %v1511 = vpop.xlane.xlu0 %1510
        %v1512 = vrcp.pop %v1508
        %v1513 = vmul.f32 %v1503, %v1512
        %v1514 = vrcp.pop %v1511
        %v1515 = vmul.f32 %v1505, %v1514
        %v1516 = vpack.c.bf16 %v1515, %v1513
        %v1517 = vpack.c.bf16 %v1380, %v1376
        %v1519 = vsel %vm1493, %v1516, 0
        %1521 = vmatprep.subr.bf16.mxu0 0
        %1522 = vmatpush1.bf16.msra.mxu0 0
        %1523 = vmatprep.subr.bf16.mxu0 0
        %1524 = vmatpush1.bf16.msra.mxu0 0
        %1525 = vmatprep.subr.bf16.mxu0 0
        %1526 = vmatpush1.bf16.msra.mxu0 0
        %1527 = vmatprep.subr.bf16.mxu0 0
        %1528 = vmatpush1.bf16.msra.mxu0 0
        %1529 = vmatprep.subr.bf16.mxu0 0
        %1530 = vmatpush1.bf16.msra.mxu0 0
        %1531 = vmatprep.subr.bf16.mxu0 0
        %1532 = vmatpush1.bf16.msra.mxu0 0
        %1533 = vmatprep.subr.bf16.mxu0 0
        %1534 = vmatpush1.bf16.msra.mxu0 0
        %1535 = vmatprep.subr.bf16.mxu0 0
        %1536 = vmatpush1.bf16.msra.mxu0 %v1517
        %1537 = vmatprep.subr.bf16.mxu0 0
        %1538 = vmatpush2.bf16.msra.mxu0 0
        %1539 = vmatprep.subr.bf16.mxu0 0
        %1540 = vmatpush2.bf16.msra.mxu0 0
        %1541 = vmatprep.subr.bf16.mxu0 0
        %1542 = vmatpush2.bf16.msra.mxu0 0
        %1543 = vmatprep.subr.bf16.mxu0 0
        %1544 = vmatpush2.bf16.msra.mxu0 0
        %1545 = vmatprep.subr.bf16.mxu0 0
        %1546 = vmatpush2.bf16.msra.mxu0 0
        %1547 = vmatprep.subr.bf16.mxu0 0
        %1548 = vmatpush2.bf16.msra.mxu0 0
        %1549 = vmatprep.subr.bf16.mxu0 0
        %1550 = vmatpush2.bf16.msra.mxu0 0
        %1551 = vmatprep.subr.bf16.mxu0 0
        %1552 = vmatpush2.bf16.msra.mxu0 0
        %1553 = vmatprep.mubr.bf16.mxu0 0
        %1554 = vmatmul.mubr.bf16.gmra.mxu0 %v1519
        %v1555 = vpop.f32.mrf.mxu0
        %v1556 = vadd.f32 0.0, %v1555
        %v1557 = vpop.f32.mrf.mxu0
        %v1558 = vpop.f32.mrf.mxu0
        %v1559 = vadd.f32 0.0, %v1558
        %v1560 = vpop.f32.mrf.mxu0
        %1561 = vdwg.mxu0
        %v1562 = vsub.f32 0.0, %v1385
        %v1563 = vsub.f32 0.0, %v1387
        %1566 = vrot.lane.b32.xlu0 %v1562, 64
        %v1567 = vpop.permute.xlu0 %1566
        %1568 = vrot.lane.b32.xlu0 %v1563, 64
        %v1569 = vpop.permute.xlu0 %1568
        %1574 = vrot.lane.b32.xlu0 %v1385, 64
        %v1575 = vpop.permute.xlu0 %1574
        %1576 = vrot.lane.b32.xlu0 %v1387, 64
        %v1577 = vpop.permute.xlu0 %1576
        %v1580 = vsel %vm1413, %v1567, %v1575
        %v1581 = vsel %vm1413, %v1569, %v1577
        %v1582 = vmul.f32 %v1385, %v636
        %v1583 = vmul.f32 %v1387, %v637
        %v1584 = vmul.f32 %v1580, %v638
        %v1585 = vmul.f32 %v1581, %v639
        %v1586 = vadd.f32 %v1582, %v1584
        %v1587 = vadd.f32 %v1583, %v1585
        %v1588 = vsub.f32 0.0, %v1335
        %v1589 = vsub.f32 0.0, %v1339
        %1592 = vrot.lane.b32.xlu0 %v1588, 64
        %v1593 = vpop.permute.xlu0 %1592
        %1594 = vrot.lane.b32.xlu0 %v1589, 64
        %v1595 = vpop.permute.xlu0 %1594
        %1600 = vrot.lane.b32.xlu0 %v1335, 64
        %v1601 = vpop.permute.xlu0 %1600
        %1602 = vrot.lane.b32.xlu0 %v1339, 64
        %v1603 = vpop.permute.xlu0 %1602
        %v1606 = vsel %vm1413, %v1593, %v1601
        %v1607 = vsel %vm1413, %v1595, %v1603
        %v1608 = vmul.f32 %v1335, %v636
        %v1609 = vmul.f32 %v1339, %v637
        %v1610 = vmul.f32 %v1606, %v638
        %v1611 = vmul.f32 %v1607, %v639
        %v1612 = vadd.f32 %v1608, %v1610
        %v1613 = vadd.f32 %v1609, %v1611
        %v1614 = vpack.c.bf16 %v1587, %v1586
        %v1615 = vpack.c.bf16 %v1613, %v1612
        %1616 = vmatprep.subr.bf16.mxu0 0
        %1617 = vmatpush1.bf16.xpose.msra.mxu0 0
        %1618 = vmatprep.subr.bf16.mxu0 0
        %1619 = vmatpush1.bf16.xpose.msra.mxu0 0
        %1620 = vmatprep.subr.bf16.mxu0 0
        %1621 = vmatpush1.bf16.xpose.msra.mxu0 0
        %1622 = vmatprep.subr.bf16.mxu0 0
        %1623 = vmatpush1.bf16.xpose.msra.mxu0 0
        %1624 = vmatprep.subr.bf16.mxu0 0
        %1625 = vmatpush1.bf16.xpose.msra.mxu0 0
        %1626 = vmatprep.subr.bf16.mxu0 0
        %1627 = vmatpush1.bf16.xpose.msra.mxu0 0
        %1628 = vmatprep.subr.bf16.mxu0 0
        %1629 = vmatpush1.bf16.xpose.msra.mxu0 0
        %1630 = vmatprep.subr.bf16.mxu0 0
        %1631 = vmatpush1.bf16.xpose.msra.mxu0 %v1615
        %1632 = vmatprep.subr.bf16.mxu0 0
        %1633 = vmatpush2.bf16.xpose.msra.mxu0 0
        %1634 = vmatprep.subr.bf16.mxu0 0
        %1635 = vmatpush2.bf16.xpose.msra.mxu0 0
        %1636 = vmatprep.subr.bf16.mxu0 0
        %1637 = vmatpush2.bf16.xpose.msra.mxu0 0
        %1638 = vmatprep.subr.bf16.mxu0 0
        %1639 = vmatpush2.bf16.xpose.msra.mxu0 0
        %1640 = vmatprep.subr.bf16.mxu0 0
        %1641 = vmatpush2.bf16.xpose.msra.mxu0 0
        %1642 = vmatprep.subr.bf16.mxu0 0
        %1643 = vmatpush2.bf16.xpose.msra.mxu0 0
        %1644 = vmatprep.subr.bf16.mxu0 0
        %1645 = vmatpush2.bf16.xpose.msra.mxu0 0
        %1646 = vmatprep.subr.bf16.mxu0 0
        %1647 = vmatpush2.bf16.xpose.msra.mxu0 0
        %1648 = vmatprep.mubr.bf16.mxu0 0
        %1649 = vmatmul.mubr.bf16.gmra.mxu0 %v1614
        %v1650 = vpop.f32.mrf.mxu0
        %v1651 = vadd.f32 0.0, %v1650
        %v1652 = vpop.f32.mrf.mxu0
        %v1653 = vpop.f32.mrf.mxu0
        %v1654 = vadd.f32 0.0, %v1653
        %v1655 = vpop.f32.mrf.mxu0
        %1656 = vdwg.mxu0
        %v1657 = vsel %vm1393, %v1651, -1e+30
        %v1658 = vsel %vm1394, %v1654, -1e+30
        %v1659 = vsel %vm1493, %v1657, -inf
        %1660 = vmax.xlane.f32.xlu0 %v1659
        %v1661 = vpop.xlane.xlu0 %1660
        %v1662 = vsel %vm1493, %v1658, -inf
        %1663 = vmax.xlane.f32.xlu0 %v1662
        %v1664 = vpop.xlane.xlu0 %1663
        %v1665 = vsub.f32 %v1657, %v1661
        %v1666 = vsub.f32 %v1658, %v1664
        %v1667 = vmul.f32 %v1665, 1.442695
        %v1668 = vpow.pop %v1667
        %v1669 = vmul.f32 %v1666, 1.442695
        %v1670 = vpow.pop %v1669
        %v1671 = vsel %vm1493, %v1668, 0.0
        %1672 = vadd.xlane.f32.xlu0 %v1671
        %v1673 = vpop.xlane.xlu0 %1672
        %v1674 = vsel %vm1493, %v1670, 0.0
        %1675 = vadd.xlane.f32.xlu0 %v1674
        %v1676 = vpop.xlane.xlu0 %1675
        %v1677 = vrcp.pop %v1673
        %v1678 = vmul.f32 %v1668, %v1677
        %v1679 = vrcp.pop %v1676
        %v1680 = vmul.f32 %v1670, %v1679
        %v1681 = vpack.c.bf16 %v1680, %v1678
        %v1682 = vpack.c.bf16 %v1382, %v1378
        %v1684 = vsel %vm1493, %v1681, 0
        %1686 = vmatprep.subr.bf16.mxu0 0
        %1687 = vmatpush1.bf16.msra.mxu0 0
        %1688 = vmatprep.subr.bf16.mxu0 0
        %1689 = vmatpush1.bf16.msra.mxu0 0
        %1690 = vmatprep.subr.bf16.mxu0 0
        %1691 = vmatpush1.bf16.msra.mxu0 0
        %1692 = vmatprep.subr.bf16.mxu0 0
        %1693 = vmatpush1.bf16.msra.mxu0 0
        %1694 = vmatprep.subr.bf16.mxu0 0
        %1695 = vmatpush1.bf16.msra.mxu0 0
        %1696 = vmatprep.subr.bf16.mxu0 0
        %1697 = vmatpush1.bf16.msra.mxu0 0
        %1698 = vmatprep.subr.bf16.mxu0 0
        %1699 = vmatpush1.bf16.msra.mxu0 0
        %1700 = vmatprep.subr.bf16.mxu0 0
        %1701 = vmatpush1.bf16.msra.mxu0 %v1682
        %1702 = vmatprep.subr.bf16.mxu0 0
        %1703 = vmatpush2.bf16.msra.mxu0 0
        %1704 = vmatprep.subr.bf16.mxu0 0
        %1705 = vmatpush2.bf16.msra.mxu0 0
        %1706 = vmatprep.subr.bf16.mxu0 0
        %1707 = vmatpush2.bf16.msra.mxu0 0
        %1708 = vmatprep.subr.bf16.mxu0 0
        %1709 = vmatpush2.bf16.msra.mxu0 0
        %1710 = vmatprep.subr.bf16.mxu0 0
        %1711 = vmatpush2.bf16.msra.mxu0 0
        %1712 = vmatprep.subr.bf16.mxu0 0
        %1713 = vmatpush2.bf16.msra.mxu0 0
        %1714 = vmatprep.subr.bf16.mxu0 0
        %1715 = vmatpush2.bf16.msra.mxu0 0
        %1716 = vmatprep.subr.bf16.mxu0 0
        %1717 = vmatpush2.bf16.msra.mxu0 0
        %1718 = vmatprep.mubr.bf16.mxu0 0
        %1719 = vmatmul.mubr.bf16.gmra.mxu0 %v1684
        %v1720 = vpop.f32.mrf.mxu0
        %v1721 = vadd.f32 0.0, %v1720
        %v1722 = vpop.f32.mrf.mxu0
        %v1723 = vpop.f32.mrf.mxu0
        %v1724 = vadd.f32 0.0, %v1723
        %v1725 = vpop.f32.mrf.mxu0
        %1726 = vdwg.mxu0
        %v1727 = vpack.c.bf16 %v1559, %v1556
        %v1728 = vpack.c.bf16 %v1724, %v1721
        %v1729 = vld [vmem:[%s527] sm:$0xff]
        %v1730 = vld [vmem:[%s527 + $0x8] sm:$0xff]
        %v1731 = vld [vmem:[%s527 + $0x10] sm:$0xff]
        %v1732 = vld [vmem:[%s527 + $0x18] sm:$0xff]
        %v1733 = vld [vmem:[%s527 + $0x20] sm:$0xff]
        %v1734 = vld [vmem:[%s527 + $0x28] sm:$0xff]
        %v1735 = vld [vmem:[%s527 + $0x30] sm:$0xff]
        %v1736 = vld [vmem:[%s527 + $0x38] sm:$0xff]
        %v1737 = vld [vmem:[%s527 + $0x40] sm:$0xff]
        %v1738 = vld [vmem:[%s527 + $0x48] sm:$0xff]
        %v1739 = vld [vmem:[%s527 + $0x50] sm:$0xff]
        %v1740 = vld [vmem:[%s527 + $0x58] sm:$0xff]
        %v1741 = vld [vmem:[%s527 + $0x60] sm:$0xff]
        %v1742 = vld [vmem:[%s527 + $0x68] sm:$0xff]
        %v1743 = vld [vmem:[%s527 + $0x70] sm:$0xff]
        %v1744 = vld [vmem:[%s527 + $0x78] sm:$0xff]
        %v1745 = vld [vmem:[%s527 + $0x80] sm:$0xff]
        %v1746 = vld [vmem:[%s527 + $0x88] sm:$0xff]
        %v1747 = vld [vmem:[%s527 + $0x90] sm:$0xff]
        %v1748 = vld [vmem:[%s527 + $0x98] sm:$0xff]
        %v1749 = vld [vmem:[%s527 + $0xa0] sm:$0xff]
        %v1750 = vld [vmem:[%s527 + $0xa8] sm:$0xff]
        %v1751 = vld [vmem:[%s527 + $0xb0] sm:$0xff]
        %v1752 = vld [vmem:[%s527 + $0xb8] sm:$0xff]
        %v1753 = vld [vmem:[%s527 + $0xc0] sm:$0xff]
        %v1754 = vld [vmem:[%s527 + $0xc8] sm:$0xff]
        %v1755 = vld [vmem:[%s527 + $0xd0] sm:$0xff]
        %v1756 = vld [vmem:[%s527 + $0xd8] sm:$0xff]
        %v1757 = vld [vmem:[%s527 + $0xe0] sm:$0xff]
        %v1758 = vld [vmem:[%s527 + $0xe8] sm:$0xff]
        %v1759 = vld [vmem:[%s527 + $0xf0] sm:$0xff]
        %v1760 = vld [vmem:[%s527 + $0xf8] sm:$0xff]
        %v1793 = vunpack.c.l.b16 %v1729
        %v1794 = vunpack.c.h.b16 %v1729
        %v1795 = vunpack.c.l.b16 %v1730
        %v1796 = vunpack.c.h.b16 %v1730
        %v1797 = vunpack.c.l.b16 %v1731
        %v1798 = vunpack.c.h.b16 %v1731
        %v1799 = vunpack.c.l.b16 %v1732
        %v1800 = vunpack.c.h.b16 %v1732
        %v1801 = vunpack.c.l.b16 %v1733
        %v1802 = vunpack.c.h.b16 %v1733
        %v1803 = vunpack.c.l.b16 %v1734
        %v1804 = vunpack.c.h.b16 %v1734
        %v1805 = vunpack.c.l.b16 %v1735
        %v1806 = vunpack.c.h.b16 %v1735
        %v1807 = vunpack.c.l.b16 %v1736
        %v1808 = vunpack.c.h.b16 %v1736
        %v1809 = vunpack.c.l.b16 %v1737
        %v1810 = vunpack.c.h.b16 %v1737
        %v1811 = vunpack.c.l.b16 %v1738
        %v1812 = vunpack.c.h.b16 %v1738
        %v1813 = vunpack.c.l.b16 %v1739
        %v1814 = vunpack.c.h.b16 %v1739
        %v1815 = vunpack.c.l.b16 %v1740
        %v1816 = vunpack.c.h.b16 %v1740
        %v1817 = vunpack.c.l.b16 %v1741
        %v1818 = vunpack.c.h.b16 %v1741
        %v1819 = vunpack.c.l.b16 %v1742
        %v1820 = vunpack.c.h.b16 %v1742
        %v1821 = vunpack.c.l.b16 %v1743
        %v1822 = vunpack.c.h.b16 %v1743
        %v1823 = vunpack.c.l.b16 %v1744
        %v1824 = vunpack.c.h.b16 %v1744
        %v1825 = vunpack.c.l.b16 %v1745
        %v1826 = vunpack.c.h.b16 %v1745
        %v1827 = vunpack.c.l.b16 %v1746
        %v1828 = vunpack.c.h.b16 %v1746
        %v1829 = vunpack.c.l.b16 %v1747
        %v1830 = vunpack.c.h.b16 %v1747
        %v1831 = vunpack.c.l.b16 %v1748
        %v1832 = vunpack.c.h.b16 %v1748
        %v1833 = vunpack.c.l.b16 %v1749
        %v1834 = vunpack.c.h.b16 %v1749
        %v1835 = vunpack.c.l.b16 %v1750
        %v1836 = vunpack.c.h.b16 %v1750
        %v1837 = vunpack.c.l.b16 %v1751
        %v1838 = vunpack.c.h.b16 %v1751
        %v1839 = vunpack.c.l.b16 %v1752
        %v1840 = vunpack.c.h.b16 %v1752
        %v1841 = vunpack.c.l.b16 %v1753
        %v1842 = vunpack.c.h.b16 %v1753
        %v1843 = vunpack.c.l.b16 %v1754
        %v1844 = vunpack.c.h.b16 %v1754
        %v1845 = vunpack.c.l.b16 %v1755
        %v1846 = vunpack.c.h.b16 %v1755
        %v1847 = vunpack.c.l.b16 %v1756
        %v1848 = vunpack.c.h.b16 %v1756
        %v1849 = vunpack.c.l.b16 %v1757
        %v1850 = vunpack.c.h.b16 %v1757
        %v1851 = vunpack.c.l.b16 %v1758
        %v1852 = vunpack.c.h.b16 %v1758
        %v1853 = vunpack.c.l.b16 %v1759
        %v1854 = vunpack.c.h.b16 %v1759
        %v1855 = vunpack.c.l.b16 %v1760
        %v1856 = vunpack.c.h.b16 %v1760
        %v1857 = vpack.c.b16 %v1795, %v1793
        %v1858 = vpack.c.b16 %v1796, %v1794
        %v1859 = vpack.c.b16 %v1799, %v1797
        %v1860 = vpack.c.b16 %v1800, %v1798
        %v1861 = vpack.c.b16 %v1803, %v1801
        %v1862 = vpack.c.b16 %v1804, %v1802
        %v1863 = vpack.c.b16 %v1807, %v1805
        %v1864 = vpack.c.b16 %v1808, %v1806
        %v1865 = vpack.c.b16 %v1811, %v1809
        %v1866 = vpack.c.b16 %v1812, %v1810
        %v1867 = vpack.c.b16 %v1815, %v1813
        %v1868 = vpack.c.b16 %v1816, %v1814
        %v1869 = vpack.c.b16 %v1819, %v1817
        %v1870 = vpack.c.b16 %v1820, %v1818
        %v1871 = vpack.c.b16 %v1823, %v1821
        %v1872 = vpack.c.b16 %v1824, %v1822
        %v1873 = vpack.c.b16 %v1827, %v1825
        %v1874 = vpack.c.b16 %v1828, %v1826
        %v1875 = vpack.c.b16 %v1831, %v1829
        %v1876 = vpack.c.b16 %v1832, %v1830
        %v1877 = vpack.c.b16 %v1835, %v1833
        %v1878 = vpack.c.b16 %v1836, %v1834
        %v1879 = vpack.c.b16 %v1839, %v1837
        %v1880 = vpack.c.b16 %v1840, %v1838
        %v1881 = vpack.c.b16 %v1843, %v1841
        %v1882 = vpack.c.b16 %v1844, %v1842
        %v1883 = vpack.c.b16 %v1847, %v1845
        %v1884 = vpack.c.b16 %v1848, %v1846
        %v1885 = vpack.c.b16 %v1851, %v1849
        %v1886 = vpack.c.b16 %v1852, %v1850
        %v1887 = vpack.c.b16 %v1855, %v1853
        %v1888 = vpack.c.b16 %v1856, %v1854
        %1921 = vmatprep.subr.bf16.mxu0 %v1872
        %1922 = vmatpush1.bf16.msra.mxu0 %v1871
        %1923 = vmatprep.subr.bf16.mxu0 %v1870
        %1924 = vmatpush1.bf16.msra.mxu0 %v1869
        %1925 = vmatprep.subr.bf16.mxu0 %v1868
        %1926 = vmatpush1.bf16.msra.mxu0 %v1867
        %1927 = vmatprep.subr.bf16.mxu0 %v1866
        %1928 = vmatpush1.bf16.msra.mxu0 %v1865
        %1929 = vmatprep.subr.bf16.mxu0 %v1864
        %1930 = vmatpush1.bf16.msra.mxu0 %v1863
        %1931 = vmatprep.subr.bf16.mxu0 %v1862
        %1932 = vmatpush1.bf16.msra.mxu0 %v1861
        %1933 = vmatprep.subr.bf16.mxu0 %v1860
        %1934 = vmatpush1.bf16.msra.mxu0 %v1859
        %1935 = vmatprep.subr.bf16.mxu0 %v1858
        %1936 = vmatpush1.bf16.msra.mxu0 %v1857
        %1937 = vmatprep.subr.bf16.mxu0 %v1888
        %1938 = vmatpush2.bf16.msra.mxu0 %v1887
        %1939 = vmatprep.subr.bf16.mxu0 %v1886
        %1940 = vmatpush2.bf16.msra.mxu0 %v1885
        %1941 = vmatprep.subr.bf16.mxu0 %v1884
        %1942 = vmatpush2.bf16.msra.mxu0 %v1883
        %1943 = vmatprep.subr.bf16.mxu0 %v1882
        %1944 = vmatpush2.bf16.msra.mxu0 %v1881
        %1945 = vmatprep.subr.bf16.mxu0 %v1880
        %1946 = vmatpush2.bf16.msra.mxu0 %v1879
        %1947 = vmatprep.subr.bf16.mxu0 %v1878
        %1948 = vmatpush2.bf16.msra.mxu0 %v1877
        %1949 = vmatprep.subr.bf16.mxu0 %v1876
        %1950 = vmatpush2.bf16.msra.mxu0 %v1875
        %1951 = vmatprep.subr.bf16.mxu0 %v1874
        %1952 = vmatpush2.bf16.msra.mxu0 %v1873
        %1953 = vmatprep.mubr.bf16.mxu0 %v1728
        %1954 = vmatmul.mubr.bf16.gmra.mxu0 %v1727
        %v1955 = vpop.f32.mrf.mxu0
        %v1956 = vadd.f32 0.0, %v1955
        %v1957 = vpop.f32.mrf.mxu0
        %v1958 = vadd.f32 0.0, %v1957
        %v1959 = vpop.f32.mrf.mxu0
        %v1960 = vadd.f32 0.0, %v1959
        %v1961 = vpop.f32.mrf.mxu0
        %v1962 = vadd.f32 0.0, %v1961
        %1963 = vdwg.mxu0
        %v1964 = vadd.f32 %v632, %v1956
        %v1965 = vadd.f32 %v633, %v1958
        %v1966 = vadd.f32 %v634, %v1960
        %v1967 = vadd.f32 %v635, %v1962
        %v1968 = vld [vmem:[%s536] sm:$0x3]
        %v1969 = vmul.f32 %v1964, %v1964
        %v1970 = vmul.f32 %v1965, %v1965
        %v1971 = vmul.f32 %v1966, %v1966
        %v1972 = vmul.f32 %v1967, %v1967
        %v1973 = vadd.f32 %v1969, %v1970
        %1974 = vadd.xlane.f32.xlu0 %v1973
        %v1975 = vpop.xlane.xlu0 %1974
        %v1976 = vadd.f32 %v1971, %v1972
        %1977 = vadd.xlane.f32.xlu0 %v1976
        %v1978 = vpop.xlane.xlu0 %1977
        %v1979 = vmul.f32 %v1975, %v651
        %v1980 = vmul.f32 %v1978, %v651
        %v1981 = vadd.f32 %v1979, 1e-05
        %v1982 = vadd.f32 %v1980, 1e-05
        %v1983 = vrsqrt.pop %v1981
        %v1984 = vrsqrt.pop %v1982
        %v1985 = vmul.f32 %v1964, %v1983
        %v1986 = vmul.f32 %v1965, %v1983
        %v1987 = vmul.f32 %v1966, %v1984
        %v1988 = vmul.f32 %v1967, %v1984
        %v1990 = vlaneseq
        %v1991 = vshrl.u32 %v1990, 7
        %v1992 = vsub.s32 0, %v1991
        %v1993 = vrot.slane %v1968, %v1992
        %v1994 = vlaneseq
        %v1995 = vshrl.u32 %v1994, 7
        %v1996 = vsub.s32 1, %v1995
        %v1997 = vrot.slane %v1968, %v1996
        %v2000 = vmul.f32 %v1985, %v1993
        %v2001 = vmul.f32 %v1986, %v1997
        %v2002 = vmul.f32 %v1987, %v1993
        %v2003 = vmul.f32 %v1988, %v1997
        %v2004 = vpack.c.bf16 %v2002, %v2000
        %v2005 = vpack.c.bf16 %v2003, %v2001
        %v2006 = vld [vmem:[%s545] sm:$0xff]
        %v2007 = vld [vmem:[%s545 + $0x8] sm:$0xff]
        %v2008 = vld [vmem:[%s545 + $0x10] sm:$0xff]
        %v2009 = vld [vmem:[%s545 + $0x18] sm:$0xff]
        %v2010 = vld [vmem:[%s545 + $0x20] sm:$0xff]
        %v2011 = vld [vmem:[%s545 + $0x28] sm:$0xff]
        %v2012 = vld [vmem:[%s545 + $0x30] sm:$0xff]
        %v2013 = vld [vmem:[%s545 + $0x38] sm:$0xff]
        %v2014 = vld [vmem:[%s545 + $0x40] sm:$0xff]
        %v2015 = vld [vmem:[%s545 + $0x48] sm:$0xff]
        %v2016 = vld [vmem:[%s545 + $0x50] sm:$0xff]
        %v2017 = vld [vmem:[%s545 + $0x58] sm:$0xff]
        %v2018 = vld [vmem:[%s545 + $0x60] sm:$0xff]
        %v2019 = vld [vmem:[%s545 + $0x68] sm:$0xff]
        %v2020 = vld [vmem:[%s545 + $0x70] sm:$0xff]
        %v2021 = vld [vmem:[%s545 + $0x78] sm:$0xff]
        %v2022 = vld [vmem:[%s545 + $0x80] sm:$0xff]
        %v2023 = vld [vmem:[%s545 + $0x88] sm:$0xff]
        %v2024 = vld [vmem:[%s545 + $0x90] sm:$0xff]
        %v2025 = vld [vmem:[%s545 + $0x98] sm:$0xff]
        %v2026 = vld [vmem:[%s545 + $0xa0] sm:$0xff]
        %v2027 = vld [vmem:[%s545 + $0xa8] sm:$0xff]
        %v2028 = vld [vmem:[%s545 + $0xb0] sm:$0xff]
        %v2029 = vld [vmem:[%s545 + $0xb8] sm:$0xff]
        %v2030 = vld [vmem:[%s545 + $0xc0] sm:$0xff]
        %v2031 = vld [vmem:[%s545 + $0xc8] sm:$0xff]
        %v2032 = vld [vmem:[%s545 + $0xd0] sm:$0xff]
        %v2033 = vld [vmem:[%s545 + $0xd8] sm:$0xff]
        %v2034 = vld [vmem:[%s545 + $0xe0] sm:$0xff]
        %v2035 = vld [vmem:[%s545 + $0xe8] sm:$0xff]
        %v2036 = vld [vmem:[%s545 + $0xf0] sm:$0xff]
        %v2037 = vld [vmem:[%s545 + $0xf8] sm:$0xff]
        %v2038 = vld [vmem:[%s545 + $0x100] sm:$0xff]
        %v2039 = vld [vmem:[%s545 + $0x108] sm:$0xff]
        %v2040 = vld [vmem:[%s545 + $0x110] sm:$0xff]
        %v2041 = vld [vmem:[%s545 + $0x118] sm:$0xff]
        %v2042 = vld [vmem:[%s545 + $0x120] sm:$0xff]
        %v2043 = vld [vmem:[%s545 + $0x128] sm:$0xff]
        %v2044 = vld [vmem:[%s545 + $0x130] sm:$0xff]
        %v2045 = vld [vmem:[%s545 + $0x138] sm:$0xff]
        %v2046 = vld [vmem:[%s545 + $0x140] sm:$0xff]
        %v2047 = vld [vmem:[%s545 + $0x148] sm:$0xff]
        %v2048 = vld [vmem:[%s545 + $0x150] sm:$0xff]
        %v2049 = vld [vmem:[%s545 + $0x158] sm:$0xff]
        %v2050 = vld [vmem:[%s545 + $0x160] sm:$0xff]
        %v2051 = vld [vmem:[%s545 + $0x168] sm:$0xff]
        %v2052 = vld [vmem:[%s545 + $0x170] sm:$0xff]
        %v2053 = vld [vmem:[%s545 + $0x178] sm:$0xff]
        %v2054 = vld [vmem:[%s545 + $0x180] sm:$0xff]
        %v2055 = vld [vmem:[%s545 + $0x188] sm:$0xff]
        %v2056 = vld [vmem:[%s545 + $0x190] sm:$0xff]
        %v2057 = vld [vmem:[%s545 + $0x198] sm:$0xff]
        %v2058 = vld [vmem:[%s545 + $0x1a0] sm:$0xff]
        %v2059 = vld [vmem:[%s545 + $0x1a8] sm:$0xff]
        %v2060 = vld [vmem:[%s545 + $0x1b0] sm:$0xff]
        %v2061 = vld [vmem:[%s545 + $0x1b8] sm:$0xff]
        %v2062 = vld [vmem:[%s545 + $0x1c0] sm:$0xff]
        %v2063 = vld [vmem:[%s545 + $0x1c8] sm:$0xff]
        %v2064 = vld [vmem:[%s545 + $0x1d0] sm:$0xff]
        %v2065 = vld [vmem:[%s545 + $0x1d8] sm:$0xff]
        %v2066 = vld [vmem:[%s545 + $0x1e0] sm:$0xff]
        %v2067 = vld [vmem:[%s545 + $0x1e8] sm:$0xff]
        %v2068 = vld [vmem:[%s545 + $0x1f0] sm:$0xff]
        %v2069 = vld [vmem:[%s545 + $0x1f8] sm:$0xff]
        %v2070 = vld [vmem:[%s545 + $0x200] sm:$0xff]
        %v2071 = vld [vmem:[%s545 + $0x208] sm:$0xff]
        %v2072 = vld [vmem:[%s545 + $0x210] sm:$0xff]
        %v2073 = vld [vmem:[%s545 + $0x218] sm:$0xff]
        %v2074 = vld [vmem:[%s545 + $0x220] sm:$0xff]
        %v2075 = vld [vmem:[%s545 + $0x228] sm:$0xff]
        %v2076 = vld [vmem:[%s545 + $0x230] sm:$0xff]
        %v2077 = vld [vmem:[%s545 + $0x238] sm:$0xff]
        %v2078 = vld [vmem:[%s545 + $0x240] sm:$0xff]
        %v2079 = vld [vmem:[%s545 + $0x248] sm:$0xff]
        %v2080 = vld [vmem:[%s545 + $0x250] sm:$0xff]
        %v2081 = vld [vmem:[%s545 + $0x258] sm:$0xff]
        %v2082 = vld [vmem:[%s545 + $0x260] sm:$0xff]
        %v2083 = vld [vmem:[%s545 + $0x268] sm:$0xff]
        %v2084 = vld [vmem:[%s545 + $0x270] sm:$0xff]
        %v2085 = vld [vmem:[%s545 + $0x278] sm:$0xff]
        %v2086 = vld [vmem:[%s545 + $0x280] sm:$0xff]
        %v2087 = vld [vmem:[%s545 + $0x288] sm:$0xff]
        %v2088 = vld [vmem:[%s545 + $0x290] sm:$0xff]
        %v2089 = vld [vmem:[%s545 + $0x298] sm:$0xff]
        %v2090 = vld [vmem:[%s545 + $0x2a0] sm:$0xff]
        %v2091 = vld [vmem:[%s545 + $0x2a8] sm:$0xff]
        %v2092 = vld [vmem:[%s545 + $0x2b0] sm:$0xff]
        %v2093 = vld [vmem:[%s545 + $0x2b8] sm:$0xff]
        %v2094 = vld [vmem:[%s545 + $0x2c0] sm:$0xff]
        %v2095 = vld [vmem:[%s545 + $0x2c8] sm:$0xff]
        %v2096 = vld [vmem:[%s545 + $0x2d0] sm:$0xff]
        %v2097 = vld [vmem:[%s545 + $0x2d8] sm:$0xff]
        %v2098 = vld [vmem:[%s545 + $0x2e0] sm:$0xff]
        %v2099 = vld [vmem:[%s545 + $0x2e8] sm:$0xff]
        %v2100 = vld [vmem:[%s545 + $0x2f0] sm:$0xff]
        %v2101 = vld [vmem:[%s545 + $0x2f8] sm:$0xff]
        %v2102 = vld [vmem:[%s545 + $0x300] sm:$0xff]
        %v2103 = vld [vmem:[%s545 + $0x308] sm:$0xff]
        %v2104 = vld [vmem:[%s545 + $0x310] sm:$0xff]
        %v2105 = vld [vmem:[%s545 + $0x318] sm:$0xff]
        %v2106 = vld [vmem:[%s545 + $0x320] sm:$0xff]
        %v2107 = vld [vmem:[%s545 + $0x328] sm:$0xff]
        %v2108 = vld [vmem:[%s545 + $0x330] sm:$0xff]
        %v2109 = vld [vmem:[%s545 + $0x338] sm:$0xff]
        %v2110 = vld [vmem:[%s545 + $0x340] sm:$0xff]
        %v2111 = vld [vmem:[%s545 + $0x348] sm:$0xff]
        %v2112 = vld [vmem:[%s545 + $0x350] sm:$0xff]
        %v2113 = vld [vmem:[%s545 + $0x358] sm:$0xff]
        %v2114 = vld [vmem:[%s545 + $0x360] sm:$0xff]
        %v2115 = vld [vmem:[%s545 + $0x368] sm:$0xff]
        %v2116 = vld [vmem:[%s545 + $0x370] sm:$0xff]
        %v2117 = vld [vmem:[%s545 + $0x378] sm:$0xff]
        %v2118 = vld [vmem:[%s545 + $0x380] sm:$0xff]
        %v2119 = vld [vmem:[%s545 + $0x388] sm:$0xff]
        %v2120 = vld [vmem:[%s545 + $0x390] sm:$0xff]
        %v2121 = vld [vmem:[%s545 + $0x398] sm:$0xff]
        %v2122 = vld [vmem:[%s545 + $0x3a0] sm:$0xff]
        %v2123 = vld [vmem:[%s545 + $0x3a8] sm:$0xff]
        %v2124 = vld [vmem:[%s545 + $0x3b0] sm:$0xff]
        %v2125 = vld [vmem:[%s545 + $0x3b8] sm:$0xff]
        %v2126 = vld [vmem:[%s545 + $0x3c0] sm:$0xff]
        %v2127 = vld [vmem:[%s545 + $0x3c8] sm:$0xff]
        %v2128 = vld [vmem:[%s545 + $0x3d0] sm:$0xff]
        %v2129 = vld [vmem:[%s545 + $0x3d8] sm:$0xff]
        %v2130 = vld [vmem:[%s545 + $0x3e0] sm:$0xff]
        %v2131 = vld [vmem:[%s545 + $0x3e8] sm:$0xff]
        %v2132 = vld [vmem:[%s545 + $0x3f0] sm:$0xff]
        %v2133 = vld [vmem:[%s545 + $0x3f8] sm:$0xff]
        %v2134 = vld [vmem:[%s545 + $0x400] sm:$0xff]
        %v2135 = vld [vmem:[%s545 + $0x408] sm:$0xff]
        %v2136 = vld [vmem:[%s545 + $0x410] sm:$0xff]
        %v2137 = vld [vmem:[%s545 + $0x418] sm:$0xff]
        %v2138 = vld [vmem:[%s545 + $0x420] sm:$0xff]
        %v2139 = vld [vmem:[%s545 + $0x428] sm:$0xff]
        %v2140 = vld [vmem:[%s545 + $0x430] sm:$0xff]
        %v2141 = vld [vmem:[%s545 + $0x438] sm:$0xff]
        %v2142 = vld [vmem:[%s545 + $0x440] sm:$0xff]
        %v2143 = vld [vmem:[%s545 + $0x448] sm:$0xff]
        %v2144 = vld [vmem:[%s545 + $0x450] sm:$0xff]
        %v2145 = vld [vmem:[%s545 + $0x458] sm:$0xff]
        %v2146 = vld [vmem:[%s545 + $0x460] sm:$0xff]
        %v2147 = vld [vmem:[%s545 + $0x468] sm:$0xff]
        %v2148 = vld [vmem:[%s545 + $0x470] sm:$0xff]
        %v2149 = vld [vmem:[%s545 + $0x478] sm:$0xff]
        %v2150 = vld [vmem:[%s545 + $0x480] sm:$0xff]
        %v2151 = vld [vmem:[%s545 + $0x488] sm:$0xff]
        %v2152 = vld [vmem:[%s545 + $0x490] sm:$0xff]
        %v2153 = vld [vmem:[%s545 + $0x498] sm:$0xff]
        %v2154 = vld [vmem:[%s545 + $0x4a0] sm:$0xff]
        %v2155 = vld [vmem:[%s545 + $0x4a8] sm:$0xff]
        %v2156 = vld [vmem:[%s545 + $0x4b0] sm:$0xff]
        %v2157 = vld [vmem:[%s545 + $0x4b8] sm:$0xff]
        %v2158 = vld [vmem:[%s545 + $0x4c0] sm:$0xff]
        %v2159 = vld [vmem:[%s545 + $0x4c8] sm:$0xff]
        %v2160 = vld [vmem:[%s545 + $0x4d0] sm:$0xff]
        %v2161 = vld [vmem:[%s545 + $0x4d8] sm:$0xff]
        %v2162 = vld [vmem:[%s545 + $0x4e0] sm:$0xff]
        %v2163 = vld [vmem:[%s545 + $0x4e8] sm:$0xff]
        %v2164 = vld [vmem:[%s545 + $0x4f0] sm:$0xff]
        %v2165 = vld [vmem:[%s545 + $0x4f8] sm:$0xff]
        %v2166 = vld [vmem:[%s545 + $0x500] sm:$0xff]
        %v2167 = vld [vmem:[%s545 + $0x508] sm:$0xff]
        %v2168 = vld [vmem:[%s545 + $0x510] sm:$0xff]
        %v2169 = vld [vmem:[%s545 + $0x518] sm:$0xff]
        %v2170 = vld [vmem:[%s545 + $0x520] sm:$0xff]
        %v2171 = vld [vmem:[%s545 + $0x528] sm:$0xff]
        %v2172 = vld [vmem:[%s545 + $0x530] sm:$0xff]
        %v2173 = vld [vmem:[%s545 + $0x538] sm:$0xff]
        %v2174 = vld [vmem:[%s545 + $0x540] sm:$0xff]
        %v2175 = vld [vmem:[%s545 + $0x548] sm:$0xff]
        %v2176 = vld [vmem:[%s545 + $0x550] sm:$0xff]
        %v2177 = vld [vmem:[%s545 + $0x558] sm:$0xff]
        %v2178 = vld [vmem:[%s545 + $0x560] sm:$0xff]
        %v2179 = vld [vmem:[%s545 + $0x568] sm:$0xff]
        %v2180 = vld [vmem:[%s545 + $0x570] sm:$0xff]
        %v2181 = vld [vmem:[%s545 + $0x578] sm:$0xff]
        %v2182 = vld [vmem:[%s545 + $0x580] sm:$0xff]
        %v2183 = vld [vmem:[%s545 + $0x588] sm:$0xff]
        %v2184 = vld [vmem:[%s545 + $0x590] sm:$0xff]
        %v2185 = vld [vmem:[%s545 + $0x598] sm:$0xff]
        %v2186 = vld [vmem:[%s545 + $0x5a0] sm:$0xff]
        %v2187 = vld [vmem:[%s545 + $0x5a8] sm:$0xff]
        %v2188 = vld [vmem:[%s545 + $0x5b0] sm:$0xff]
        %v2189 = vld [vmem:[%s545 + $0x5b8] sm:$0xff]
        %v2190 = vld [vmem:[%s545 + $0x5c0] sm:$0xff]
        %v2191 = vld [vmem:[%s545 + $0x5c8] sm:$0xff]
        %v2192 = vld [vmem:[%s545 + $0x5d0] sm:$0xff]
        %v2193 = vld [vmem:[%s545 + $0x5d8] sm:$0xff]
        %v2194 = vld [vmem:[%s545 + $0x5e0] sm:$0xff]
        %v2195 = vld [vmem:[%s545 + $0x5e8] sm:$0xff]
        %v2196 = vld [vmem:[%s545 + $0x5f0] sm:$0xff]
        %v2197 = vld [vmem:[%s545 + $0x5f8] sm:$0xff]
        %v2390 = vunpack.c.l.b16 %v2006
        %v2391 = vunpack.c.h.b16 %v2006
        %v2392 = vunpack.c.l.b16 %v2007
        %v2393 = vunpack.c.h.b16 %v2007
        %v2394 = vunpack.c.l.b16 %v2008
        %v2395 = vunpack.c.h.b16 %v2008
        %v2396 = vunpack.c.l.b16 %v2009
        %v2397 = vunpack.c.h.b16 %v2009
        %v2398 = vunpack.c.l.b16 %v2010
        %v2399 = vunpack.c.h.b16 %v2010
        %v2400 = vunpack.c.l.b16 %v2011
        %v2401 = vunpack.c.h.b16 %v2011
        %v2402 = vunpack.c.l.b16 %v2012
        %v2403 = vunpack.c.h.b16 %v2012
        %v2404 = vunpack.c.l.b16 %v2013
        %v2405 = vunpack.c.h.b16 %v2013
        %v2406 = vunpack.c.l.b16 %v2014
        %v2407 = vunpack.c.h.b16 %v2014
        %v2408 = vunpack.c.l.b16 %v2015
        %v2409 = vunpack.c.h.b16 %v2015
        %v2410 = vunpack.c.l.b16 %v2016
        %v2411 = vunpack.c.h.b16 %v2016
        %v2412 = vunpack.c.l.b16 %v2017
        %v2413 = vunpack.c.h.b16 %v2017
        %v2414 = vunpack.c.l.b16 %v2018
        %v2415 = vunpack.c.h.b16 %v2018
        %v2416 = vunpack.c.l.b16 %v2019
        %v2417 = vunpack.c.h.b16 %v2019
        %v2418 = vunpack.c.l.b16 %v2020
        %v2419 = vunpack.c.h.b16 %v2020
        %v2420 = vunpack.c.l.b16 %v2021
        %v2421 = vunpack.c.h.b16 %v2021
        %v2422 = vunpack.c.l.b16 %v2022
        %v2423 = vunpack.c.h.b16 %v2022
        %v2424 = vunpack.c.l.b16 %v2023
        %v2425 = vunpack.c.h.b16 %v2023
        %v2426 = vunpack.c.l.b16 %v2024
        %v2427 = vunpack.c.h.b16 %v2024
        %v2428 = vunpack.c.l.b16 %v2025
        %v2429 = vunpack.c.h.b16 %v2025
        %v2430 = vunpack.c.l.b16 %v2026
        %v2431 = vunpack.c.h.b16 %v2026
        %v2432 = vunpack.c.l.b16 %v2027
        %v2433 = vunpack.c.h.b16 %v2027
        %v2434 = vunpack.c.l.b16 %v2028
        %v2435 = vunpack.c.h.b16 %v2028
        %v2436 = vunpack.c.l.b16 %v2029
        %v2437 = vunpack.c.h.b16 %v2029
        %v2438 = vunpack.c.l.b16 %v2030
        %v2439 = vunpack.c.h.b16 %v2030
        %v2440 = vunpack.c.l.b16 %v2031
        %v2441 = vunpack.c.h.b16 %v2031
        %v2442 = vunpack.c.l.b16 %v2032
        %v2443 = vunpack.c.h.b16 %v2032
        %v2444 = vunpack.c.l.b16 %v2033
        %v2445 = vunpack.c.h.b16 %v2033
        %v2446 = vunpack.c.l.b16 %v2034
        %v2447 = vunpack.c.h.b16 %v2034
        %v2448 = vunpack.c.l.b16 %v2035
        %v2449 = vunpack.c.h.b16 %v2035
        %v2450 = vunpack.c.l.b16 %v2036
        %v2451 = vunpack.c.h.b16 %v2036
        %v2452 = vunpack.c.l.b16 %v2037
        %v2453 = vunpack.c.h.b16 %v2037
        %v2454 = vunpack.c.l.b16 %v2038
        %v2455 = vunpack.c.h.b16 %v2038
        %v2456 = vunpack.c.l.b16 %v2039
        %v2457 = vunpack.c.h.b16 %v2039
        %v2458 = vunpack.c.l.b16 %v2040
        %v2459 = vunpack.c.h.b16 %v2040
        %v2460 = vunpack.c.l.b16 %v2041
        %v2461 = vunpack.c.h.b16 %v2041
        %v2462 = vunpack.c.l.b16 %v2042
        %v2463 = vunpack.c.h.b16 %v2042
        %v2464 = vunpack.c.l.b16 %v2043
        %v2465 = vunpack.c.h.b16 %v2043
        %v2466 = vunpack.c.l.b16 %v2044
        %v2467 = vunpack.c.h.b16 %v2044
        %v2468 = vunpack.c.l.b16 %v2045
        %v2469 = vunpack.c.h.b16 %v2045
        %v2470 = vunpack.c.l.b16 %v2046
        %v2471 = vunpack.c.h.b16 %v2046
        %v2472 = vunpack.c.l.b16 %v2047
        %v2473 = vunpack.c.h.b16 %v2047
        %v2474 = vunpack.c.l.b16 %v2048
        %v2475 = vunpack.c.h.b16 %v2048
        %v2476 = vunpack.c.l.b16 %v2049
        %v2477 = vunpack.c.h.b16 %v2049
        %v2478 = vunpack.c.l.b16 %v2050
        %v2479 = vunpack.c.h.b16 %v2050
        %v2480 = vunpack.c.l.b16 %v2051
        %v2481 = vunpack.c.h.b16 %v2051
        %v2482 = vunpack.c.l.b16 %v2052
        %v2483 = vunpack.c.h.b16 %v2052
        %v2484 = vunpack.c.l.b16 %v2053
        %v2485 = vunpack.c.h.b16 %v2053
        %v2486 = vunpack.c.l.b16 %v2054
        %v2487 = vunpack.c.h.b16 %v2054
        %v2488 = vunpack.c.l.b16 %v2055
        %v2489 = vunpack.c.h.b16 %v2055
        %v2490 = vunpack.c.l.b16 %v2056
        %v2491 = vunpack.c.h.b16 %v2056
        %v2492 = vunpack.c.l.b16 %v2057
        %v2493 = vunpack.c.h.b16 %v2057
        %v2494 = vunpack.c.l.b16 %v2058
        %v2495 = vunpack.c.h.b16 %v2058
        %v2496 = vunpack.c.l.b16 %v2059
        %v2497 = vunpack.c.h.b16 %v2059
        %v2498 = vunpack.c.l.b16 %v2060
        %v2499 = vunpack.c.h.b16 %v2060
        %v2500 = vunpack.c.l.b16 %v2061
        %v2501 = vunpack.c.h.b16 %v2061
        %v2502 = vunpack.c.l.b16 %v2062
        %v2503 = vunpack.c.h.b16 %v2062
        %v2504 = vunpack.c.l.b16 %v2063
        %v2505 = vunpack.c.h.b16 %v2063
        %v2506 = vunpack.c.l.b16 %v2064
        %v2507 = vunpack.c.h.b16 %v2064
        %v2508 = vunpack.c.l.b16 %v2065
        %v2509 = vunpack.c.h.b16 %v2065
        %v2510 = vunpack.c.l.b16 %v2066
        %v2511 = vunpack.c.h.b16 %v2066
        %v2512 = vunpack.c.l.b16 %v2067
        %v2513 = vunpack.c.h.b16 %v2067
        %v2514 = vunpack.c.l.b16 %v2068
        %v2515 = vunpack.c.h.b16 %v2068
        %v2516 = vunpack.c.l.b16 %v2069
        %v2517 = vunpack.c.h.b16 %v2069
        %v2518 = vunpack.c.l.b16 %v2070
        %v2519 = vunpack.c.h.b16 %v2070
        %v2520 = vunpack.c.l.b16 %v2071
        %v2521 = vunpack.c.h.b16 %v2071
        %v2522 = vunpack.c.l.b16 %v2072
        %v2523 = vunpack.c.h.b16 %v2072
        %v2524 = vunpack.c.l.b16 %v2073
        %v2525 = vunpack.c.h.b16 %v2073
        %v2526 = vunpack.c.l.b16 %v2074
        %v2527 = vunpack.c.h.b16 %v2074
        %v2528 = vunpack.c.l.b16 %v2075
        %v2529 = vunpack.c.h.b16 %v2075
        %v2530 = vunpack.c.l.b16 %v2076
        %v2531 = vunpack.c.h.b16 %v2076
        %v2532 = vunpack.c.l.b16 %v2077
        %v2533 = vunpack.c.h.b16 %v2077
        %v2534 = vunpack.c.l.b16 %v2078
        %v2535 = vunpack.c.h.b16 %v2078
        %v2536 = vunpack.c.l.b16 %v2079
        %v2537 = vunpack.c.h.b16 %v2079
        %v2538 = vunpack.c.l.b16 %v2080
        %v2539 = vunpack.c.h.b16 %v2080
        %v2540 = vunpack.c.l.b16 %v2081
        %v2541 = vunpack.c.h.b16 %v2081
        %v2542 = vunpack.c.l.b16 %v2082
        %v2543 = vunpack.c.h.b16 %v2082
        %v2544 = vunpack.c.l.b16 %v2083
        %v2545 = vunpack.c.h.b16 %v2083
        %v2546 = vunpack.c.l.b16 %v2084
        %v2547 = vunpack.c.h.b16 %v2084
        %v2548 = vunpack.c.l.b16 %v2085
        %v2549 = vunpack.c.h.b16 %v2085
        %v2550 = vunpack.c.l.b16 %v2086
        %v2551 = vunpack.c.h.b16 %v2086
        %v2552 = vunpack.c.l.b16 %v2087
        %v2553 = vunpack.c.h.b16 %v2087
        %v2554 = vunpack.c.l.b16 %v2088
        %v2555 = vunpack.c.h.b16 %v2088
        %v2556 = vunpack.c.l.b16 %v2089
        %v2557 = vunpack.c.h.b16 %v2089
        %v2558 = vunpack.c.l.b16 %v2090
        %v2559 = vunpack.c.h.b16 %v2090
        %v2560 = vunpack.c.l.b16 %v2091
        %v2561 = vunpack.c.h.b16 %v2091
        %v2562 = vunpack.c.l.b16 %v2092
        %v2563 = vunpack.c.h.b16 %v2092
        %v2564 = vunpack.c.l.b16 %v2093
        %v2565 = vunpack.c.h.b16 %v2093
        %v2566 = vunpack.c.l.b16 %v2094
        %v2567 = vunpack.c.h.b16 %v2094
        %v2568 = vunpack.c.l.b16 %v2095
        %v2569 = vunpack.c.h.b16 %v2095
        %v2570 = vunpack.c.l.b16 %v2096
        %v2571 = vunpack.c.h.b16 %v2096
        %v2572 = vunpack.c.l.b16 %v2097
        %v2573 = vunpack.c.h.b16 %v2097
        %v2574 = vunpack.c.l.b16 %v2098
        %v2575 = vunpack.c.h.b16 %v2098
        %v2576 = vunpack.c.l.b16 %v2099
        %v2577 = vunpack.c.h.b16 %v2099
        %v2578 = vunpack.c.l.b16 %v2100
        %v2579 = vunpack.c.h.b16 %v2100
        %v2580 = vunpack.c.l.b16 %v2101
        %v2581 = vunpack.c.h.b16 %v2101
        %v2582 = vunpack.c.l.b16 %v2102
        %v2583 = vunpack.c.h.b16 %v2102
        %v2584 = vunpack.c.l.b16 %v2103
        %v2585 = vunpack.c.h.b16 %v2103
        %v2586 = vunpack.c.l.b16 %v2104
        %v2587 = vunpack.c.h.b16 %v2104
        %v2588 = vunpack.c.l.b16 %v2105
        %v2589 = vunpack.c.h.b16 %v2105
        %v2590 = vunpack.c.l.b16 %v2106
        %v2591 = vunpack.c.h.b16 %v2106
        %v2592 = vunpack.c.l.b16 %v2107
        %v2593 = vunpack.c.h.b16 %v2107
        %v2594 = vunpack.c.l.b16 %v2108
        %v2595 = vunpack.c.h.b16 %v2108
        %v2596 = vunpack.c.l.b16 %v2109
        %v2597 = vunpack.c.h.b16 %v2109
        %v2598 = vunpack.c.l.b16 %v2110
        %v2599 = vunpack.c.h.b16 %v2110
        %v2600 = vunpack.c.l.b16 %v2111
        %v2601 = vunpack.c.h.b16 %v2111
        %v2602 = vunpack.c.l.b16 %v2112
        %v2603 = vunpack.c.h.b16 %v2112
        %v2604 = vunpack.c.l.b16 %v2113
        %v2605 = vunpack.c.h.b16 %v2113
        %v2606 = vunpack.c.l.b16 %v2114
        %v2607 = vunpack.c.h.b16 %v2114
        %v2608 = vunpack.c.l.b16 %v2115
        %v2609 = vunpack.c.h.b16 %v2115
        %v2610 = vunpack.c.l.b16 %v2116
        %v2611 = vunpack.c.h.b16 %v2116
        %v2612 = vunpack.c.l.b16 %v2117
        %v2613 = vunpack.c.h.b16 %v2117
        %v2614 = vunpack.c.l.b16 %v2118
        %v2615 = vunpack.c.h.b16 %v2118
        %v2616 = vunpack.c.l.b16 %v2119
        %v2617 = vunpack.c.h.b16 %v2119
        %v2618 = vunpack.c.l.b16 %v2120
        %v2619 = vunpack.c.h.b16 %v2120
        %v2620 = vunpack.c.l.b16 %v2121
        %v2621 = vunpack.c.h.b16 %v2121
        %v2622 = vunpack.c.l.b16 %v2122
        %v2623 = vunpack.c.h.b16 %v2122
        %v2624 = vunpack.c.l.b16 %v2123
        %v2625 = vunpack.c.h.b16 %v2123
        %v2626 = vunpack.c.l.b16 %v2124
        %v2627 = vunpack.c.h.b16 %v2124
        %v2628 = vunpack.c.l.b16 %v2125
        %v2629 = vunpack.c.h.b16 %v2125
        %v2630 = vunpack.c.l.b16 %v2126
        %v2631 = vunpack.c.h.b16 %v2126
        %v2632 = vunpack.c.l.b16 %v2127
        %v2633 = vunpack.c.h.b16 %v2127
        %v2634 = vunpack.c.l.b16 %v2128
        %v2635 = vunpack.c.h.b16 %v2128
        %v2636 = vunpack.c.l.b16 %v2129
        %v2637 = vunpack.c.h.b16 %v2129
        %v2638 = vunpack.c.l.b16 %v2130
        %v2639 = vunpack.c.h.b16 %v2130
        %v2640 = vunpack.c.l.b16 %v2131
        %v2641 = vunpack.c.h.b16 %v2131
        %v2642 = vunpack.c.l.b16 %v2132
        %v2643 = vunpack.c.h.b16 %v2132
        %v2644 = vunpack.c.l.b16 %v2133
        %v2645 = vunpack.c.h.b16 %v2133
        %v2646 = vunpack.c.l.b16 %v2134
        %v2647 = vunpack.c.h.b16 %v2134
        %v2648 = vunpack.c.l.b16 %v2135
        %v2649 = vunpack.c.h.b16 %v2135
        %v2650 = vunpack.c.l.b16 %v2136
        %v2651 = vunpack.c.h.b16 %v2136
        %v2652 = vunpack.c.l.b16 %v2137
        %v2653 = vunpack.c.h.b16 %v2137
        %v2654 = vunpack.c.l.b16 %v2138
        %v2655 = vunpack.c.h.b16 %v2138
        %v2656 = vunpack.c.l.b16 %v2139
        %v2657 = vunpack.c.h.b16 %v2139
        %v2658 = vunpack.c.l.b16 %v2140
        %v2659 = vunpack.c.h.b16 %v2140
        %v2660 = vunpack.c.l.b16 %v2141
        %v2661 = vunpack.c.h.b16 %v2141
        %v2662 = vunpack.c.l.b16 %v2142
        %v2663 = vunpack.c.h.b16 %v2142
        %v2664 = vunpack.c.l.b16 %v2143
        %v2665 = vunpack.c.h.b16 %v2143
        %v2666 = vunpack.c.l.b16 %v2144
        %v2667 = vunpack.c.h.b16 %v2144
        %v2668 = vunpack.c.l.b16 %v2145
        %v2669 = vunpack.c.h.b16 %v2145
        %v2670 = vunpack.c.l.b16 %v2146
        %v2671 = vunpack.c.h.b16 %v2146
        %v2672 = vunpack.c.l.b16 %v2147
        %v2673 = vunpack.c.h.b16 %v2147
        %v2674 = vunpack.c.l.b16 %v2148
        %v2675 = vunpack.c.h.b16 %v2148
        %v2676 = vunpack.c.l.b16 %v2149
        %v2677 = vunpack.c.h.b16 %v2149
        %v2678 = vunpack.c.l.b16 %v2150
        %v2679 = vunpack.c.h.b16 %v2150
        %v2680 = vunpack.c.l.b16 %v2151
        %v2681 = vunpack.c.h.b16 %v2151
        %v2682 = vunpack.c.l.b16 %v2152
        %v2683 = vunpack.c.h.b16 %v2152
        %v2684 = vunpack.c.l.b16 %v2153
        %v2685 = vunpack.c.h.b16 %v2153
        %v2686 = vunpack.c.l.b16 %v2154
        %v2687 = vunpack.c.h.b16 %v2154
        %v2688 = vunpack.c.l.b16 %v2155
        %v2689 = vunpack.c.h.b16 %v2155
        %v2690 = vunpack.c.l.b16 %v2156
        %v2691 = vunpack.c.h.b16 %v2156
        %v2692 = vunpack.c.l.b16 %v2157
        %v2693 = vunpack.c.h.b16 %v2157
        %v2694 = vunpack.c.l.b16 %v2158
        %v2695 = vunpack.c.h.b16 %v2158
        %v2696 = vunpack.c.l.b16 %v2159
        %v2697 = vunpack.c.h.b16 %v2159
        %v2698 = vunpack.c.l.b16 %v2160
        %v2699 = vunpack.c.h.b16 %v2160
        %v2700 = vunpack.c.l.b16 %v2161
        %v2701 = vunpack.c.h.b16 %v2161
        %v2702 = vunpack.c.l.b16 %v2162
        %v2703 = vunpack.c.h.b16 %v2162
        %v2704 = vunpack.c.l.b16 %v2163
        %v2705 = vunpack.c.h.b16 %v2163
        %v2706 = vunpack.c.l.b16 %v2164
        %v2707 = vunpack.c.h.b16 %v2164
        %v2708 = vunpack.c.l.b16 %v2165
        %v2709 = vunpack.c.h.b16 %v2165
        %v2710 = vunpack.c.l.b16 %v2166
        %v2711 = vunpack.c.h.b16 %v2166
        %v2712 = vunpack.c.l.b16 %v2167
        %v2713 = vunpack.c.h.b16 %v2167
        %v2714 = vunpack.c.l.b16 %v2168
        %v2715 = vunpack.c.h.b16 %v2168
        %v2716 = vunpack.c.l.b16 %v2169
        %v2717 = vunpack.c.h.b16 %v2169
        %v2718 = vunpack.c.l.b16 %v2170
        %v2719 = vunpack.c.h.b16 %v2170
        %v2720 = vunpack.c.l.b16 %v2171
        %v2721 = vunpack.c.h.b16 %v2171
        %v2722 = vunpack.c.l.b16 %v2172
        %v2723 = vunpack.c.h.b16 %v2172
        %v2724 = vunpack.c.l.b16 %v2173
        %v2725 = vunpack.c.h.b16 %v2173
        %v2726 = vunpack.c.l.b16 %v2174
        %v2727 = vunpack.c.h.b16 %v2174
        %v2728 = vunpack.c.l.b16 %v2175
        %v2729 = vunpack.c.h.b16 %v2175
        %v2730 = vunpack.c.l.b16 %v2176
        %v2731 = vunpack.c.h.b16 %v2176
        %v2732 = vunpack.c.l.b16 %v2177
        %v2733 = vunpack.c.h.b16 %v2177
        %v2734 = vunpack.c.l.b16 %v2178
        %v2735 = vunpack.c.h.b16 %v2178
        %v2736 = vunpack.c.l.b16 %v2179
        %v2737 = vunpack.c.h.b16 %v2179
        %v2738 = vunpack.c.l.b16 %v2180
        %v2739 = vunpack.c.h.b16 %v2180
        %v2740 = vunpack.c.l.b16 %v2181
        %v2741 = vunpack.c.h.b16 %v2181
        %v2742 = vunpack.c.l.b16 %v2182
        %v2743 = vunpack.c.h.b16 %v2182
        %v2744 = vunpack.c.l.b16 %v2183
        %v2745 = vunpack.c.h.b16 %v2183
        %v2746 = vunpack.c.l.b16 %v2184
        %v2747 = vunpack.c.h.b16 %v2184
        %v2748 = vunpack.c.l.b16 %v2185
        %v2749 = vunpack.c.h.b16 %v2185
        %v2750 = vunpack.c.l.b16 %v2186
        %v2751 = vunpack.c.h.b16 %v2186
        %v2752 = vunpack.c.l.b16 %v2187
        %v2753 = vunpack.c.h.b16 %v2187
        %v2754 = vunpack.c.l.b16 %v2188
        %v2755 = vunpack.c.h.b16 %v2188
        %v2756 = vunpack.c.l.b16 %v2189
        %v2757 = vunpack.c.h.b16 %v2189
        %v2758 = vunpack.c.l.b16 %v2190
        %v2759 = vunpack.c.h.b16 %v2190
        %v2760 = vunpack.c.l.b16 %v2191
        %v2761 = vunpack.c.h.b16 %v2191
        %v2762 = vunpack.c.l.b16 %v2192
        %v2763 = vunpack.c.h.b16 %v2192
        %v2764 = vunpack.c.l.b16 %v2193
        %v2765 = vunpack.c.h.b16 %v2193
        %v2766 = vunpack.c.l.b16 %v2194
        %v2767 = vunpack.c.h.b16 %v2194
        %v2768 = vunpack.c.l.b16 %v2195
        %v2769 = vunpack.c.h.b16 %v2195
        %v2770 = vunpack.c.l.b16 %v2196
        %v2771 = vunpack.c.h.b16 %v2196
        %v2772 = vunpack.c.l.b16 %v2197
        %v2773 = vunpack.c.h.b16 %v2197
        %v2774 = vpack.c.b16 %v2402, %v2390
        %v2775 = vpack.c.b16 %v2403, %v2391
        %v2776 = vpack.c.b16 %v2404, %v2392
        %v2777 = vpack.c.b16 %v2405, %v2393
        %v2778 = vpack.c.b16 %v2406, %v2394
        %v2779 = vpack.c.b16 %v2407, %v2395
        %v2780 = vpack.c.b16 %v2408, %v2396
        %v2781 = vpack.c.b16 %v2409, %v2397
        %v2782 = vpack.c.b16 %v2410, %v2398
        %v2783 = vpack.c.b16 %v2411, %v2399
        %v2784 = vpack.c.b16 %v2412, %v2400
        %v2785 = vpack.c.b16 %v2413, %v2401
        %v2786 = vpack.c.b16 %v2426, %v2414
        %v2787 = vpack.c.b16 %v2427, %v2415
        %v2788 = vpack.c.b16 %v2428, %v2416
        %v2789 = vpack.c.b16 %v2429, %v2417
        %v2790 = vpack.c.b16 %v2430, %v2418
        %v2791 = vpack.c.b16 %v2431, %v2419
        %v2792 = vpack.c.b16 %v2432, %v2420
        %v2793 = vpack.c.b16 %v2433, %v2421
        %v2794 = vpack.c.b16 %v2434, %v2422
        %v2795 = vpack.c.b16 %v2435, %v2423
        %v2796 = vpack.c.b16 %v2436, %v2424
        %v2797 = vpack.c.b16 %v2437, %v2425
        %v2798 = vpack.c.b16 %v2450, %v2438
        %v2799 = vpack.c.b16 %v2451, %v2439
        %v2800 = vpack.c.b16 %v2452, %v2440
        %v2801 = vpack.c.b16 %v2453, %v2441
        %v2802 = vpack.c.b16 %v2454, %v2442
        %v2803 = vpack.c.b16 %v2455, %v2443
        %v2804 = vpack.c.b16 %v2456, %v2444
        %v2805 = vpack.c.b16 %v2457, %v2445
        %v2806 = vpack.c.b16 %v2458, %v2446
        %v2807 = vpack.c.b16 %v2459, %v2447
        %v2808 = vpack.c.b16 %v2460, %v2448
        %v2809 = vpack.c.b16 %v2461, %v2449
        %v2810 = vpack.c.b16 %v2474, %v2462
        %v2811 = vpack.c.b16 %v2475, %v2463
        %v2812 = vpack.c.b16 %v2476, %v2464
        %v2813 = vpack.c.b16 %v2477, %v2465
        %v2814 = vpack.c.b16 %v2478, %v2466
        %v2815 = vpack.c.b16 %v2479, %v2467
        %v2816 = vpack.c.b16 %v2480, %v2468
        %v2817 = vpack.c.b16 %v2481, %v2469
        %v2818 = vpack.c.b16 %v2482, %v2470
        %v2819 = vpack.c.b16 %v2483, %v2471
        %v2820 = vpack.c.b16 %v2484, %v2472
        %v2821 = vpack.c.b16 %v2485, %v2473
        %v2822 = vpack.c.b16 %v2498, %v2486
        %v2823 = vpack.c.b16 %v2499, %v2487
        %v2824 = vpack.c.b16 %v2500, %v2488
        %v2825 = vpack.c.b16 %v2501, %v2489
        %v2826 = vpack.c.b16 %v2502, %v2490
        %v2827 = vpack.c.b16 %v2503, %v2491
        %v2828 = vpack.c.b16 %v2504, %v2492
        %v2829 = vpack.c.b16 %v2505, %v2493
        %v2830 = vpack.c.b16 %v2506, %v2494
        %v2831 = vpack.c.b16 %v2507, %v2495
        %v2832 = vpack.c.b16 %v2508, %v2496
        %v2833 = vpack.c.b16 %v2509, %v2497
        %v2834 = vpack.c.b16 %v2522, %v2510
        %v2835 = vpack.c.b16 %v2523, %v2511
        %v2836 = vpack.c.b16 %v2524, %v2512
        %v2837 = vpack.c.b16 %v2525, %v2513
        %v2838 = vpack.c.b16 %v2526, %v2514
        %v2839 = vpack.c.b16 %v2527, %v2515
        %v2840 = vpack.c.b16 %v2528, %v2516
        %v2841 = vpack.c.b16 %v2529, %v2517
        %v2842 = vpack.c.b16 %v2530, %v2518
        %v2843 = vpack.c.b16 %v2531, %v2519
        %v2844 = vpack.c.b16 %v2532, %v2520
        %v2845 = vpack.c.b16 %v2533, %v2521
        %v2846 = vpack.c.b16 %v2546, %v2534
        %v2847 = vpack.c.b16 %v2547, %v2535
        %v2848 = vpack.c.b16 %v2548, %v2536
        %v2849 = vpack.c.b16 %v2549, %v2537
        %v2850 = vpack.c.b16 %v2550, %v2538
        %v2851 = vpack.c.b16 %v2551, %v2539
        %v2852 = vpack.c.b16 %v2552, %v2540
        %v2853 = vpack.c.b16 %v2553, %v2541
        %v2854 = vpack.c.b16 %v2554, %v2542
        %v2855 = vpack.c.b16 %v2555, %v2543
        %v2856 = vpack.c.b16 %v2556, %v2544
        %v2857 = vpack.c.b16 %v2557, %v2545
        %v2858 = vpack.c.b16 %v2570, %v2558
        %v2859 = vpack.c.b16 %v2571, %v2559
        %v2860 = vpack.c.b16 %v2572, %v2560
        %v2861 = vpack.c.b16 %v2573, %v2561
        %v2862 = vpack.c.b16 %v2574, %v2562
        %v2863 = vpack.c.b16 %v2575, %v2563
        %v2864 = vpack.c.b16 %v2576, %v2564
        %v2865 = vpack.c.b16 %v2577, %v2565
        %v2866 = vpack.c.b16 %v2578, %v2566
        %v2867 = vpack.c.b16 %v2579, %v2567
        %v2868 = vpack.c.b16 %v2580, %v2568
        %v2869 = vpack.c.b16 %v2581, %v2569
        %v2870 = vpack.c.b16 %v2594, %v2582
        %v2871 = vpack.c.b16 %v2595, %v2583
        %v2872 = vpack.c.b16 %v2596, %v2584
        %v2873 = vpack.c.b16 %v2597, %v2585
        %v2874 = vpack.c.b16 %v2598, %v2586
        %v2875 = vpack.c.b16 %v2599, %v2587
        %v2876 = vpack.c.b16 %v2600, %v2588
        %v2877 = vpack.c.b16 %v2601, %v2589
        %v2878 = vpack.c.b16 %v2602, %v2590
        %v2879 = vpack.c.b16 %v2603, %v2591
        %v2880 = vpack.c.b16 %v2604, %v2592
        %v2881 = vpack.c.b16 %v2605, %v2593
        %v2882 = vpack.c.b16 %v2618, %v2606
        %v2883 = vpack.c.b16 %v2619, %v2607
        %v2884 = vpack.c.b16 %v2620, %v2608
        %v2885 = vpack.c.b16 %v2621, %v2609
        %v2886 = vpack.c.b16 %v2622, %v2610
        %v2887 = vpack.c.b16 %v2623, %v2611
        %v2888 = vpack.c.b16 %v2624, %v2612
        %v2889 = vpack.c.b16 %v2625, %v2613
        %v2890 = vpack.c.b16 %v2626, %v2614
        %v2891 = vpack.c.b16 %v2627, %v2615
        %v2892 = vpack.c.b16 %v2628, %v2616
        %v2893 = vpack.c.b16 %v2629, %v2617
        %v2894 = vpack.c.b16 %v2642, %v2630
        %v2895 = vpack.c.b16 %v2643, %v2631
        %v2896 = vpack.c.b16 %v2644, %v2632
        %v2897 = vpack.c.b16 %v2645, %v2633
        %v2898 = vpack.c.b16 %v2646, %v2634
        %v2899 = vpack.c.b16 %v2647, %v2635
        %v2900 = vpack.c.b16 %v2648, %v2636
        %v2901 = vpack.c.b16 %v2649, %v2637
        %v2902 = vpack.c.b16 %v2650, %v2638
        %v2903 = vpack.c.b16 %v2651, %v2639
        %v2904 = vpack.c.b16 %v2652, %v2640
        %v2905 = vpack.c.b16 %v2653, %v2641
        %v2906 = vpack.c.b16 %v2666, %v2654
        %v2907 = vpack.c.b16 %v2667, %v2655
        %v2908 = vpack.c.b16 %v2668, %v2656
        %v2909 = vpack.c.b16 %v2669, %v2657
        %v2910 = vpack.c.b16 %v2670, %v2658
        %v2911 = vpack.c.b16 %v2671, %v2659
        %v2912 = vpack.c.b16 %v2672, %v2660
        %v2913 = vpack.c.b16 %v2673, %v2661
        %v2914 = vpack.c.b16 %v2674, %v2662
        %v2915 = vpack.c.b16 %v2675, %v2663
        %v2916 = vpack.c.b16 %v2676, %v2664
        %v2917 = vpack.c.b16 %v2677, %v2665
        %v2918 = vpack.c.b16 %v2690, %v2678
        %v2919 = vpack.c.b16 %v2691, %v2679
        %v2920 = vpack.c.b16 %v2692, %v2680
        %v2921 = vpack.c.b16 %v2693, %v2681
        %v2922 = vpack.c.b16 %v2694, %v2682
        %v2923 = vpack.c.b16 %v2695, %v2683
        %v2924 = vpack.c.b16 %v2696, %v2684
        %v2925 = vpack.c.b16 %v2697, %v2685
        %v2926 = vpack.c.b16 %v2698, %v2686
        %v2927 = vpack.c.b16 %v2699, %v2687
        %v2928 = vpack.c.b16 %v2700, %v2688
        %v2929 = vpack.c.b16 %v2701, %v2689
        %v2930 = vpack.c.b16 %v2714, %v2702
        %v2931 = vpack.c.b16 %v2715, %v2703
        %v2932 = vpack.c.b16 %v2716, %v2704
        %v2933 = vpack.c.b16 %v2717, %v2705
        %v2934 = vpack.c.b16 %v2718, %v2706
        %v2935 = vpack.c.b16 %v2719, %v2707
        %v2936 = vpack.c.b16 %v2720, %v2708
        %v2937 = vpack.c.b16 %v2721, %v2709
        %v2938 = vpack.c.b16 %v2722, %v2710
        %v2939 = vpack.c.b16 %v2723, %v2711
        %v2940 = vpack.c.b16 %v2724, %v2712
        %v2941 = vpack.c.b16 %v2725, %v2713
        %v2942 = vpack.c.b16 %v2738, %v2726
        %v2943 = vpack.c.b16 %v2739, %v2727
        %v2944 = vpack.c.b16 %v2740, %v2728
        %v2945 = vpack.c.b16 %v2741, %v2729
        %v2946 = vpack.c.b16 %v2742, %v2730
        %v2947 = vpack.c.b16 %v2743, %v2731
        %v2948 = vpack.c.b16 %v2744, %v2732
        %v2949 = vpack.c.b16 %v2745, %v2733
        %v2950 = vpack.c.b16 %v2746, %v2734
        %v2951 = vpack.c.b16 %v2747, %v2735
        %v2952 = vpack.c.b16 %v2748, %v2736
        %v2953 = vpack.c.b16 %v2749, %v2737
        %v2954 = vpack.c.b16 %v2762, %v2750
        %v2955 = vpack.c.b16 %v2763, %v2751
        %v2956 = vpack.c.b16 %v2764, %v2752
        %v2957 = vpack.c.b16 %v2765, %v2753
        %v2958 = vpack.c.b16 %v2766, %v2754
        %v2959 = vpack.c.b16 %v2767, %v2755
        %v2960 = vpack.c.b16 %v2768, %v2756
        %v2961 = vpack.c.b16 %v2769, %v2757
        %v2962 = vpack.c.b16 %v2770, %v2758
        %v2963 = vpack.c.b16 %v2771, %v2759
        %v2964 = vpack.c.b16 %v2772, %v2760
        %v2965 = vpack.c.b16 %v2773, %v2761
        %3158 = vmatprep.subr.bf16.mxu0 %v2859
        %3159 = vmatpush1.bf16.msra.mxu0 %v2858
        %3160 = vmatprep.subr.bf16.mxu0 %v2847
        %3161 = vmatpush1.bf16.msra.mxu0 %v2846
        %3162 = vmatprep.subr.bf16.mxu0 %v2835
        %3163 = vmatpush1.bf16.msra.mxu0 %v2834
        %3164 = vmatprep.subr.bf16.mxu0 %v2823
        %3165 = vmatpush1.bf16.msra.mxu0 %v2822
        %3166 = vmatprep.subr.bf16.mxu0 %v2811
        %3167 = vmatpush1.bf16.msra.mxu0 %v2810
        %3168 = vmatprep.subr.bf16.mxu0 %v2799
        %3169 = vmatpush1.bf16.msra.mxu0 %v2798
        %3170 = vmatprep.subr.bf16.mxu0 %v2787
        %3171 = vmatpush1.bf16.msra.mxu0 %v2786
        %3172 = vmatprep.subr.bf16.mxu0 %v2775
        %3173 = vmatpush1.bf16.msra.mxu0 %v2774
        %3174 = vmatprep.subr.bf16.mxu0 %v2955
        %3175 = vmatpush2.bf16.msra.mxu0 %v2954
        %3176 = vmatprep.subr.bf16.mxu0 %v2943
        %3177 = vmatpush2.bf16.msra.mxu0 %v2942
        %3178 = vmatprep.subr.bf16.mxu0 %v2931
        %3179 = vmatpush2.bf16.msra.mxu0 %v2930
        %3180 = vmatprep.subr.bf16.mxu0 %v2919
        %3181 = vmatpush2.bf16.msra.mxu0 %v2918
        %3182 = vmatprep.subr.bf16.mxu0 %v2907
        %3183 = vmatpush2.bf16.msra.mxu0 %v2906
        %3184 = vmatprep.subr.bf16.mxu0 %v2895
        %3185 = vmatpush2.bf16.msra.mxu0 %v2894
        %3186 = vmatprep.subr.bf16.mxu0 %v2883
        %3187 = vmatpush2.bf16.msra.mxu0 %v2882
        %3188 = vmatprep.subr.bf16.mxu0 %v2871
        %3189 = vmatpush2.bf16.msra.mxu0 %v2870
        %3190 = vmatprep.mubr.bf16.mxu0 %v2005
        %3191 = vmatmul.mubr.bf16.gmra.mxu0 %v2004
        %v3192 = vpop.f32.mrf.mxu0
        %v3193 = vadd.f32 0.0, %v3192
        %v3194 = vpop.f32.mrf.mxu0
        %v3195 = vadd.f32 0.0, %v3194
        %v3196 = vpop.f32.mrf.mxu0
        %v3197 = vadd.f32 0.0, %v3196
        %v3198 = vpop.f32.mrf.mxu0
        %v3199 = vadd.f32 0.0, %v3198
        %3200 = vdwg.mxu0
        %3201 = vmatprep.subr.bf16.mxu0 %v2861
        %3202 = vmatpush1.bf16.msra.mxu0 %v2860
        %3203 = vmatprep.subr.bf16.mxu0 %v2849
        %3204 = vmatpush1.bf16.msra.mxu0 %v2848
        %3205 = vmatprep.subr.bf16.mxu0 %v2837
        %3206 = vmatpush1.bf16.msra.mxu0 %v2836
        %3207 = vmatprep.subr.bf16.mxu0 %v2825
        %3208 = vmatpush1.bf16.msra.mxu0 %v2824
        %3209 = vmatprep.subr.bf16.mxu0 %v2813
        %3210 = vmatpush1.bf16.msra.mxu0 %v2812
        %3211 = vmatprep.subr.bf16.mxu0 %v2801
        %3212 = vmatpush1.bf16.msra.mxu0 %v2800
        %3213 = vmatprep.subr.bf16.mxu0 %v2789
        %3214 = vmatpush1.bf16.msra.mxu0 %v2788
        %3215 = vmatprep.subr.bf16.mxu0 %v2777
        %3216 = vmatpush1.bf16.msra.mxu0 %v2776
        %3217 = vmatprep.subr.bf16.mxu0 %v2957
        %3218 = vmatpush2.bf16.msra.mxu0 %v2956
        %3219 = vmatprep.subr.bf16.mxu0 %v2945
        %3220 = vmatpush2.bf16.msra.mxu0 %v2944
        %3221 = vmatprep.subr.bf16.mxu0 %v2933
        %3222 = vmatpush2.bf16.msra.mxu0 %v2932
        %3223 = vmatprep.subr.bf16.mxu0 %v2921
        %3224 = vmatpush2.bf16.msra.mxu0 %v2920
        %3225 = vmatprep.subr.bf16.mxu0 %v2909
        %3226 = vmatpush2.bf16.msra.mxu0 %v2908
        %3227 = vmatprep.subr.bf16.mxu0 %v2897
        %3228 = vmatpush2.bf16.msra.mxu0 %v2896
        %3229 = vmatprep.subr.bf16.mxu0 %v2885
        %3230 = vmatpush2.bf16.msra.mxu0 %v2884
        %3231 = vmatprep.subr.bf16.mxu0 %v2873
        %3232 = vmatpush2.bf16.msra.mxu0 %v2872
        %3233 = vmatprep.mubr.bf16.mxu0 %v2005
        %3234 = vmatmul.mubr.bf16.gmra.mxu0 %v2004
        %v3235 = vpop.f32.mrf.mxu0
        %v3236 = vadd.f32 0.0, %v3235
        %v3237 = vpop.f32.mrf.mxu0
        %v3238 = vadd.f32 0.0, %v3237
        %v3239 = vpop.f32.mrf.mxu0
        %v3240 = vadd.f32 0.0, %v3239
        %v3241 = vpop.f32.mrf.mxu0
        %v3242 = vadd.f32 0.0, %v3241
        %3243 = vdwg.mxu0
        %3244 = vmatprep.subr.bf16.mxu0 %v2863
        %3245 = vmatpush1.bf16.msra.mxu0 %v2862
        %3246 = vmatprep.subr.bf16.mxu0 %v2851
        %3247 = vmatpush1.bf16.msra.mxu0 %v2850
        %3248 = vmatprep.subr.bf16.mxu0 %v2839
        %3249 = vmatpush1.bf16.msra.mxu0 %v2838
        %3250 = vmatprep.subr.bf16.mxu0 %v2827
        %3251 = vmatpush1.bf16.msra.mxu0 %v2826
        %3252 = vmatprep.subr.bf16.mxu0 %v2815
        %3253 = vmatpush1.bf16.msra.mxu0 %v2814
        %3254 = vmatprep.subr.bf16.mxu0 %v2803
        %3255 = vmatpush1.bf16.msra.mxu0 %v2802
        %3256 = vmatprep.subr.bf16.mxu0 %v2791
        %3257 = vmatpush1.bf16.msra.mxu0 %v2790
        %3258 = vmatprep.subr.bf16.mxu0 %v2779
        %3259 = vmatpush1.bf16.msra.mxu0 %v2778
        %3260 = vmatprep.subr.bf16.mxu0 %v2959
        %3261 = vmatpush2.bf16.msra.mxu0 %v2958
        %3262 = vmatprep.subr.bf16.mxu0 %v2947
        %3263 = vmatpush2.bf16.msra.mxu0 %v2946
        %3264 = vmatprep.subr.bf16.mxu0 %v2935
        %3265 = vmatpush2.bf16.msra.mxu0 %v2934
        %3266 = vmatprep.subr.bf16.mxu0 %v2923
        %3267 = vmatpush2.bf16.msra.mxu0 %v2922
        %3268 = vmatprep.subr.bf16.mxu0 %v2911
        %3269 = vmatpush2.bf16.msra.mxu0 %v2910
        %3270 = vmatprep.subr.bf16.mxu0 %v2899
        %3271 = vmatpush2.bf16.msra.mxu0 %v2898
        %3272 = vmatprep.subr.bf16.mxu0 %v2887
        %3273 = vmatpush2.bf16.msra.mxu0 %v2886
        %3274 = vmatprep.subr.bf16.mxu0 %v2875
        %3275 = vmatpush2.bf16.msra.mxu0 %v2874
        %3276 = vmatprep.mubr.bf16.mxu0 %v2005
        %3277 = vmatmul.mubr.bf16.gmra.mxu0 %v2004
        %v3278 = vpop.f32.mrf.mxu0
        %v3279 = vadd.f32 0.0, %v3278
        %v3280 = vpop.f32.mrf.mxu0
        %v3281 = vadd.f32 0.0, %v3280
        %v3282 = vpop.f32.mrf.mxu0
        %v3283 = vadd.f32 0.0, %v3282
        %v3284 = vpop.f32.mrf.mxu0
        %v3285 = vadd.f32 0.0, %v3284
        %3286 = vdwg.mxu0
        %3287 = vmatprep.subr.bf16.mxu0 %v2865
        %3288 = vmatpush1.bf16.msra.mxu0 %v2864
        %3289 = vmatprep.subr.bf16.mxu0 %v2853
        %3290 = vmatpush1.bf16.msra.mxu0 %v2852
        %3291 = vmatprep.subr.bf16.mxu0 %v2841
        %3292 = vmatpush1.bf16.msra.mxu0 %v2840
        %3293 = vmatprep.subr.bf16.mxu0 %v2829
        %3294 = vmatpush1.bf16.msra.mxu0 %v2828
        %3295 = vmatprep.subr.bf16.mxu0 %v2817
        %3296 = vmatpush1.bf16.msra.mxu0 %v2816
        %3297 = vmatprep.subr.bf16.mxu0 %v2805
        %3298 = vmatpush1.bf16.msra.mxu0 %v2804
        %3299 = vmatprep.subr.bf16.mxu0 %v2793
        %3300 = vmatpush1.bf16.msra.mxu0 %v2792
        %3301 = vmatprep.subr.bf16.mxu0 %v2781
        %3302 = vmatpush1.bf16.msra.mxu0 %v2780
        %3303 = vmatprep.subr.bf16.mxu0 %v2961
        %3304 = vmatpush2.bf16.msra.mxu0 %v2960
        %3305 = vmatprep.subr.bf16.mxu0 %v2949
        %3306 = vmatpush2.bf16.msra.mxu0 %v2948
        %3307 = vmatprep.subr.bf16.mxu0 %v2937
        %3308 = vmatpush2.bf16.msra.mxu0 %v2936
        %3309 = vmatprep.subr.bf16.mxu0 %v2925
        %3310 = vmatpush2.bf16.msra.mxu0 %v2924
        %3311 = vmatprep.subr.bf16.mxu0 %v2913
        %3312 = vmatpush2.bf16.msra.mxu0 %v2912
        %3313 = vmatprep.subr.bf16.mxu0 %v2901
        %3314 = vmatpush2.bf16.msra.mxu0 %v2900
        %3315 = vmatprep.subr.bf16.mxu0 %v2889
        %3316 = vmatpush2.bf16.msra.mxu0 %v2888
        %3317 = vmatprep.subr.bf16.mxu0 %v2877
        %3318 = vmatpush2.bf16.msra.mxu0 %v2876
        %3319 = vmatprep.mubr.bf16.mxu0 %v2005
        %3320 = vmatmul.mubr.bf16.gmra.mxu0 %v2004
        %v3321 = vpop.f32.mrf.mxu0
        %v3322 = vadd.f32 0.0, %v3321
        %v3323 = vpop.f32.mrf.mxu0
        %v3324 = vadd.f32 0.0, %v3323
        %v3325 = vpop.f32.mrf.mxu0
        %v3326 = vadd.f32 0.0, %v3325
        %v3327 = vpop.f32.mrf.mxu0
        %v3328 = vadd.f32 0.0, %v3327
        %3329 = vdwg.mxu0
        %3330 = vmatprep.subr.bf16.mxu0 %v2867
        %3331 = vmatpush1.bf16.msra.mxu0 %v2866
        %3332 = vmatprep.subr.bf16.mxu0 %v2855
        %3333 = vmatpush1.bf16.msra.mxu0 %v2854
        %3334 = vmatprep.subr.bf16.mxu0 %v2843
        %3335 = vmatpush1.bf16.msra.mxu0 %v2842
        %3336 = vmatprep.subr.bf16.mxu0 %v2831
        %3337 = vmatpush1.bf16.msra.mxu0 %v2830
        %3338 = vmatprep.subr.bf16.mxu0 %v2819
        %3339 = vmatpush1.bf16.msra.mxu0 %v2818
        %3340 = vmatprep.subr.bf16.mxu0 %v2807
        %3341 = vmatpush1.bf16.msra.mxu0 %v2806
        %3342 = vmatprep.subr.bf16.mxu0 %v2795
        %3343 = vmatpush1.bf16.msra.mxu0 %v2794
        %3344 = vmatprep.subr.bf16.mxu0 %v2783
        %3345 = vmatpush1.bf16.msra.mxu0 %v2782
        %3346 = vmatprep.subr.bf16.mxu0 %v2963
        %3347 = vmatpush2.bf16.msra.mxu0 %v2962
        %3348 = vmatprep.subr.bf16.mxu0 %v2951
        %3349 = vmatpush2.bf16.msra.mxu0 %v2950
        %3350 = vmatprep.subr.bf16.mxu0 %v2939
        %3351 = vmatpush2.bf16.msra.mxu0 %v2938
        %3352 = vmatprep.subr.bf16.mxu0 %v2927
        %3353 = vmatpush2.bf16.msra.mxu0 %v2926
        %3354 = vmatprep.subr.bf16.mxu0 %v2915
        %3355 = vmatpush2.bf16.msra.mxu0 %v2914
        %3356 = vmatprep.subr.bf16.mxu0 %v2903
        %3357 = vmatpush2.bf16.msra.mxu0 %v2902
        %3358 = vmatprep.subr.bf16.mxu0 %v2891
        %3359 = vmatpush2.bf16.msra.mxu0 %v2890
        %3360 = vmatprep.subr.bf16.mxu0 %v2879
        %3361 = vmatpush2.bf16.msra.mxu0 %v2878
        %3362 = vmatprep.mubr.bf16.mxu0 %v2005
        %3363 = vmatmul.mubr.bf16.gmra.mxu0 %v2004
        %v3364 = vpop.f32.mrf.mxu0
        %v3365 = vadd.f32 0.0, %v3364
        %v3366 = vpop.f32.mrf.mxu0
        %v3367 = vadd.f32 0.0, %v3366
        %v3368 = vpop.f32.mrf.mxu0
        %v3369 = vadd.f32 0.0, %v3368
        %v3370 = vpop.f32.mrf.mxu0
        %v3371 = vadd.f32 0.0, %v3370
        %3372 = vdwg.mxu0
        %3373 = vmatprep.subr.bf16.mxu0 %v2869
        %3374 = vmatpush1.bf16.msra.mxu0 %v2868
        %3375 = vmatprep.subr.bf16.mxu0 %v2857
        %3376 = vmatpush1.bf16.msra.mxu0 %v2856
        %3377 = vmatprep.subr.bf16.mxu0 %v2845
        %3378 = vmatpush1.bf16.msra.mxu0 %v2844
        %3379 = vmatprep.subr.bf16.mxu0 %v2833
        %3380 = vmatpush1.bf16.msra.mxu0 %v2832
        %3381 = vmatprep.subr.bf16.mxu0 %v2821
        %3382 = vmatpush1.bf16.msra.mxu0 %v2820
        %3383 = vmatprep.subr.bf16.mxu0 %v2809
        %3384 = vmatpush1.bf16.msra.mxu0 %v2808
        %3385 = vmatprep.subr.bf16.mxu0 %v2797
        %3386 = vmatpush1.bf16.msra.mxu0 %v2796
        %3387 = vmatprep.subr.bf16.mxu0 %v2785
        %3388 = vmatpush1.bf16.msra.mxu0 %v2784
        %3389 = vmatprep.subr.bf16.mxu0 %v2965
        %3390 = vmatpush2.bf16.msra.mxu0 %v2964
        %3391 = vmatprep.subr.bf16.mxu0 %v2953
        %3392 = vmatpush2.bf16.msra.mxu0 %v2952
        %3393 = vmatprep.subr.bf16.mxu0 %v2941
        %3394 = vmatpush2.bf16.msra.mxu0 %v2940
        %3395 = vmatprep.subr.bf16.mxu0 %v2929
        %3396 = vmatpush2.bf16.msra.mxu0 %v2928
        %3397 = vmatprep.subr.bf16.mxu0 %v2917
        %3398 = vmatpush2.bf16.msra.mxu0 %v2916
        %3399 = vmatprep.subr.bf16.mxu0 %v2905
        %3400 = vmatpush2.bf16.msra.mxu0 %v2904
        %3401 = vmatprep.subr.bf16.mxu0 %v2893
        %3402 = vmatpush2.bf16.msra.mxu0 %v2892
        %3403 = vmatprep.subr.bf16.mxu0 %v2881
        %3404 = vmatpush2.bf16.msra.mxu0 %v2880
        %3405 = vmatprep.mubr.bf16.mxu0 %v2005
        %3406 = vmatmul.mubr.bf16.gmra.mxu0 %v2004
        %v3407 = vpop.f32.mrf.mxu0
        %v3408 = vadd.f32 0.0, %v3407
        %v3409 = vpop.f32.mrf.mxu0
        %v3410 = vadd.f32 0.0, %v3409
        %v3411 = vpop.f32.mrf.mxu0
        %v3412 = vadd.f32 0.0, %v3411
        %v3413 = vpop.f32.mrf.mxu0
        %v3414 = vadd.f32 0.0, %v3413
        %3415 = vdwg.mxu0
        %v3416 = vxor.u32 %v3193, 2147483648
        %v3417 = vxor.u32 %v3195, 2147483648
        %v3418 = vxor.u32 %v3236, 2147483648
        %v3419 = vxor.u32 %v3238, 2147483648
        %v3420 = vxor.u32 %v3279, 2147483648
        %v3421 = vxor.u32 %v3281, 2147483648
        %v3422 = vxor.u32 %v3197, 2147483648
        %v3423 = vxor.u32 %v3199, 2147483648
        %v3424 = vxor.u32 %v3240, 2147483648
        %v3425 = vxor.u32 %v3242, 2147483648
        %v3426 = vxor.u32 %v3283, 2147483648
        %v3427 = vxor.u32 %v3285, 2147483648
        %v3428 = vmul.f32 %v3416, 1.442695
        %v3429 = vpow.pop %v3428
        %v3430 = vmul.f32 %v3417, 1.442695
        %v3431 = vpow.pop %v3430
        %v3432 = vmul.f32 %v3418, 1.442695
        %v3433 = vpow.pop %v3432
        %v3434 = vmul.f32 %v3419, 1.442695
        %v3435 = vpow.pop %v3434
        %v3436 = vmul.f32 %v3420, 1.442695
        %v3437 = vpow.pop %v3436
        %v3438 = vmul.f32 %v3421, 1.442695
        %v3439 = vpow.pop %v3438
        %v3440 = vmul.f32 %v3422, 1.442695
        %v3441 = vpow.pop %v3440
        %v3442 = vmul.f32 %v3423, 1.442695
        %v3443 = vpow.pop %v3442
        %v3444 = vmul.f32 %v3424, 1.442695
        %v3445 = vpow.pop %v3444
        %v3446 = vmul.f32 %v3425, 1.442695
        %v3447 = vpow.pop %v3446
        %v3448 = vmul.f32 %v3426, 1.442695
        %v3449 = vpow.pop %v3448
        %v3450 = vmul.f32 %v3427, 1.442695
        %v3451 = vpow.pop %v3450
        %v3452 = vadd.f32 %v3429, 1.0
        %v3453 = vadd.f32 %v3431, 1.0
        %v3454 = vadd.f32 %v3433, 1.0
        %v3455 = vadd.f32 %v3435, 1.0
        %v3456 = vadd.f32 %v3437, 1.0
        %v3457 = vadd.f32 %v3439, 1.0
        %v3458 = vadd.f32 %v3441, 1.0
        %v3459 = vadd.f32 %v3443, 1.0
        %v3460 = vadd.f32 %v3445, 1.0
        %v3461 = vadd.f32 %v3447, 1.0
        %v3462 = vadd.f32 %v3449, 1.0
        %v3463 = vadd.f32 %v3451, 1.0
        %v3464 = vrcp.pop %v3452
        %v3465 = vmul.f32 1.0, %v3464
        %v3466 = vrcp.pop %v3453
        %v3467 = vmul.f32 1.0, %v3466
        %v3468 = vrcp.pop %v3454
        %v3469 = vmul.f32 1.0, %v3468
        %v3470 = vrcp.pop %v3455
        %v3471 = vmul.f32 1.0, %v3470
        %v3472 = vrcp.pop %v3456
        %v3473 = vmul.f32 1.0, %v3472
        %v3474 = vrcp.pop %v3457
        %v3475 = vmul.f32 1.0, %v3474
        %v3476 = vrcp.pop %v3458
        %v3477 = vmul.f32 1.0, %v3476
        %v3478 = vrcp.pop %v3459
        %v3479 = vmul.f32 1.0, %v3478
        %v3480 = vrcp.pop %v3460
        %v3481 = vmul.f32 1.0, %v3480
        %v3482 = vrcp.pop %v3461
        %v3483 = vmul.f32 1.0, %v3482
        %v3484 = vrcp.pop %v3462
        %v3485 = vmul.f32 1.0, %v3484
        %v3486 = vrcp.pop %v3463
        %v3487 = vmul.f32 1.0, %v3486
        %v3488 = vmul.f32 %v3193, %v3465
        %v3489 = vmul.f32 %v3195, %v3467
        %v3490 = vmul.f32 %v3236, %v3469
        %v3491 = vmul.f32 %v3238, %v3471
        %v3492 = vmul.f32 %v3279, %v3473
        %v3493 = vmul.f32 %v3281, %v3475
        %v3494 = vmul.f32 %v3197, %v3477
        %v3495 = vmul.f32 %v3199, %v3479
        %v3496 = vmul.f32 %v3240, %v3481
        %v3497 = vmul.f32 %v3242, %v3483
        %v3498 = vmul.f32 %v3283, %v3485
        %v3499 = vmul.f32 %v3285, %v3487
        %v3500 = vmul.f32 %v3488, %v3322
        %v3501 = vmul.f32 %v3489, %v3324
        %v3502 = vmul.f32 %v3490, %v3365
        %v3503 = vmul.f32 %v3491, %v3367
        %v3504 = vmul.f32 %v3492, %v3408
        %v3505 = vmul.f32 %v3493, %v3410
        %v3506 = vmul.f32 %v3494, %v3326
        %v3507 = vmul.f32 %v3495, %v3328
        %v3508 = vmul.f32 %v3496, %v3369
        %v3509 = vmul.f32 %v3497, %v3371
        %v3510 = vmul.f32 %v3498, %v3412
        %v3511 = vmul.f32 %v3499, %v3414
        %v3512 = vpack.c.bf16 %v3506, %v3500
        %v3513 = vpack.c.bf16 %v3507, %v3501
        %v3514 = vpack.c.bf16 %v3508, %v3502
        %v3515 = vpack.c.bf16 %v3509, %v3503
        %v3516 = vpack.c.bf16 %v3510, %v3504
        %v3517 = vpack.c.bf16 %v3511, %v3505
        %v3518 = vld [vmem:[%s554] sm:$0xff]
        %v3519 = vld [vmem:[%s554 + $0x8] sm:$0xff]
        %v3520 = vld [vmem:[%s554 + $0x10] sm:$0xff]
        %v3521 = vld [vmem:[%s554 + $0x18] sm:$0xff]
        %v3522 = vld [vmem:[%s554 + $0x20] sm:$0xff]
        %v3523 = vld [vmem:[%s554 + $0x28] sm:$0xff]
        %v3524 = vld [vmem:[%s554 + $0x30] sm:$0xff]
        %v3525 = vld [vmem:[%s554 + $0x38] sm:$0xff]
        %v3526 = vld [vmem:[%s554 + $0x40] sm:$0xff]
        %v3527 = vld [vmem:[%s554 + $0x48] sm:$0xff]
        %v3528 = vld [vmem:[%s554 + $0x50] sm:$0xff]
        %v3529 = vld [vmem:[%s554 + $0x58] sm:$0xff]
        %v3530 = vld [vmem:[%s554 + $0x60] sm:$0xff]
        %v3531 = vld [vmem:[%s554 + $0x68] sm:$0xff]
        %v3532 = vld [vmem:[%s554 + $0x70] sm:$0xff]
        %v3533 = vld [vmem:[%s554 + $0x78] sm:$0xff]
        %v3534 = vld [vmem:[%s554 + $0x80] sm:$0xff]
        %v3535 = vld [vmem:[%s554 + $0x88] sm:$0xff]
        %v3536 = vld [vmem:[%s554 + $0x90] sm:$0xff]
        %v3537 = vld [vmem:[%s554 + $0x98] sm:$0xff]
        %v3538 = vld [vmem:[%s554 + $0xa0] sm:$0xff]
        %v3539 = vld [vmem:[%s554 + $0xa8] sm:$0xff]
        %v3540 = vld [vmem:[%s554 + $0xb0] sm:$0xff]
        %v3541 = vld [vmem:[%s554 + $0xb8] sm:$0xff]
        %v3542 = vld [vmem:[%s554 + $0xc0] sm:$0xff]
        %v3543 = vld [vmem:[%s554 + $0xc8] sm:$0xff]
        %v3544 = vld [vmem:[%s554 + $0xd0] sm:$0xff]
        %v3545 = vld [vmem:[%s554 + $0xd8] sm:$0xff]
        %v3546 = vld [vmem:[%s554 + $0xe0] sm:$0xff]
        %v3547 = vld [vmem:[%s554 + $0xe8] sm:$0xff]
        %v3548 = vld [vmem:[%s554 + $0xf0] sm:$0xff]
        %v3549 = vld [vmem:[%s554 + $0xf8] sm:$0xff]
        %v3550 = vld [vmem:[%s554 + $0x100] sm:$0xff]
        %v3551 = vld [vmem:[%s554 + $0x108] sm:$0xff]
        %v3552 = vld [vmem:[%s554 + $0x110] sm:$0xff]
        %v3553 = vld [vmem:[%s554 + $0x118] sm:$0xff]
        %v3554 = vld [vmem:[%s554 + $0x120] sm:$0xff]
        %v3555 = vld [vmem:[%s554 + $0x128] sm:$0xff]
        %v3556 = vld [vmem:[%s554 + $0x130] sm:$0xff]
        %v3557 = vld [vmem:[%s554 + $0x138] sm:$0xff]
        %v3558 = vld [vmem:[%s554 + $0x140] sm:$0xff]
        %v3559 = vld [vmem:[%s554 + $0x148] sm:$0xff]
        %v3560 = vld [vmem:[%s554 + $0x150] sm:$0xff]
        %v3561 = vld [vmem:[%s554 + $0x158] sm:$0xff]
        %v3562 = vld [vmem:[%s554 + $0x160] sm:$0xff]
        %v3563 = vld [vmem:[%s554 + $0x168] sm:$0xff]
        %v3564 = vld [vmem:[%s554 + $0x170] sm:$0xff]
        %v3565 = vld [vmem:[%s554 + $0x178] sm:$0xff]
        %v3566 = vld [vmem:[%s554 + $0x180] sm:$0xff]
        %v3567 = vld [vmem:[%s554 + $0x188] sm:$0xff]
        %v3568 = vld [vmem:[%s554 + $0x190] sm:$0xff]
        %v3569 = vld [vmem:[%s554 + $0x198] sm:$0xff]
        %v3570 = vld [vmem:[%s554 + $0x1a0] sm:$0xff]
        %v3571 = vld [vmem:[%s554 + $0x1a8] sm:$0xff]
        %v3572 = vld [vmem:[%s554 + $0x1b0] sm:$0xff]
        %v3573 = vld [vmem:[%s554 + $0x1b8] sm:$0xff]
        %v3574 = vld [vmem:[%s554 + $0x1c0] sm:$0xff]
        %v3575 = vld [vmem:[%s554 + $0x1c8] sm:$0xff]
        %v3576 = vld [vmem:[%s554 + $0x1d0] sm:$0xff]
        %v3577 = vld [vmem:[%s554 + $0x1d8] sm:$0xff]
        %v3578 = vld [vmem:[%s554 + $0x1e0] sm:$0xff]
        %v3579 = vld [vmem:[%s554 + $0x1e8] sm:$0xff]
        %v3580 = vld [vmem:[%s554 + $0x1f0] sm:$0xff]
        %v3581 = vld [vmem:[%s554 + $0x1f8] sm:$0xff]
        %v3582 = vld [vmem:[%s554 + $0x200] sm:$0xff]
        %v3583 = vld [vmem:[%s554 + $0x208] sm:$0xff]
        %v3584 = vld [vmem:[%s554 + $0x210] sm:$0xff]
        %v3585 = vld [vmem:[%s554 + $0x218] sm:$0xff]
        %v3586 = vld [vmem:[%s554 + $0x220] sm:$0xff]
        %v3587 = vld [vmem:[%s554 + $0x228] sm:$0xff]
        %v3588 = vld [vmem:[%s554 + $0x230] sm:$0xff]
        %v3589 = vld [vmem:[%s554 + $0x238] sm:$0xff]
        %v3590 = vld [vmem:[%s554 + $0x240] sm:$0xff]
        %v3591 = vld [vmem:[%s554 + $0x248] sm:$0xff]
        %v3592 = vld [vmem:[%s554 + $0x250] sm:$0xff]
        %v3593 = vld [vmem:[%s554 + $0x258] sm:$0xff]
        %v3594 = vld [vmem:[%s554 + $0x260] sm:$0xff]
        %v3595 = vld [vmem:[%s554 + $0x268] sm:$0xff]
        %v3596 = vld [vmem:[%s554 + $0x270] sm:$0xff]
        %v3597 = vld [vmem:[%s554 + $0x278] sm:$0xff]
        %v3598 = vld [vmem:[%s554 + $0x280] sm:$0xff]
        %v3599 = vld [vmem:[%s554 + $0x288] sm:$0xff]
        %v3600 = vld [vmem:[%s554 + $0x290] sm:$0xff]
        %v3601 = vld [vmem:[%s554 + $0x298] sm:$0xff]
        %v3602 = vld [vmem:[%s554 + $0x2a0] sm:$0xff]
        %v3603 = vld [vmem:[%s554 + $0x2a8] sm:$0xff]
        %v3604 = vld [vmem:[%s554 + $0x2b0] sm:$0xff]
        %v3605 = vld [vmem:[%s554 + $0x2b8] sm:$0xff]
        %v3606 = vld [vmem:[%s554 + $0x2c0] sm:$0xff]
        %v3607 = vld [vmem:[%s554 + $0x2c8] sm:$0xff]
        %v3608 = vld [vmem:[%s554 + $0x2d0] sm:$0xff]
        %v3609 = vld [vmem:[%s554 + $0x2d8] sm:$0xff]
        %v3610 = vld [vmem:[%s554 + $0x2e0] sm:$0xff]
        %v3611 = vld [vmem:[%s554 + $0x2e8] sm:$0xff]
        %v3612 = vld [vmem:[%s554 + $0x2f0] sm:$0xff]
        %v3613 = vld [vmem:[%s554 + $0x2f8] sm:$0xff]
        %v3710 = vunpack.c.l.b16 %v3518
        %v3711 = vunpack.c.h.b16 %v3518
        %v3712 = vunpack.c.l.b16 %v3519
        %v3713 = vunpack.c.h.b16 %v3519
        %v3714 = vunpack.c.l.b16 %v3520
        %v3715 = vunpack.c.h.b16 %v3520
        %v3716 = vunpack.c.l.b16 %v3521
        %v3717 = vunpack.c.h.b16 %v3521
        %v3718 = vunpack.c.l.b16 %v3522
        %v3719 = vunpack.c.h.b16 %v3522
        %v3720 = vunpack.c.l.b16 %v3523
        %v3721 = vunpack.c.h.b16 %v3523
        %v3722 = vunpack.c.l.b16 %v3524
        %v3723 = vunpack.c.h.b16 %v3524
        %v3724 = vunpack.c.l.b16 %v3525
        %v3725 = vunpack.c.h.b16 %v3525
        %v3726 = vunpack.c.l.b16 %v3526
        %v3727 = vunpack.c.h.b16 %v3526
        %v3728 = vunpack.c.l.b16 %v3527
        %v3729 = vunpack.c.h.b16 %v3527
        %v3730 = vunpack.c.l.b16 %v3528
        %v3731 = vunpack.c.h.b16 %v3528
        %v3732 = vunpack.c.l.b16 %v3529
        %v3733 = vunpack.c.h.b16 %v3529
        %v3734 = vunpack.c.l.b16 %v3530
        %v3735 = vunpack.c.h.b16 %v3530
        %v3736 = vunpack.c.l.b16 %v3531
        %v3737 = vunpack.c.h.b16 %v3531
        %v3738 = vunpack.c.l.b16 %v3532
        %v3739 = vunpack.c.h.b16 %v3532
        %v3740 = vunpack.c.l.b16 %v3533
        %v3741 = vunpack.c.h.b16 %v3533
        %v3742 = vunpack.c.l.b16 %v3534
        %v3743 = vunpack.c.h.b16 %v3534
        %v3744 = vunpack.c.l.b16 %v3535
        %v3745 = vunpack.c.h.b16 %v3535
        %v3746 = vunpack.c.l.b16 %v3536
        %v3747 = vunpack.c.h.b16 %v3536
        %v3748 = vunpack.c.l.b16 %v3537
        %v3749 = vunpack.c.h.b16 %v3537
        %v3750 = vunpack.c.l.b16 %v3538
        %v3751 = vunpack.c.h.b16 %v3538
        %v3752 = vunpack.c.l.b16 %v3539
        %v3753 = vunpack.c.h.b16 %v3539
        %v3754 = vunpack.c.l.b16 %v3540
        %v3755 = vunpack.c.h.b16 %v3540
        %v3756 = vunpack.c.l.b16 %v3541
        %v3757 = vunpack.c.h.b16 %v3541
        %v3758 = vunpack.c.l.b16 %v3542
        %v3759 = vunpack.c.h.b16 %v3542
        %v3760 = vunpack.c.l.b16 %v3543
        %v3761 = vunpack.c.h.b16 %v3543
        %v3762 = vunpack.c.l.b16 %v3544
        %v3763 = vunpack.c.h.b16 %v3544
        %v3764 = vunpack.c.l.b16 %v3545
        %v3765 = vunpack.c.h.b16 %v3545
        %v3766 = vunpack.c.l.b16 %v3546
        %v3767 = vunpack.c.h.b16 %v3546
        %v3768 = vunpack.c.l.b16 %v3547
        %v3769 = vunpack.c.h.b16 %v3547
        %v3770 = vunpack.c.l.b16 %v3548
        %v3771 = vunpack.c.h.b16 %v3548
        %v3772 = vunpack.c.l.b16 %v3549
        %v3773 = vunpack.c.h.b16 %v3549
        %v3774 = vunpack.c.l.b16 %v3550
        %v3775 = vunpack.c.h.b16 %v3550
        %v3776 = vunpack.c.l.b16 %v3551
        %v3777 = vunpack.c.h.b16 %v3551
        %v3778 = vunpack.c.l.b16 %v3552
        %v3779 = vunpack.c.h.b16 %v3552
        %v3780 = vunpack.c.l.b16 %v3553
        %v3781 = vunpack.c.h.b16 %v3553
        %v3782 = vunpack.c.l.b16 %v3554
        %v3783 = vunpack.c.h.b16 %v3554
        %v3784 = vunpack.c.l.b16 %v3555
        %v3785 = vunpack.c.h.b16 %v3555
        %v3786 = vunpack.c.l.b16 %v3556
        %v3787 = vunpack.c.h.b16 %v3556
        %v3788 = vunpack.c.l.b16 %v3557
        %v3789 = vunpack.c.h.b16 %v3557
        %v3790 = vunpack.c.l.b16 %v3558
        %v3791 = vunpack.c.h.b16 %v3558
        %v3792 = vunpack.c.l.b16 %v3559
        %v3793 = vunpack.c.h.b16 %v3559
        %v3794 = vunpack.c.l.b16 %v3560
        %v3795 = vunpack.c.h.b16 %v3560
        %v3796 = vunpack.c.l.b16 %v3561
        %v3797 = vunpack.c.h.b16 %v3561
        %v3798 = vunpack.c.l.b16 %v3562
        %v3799 = vunpack.c.h.b16 %v3562
        %v3800 = vunpack.c.l.b16 %v3563
        %v3801 = vunpack.c.h.b16 %v3563
        %v3802 = vunpack.c.l.b16 %v3564
        %v3803 = vunpack.c.h.b16 %v3564
        %v3804 = vunpack.c.l.b16 %v3565
        %v3805 = vunpack.c.h.b16 %v3565
        %v3806 = vunpack.c.l.b16 %v3566
        %v3807 = vunpack.c.h.b16 %v3566
        %v3808 = vunpack.c.l.b16 %v3567
        %v3809 = vunpack.c.h.b16 %v3567
        %v3810 = vunpack.c.l.b16 %v3568
        %v3811 = vunpack.c.h.b16 %v3568
        %v3812 = vunpack.c.l.b16 %v3569
        %v3813 = vunpack.c.h.b16 %v3569
        %v3814 = vunpack.c.l.b16 %v3570
        %v3815 = vunpack.c.h.b16 %v3570
        %v3816 = vunpack.c.l.b16 %v3571
        %v3817 = vunpack.c.h.b16 %v3571
        %v3818 = vunpack.c.l.b16 %v3572
        %v3819 = vunpack.c.h.b16 %v3572
        %v3820 = vunpack.c.l.b16 %v3573
        %v3821 = vunpack.c.h.b16 %v3573
        %v3822 = vunpack.c.l.b16 %v3574
        %v3823 = vunpack.c.h.b16 %v3574
        %v3824 = vunpack.c.l.b16 %v3575
        %v3825 = vunpack.c.h.b16 %v3575
        %v3826 = vunpack.c.l.b16 %v3576
        %v3827 = vunpack.c.h.b16 %v3576
        %v3828 = vunpack.c.l.b16 %v3577
        %v3829 = vunpack.c.h.b16 %v3577
        %v3830 = vunpack.c.l.b16 %v3578
        %v3831 = vunpack.c.h.b16 %v3578
        %v3832 = vunpack.c.l.b16 %v3579
        %v3833 = vunpack.c.h.b16 %v3579
        %v3834 = vunpack.c.l.b16 %v3580
        %v3835 = vunpack.c.h.b16 %v3580
        %v3836 = vunpack.c.l.b16 %v3581
        %v3837 = vunpack.c.h.b16 %v3581
        %v3838 = vunpack.c.l.b16 %v3582
        %v3839 = vunpack.c.h.b16 %v3582
        %v3840 = vunpack.c.l.b16 %v3583
        %v3841 = vunpack.c.h.b16 %v3583
        %v3842 = vunpack.c.l.b16 %v3584
        %v3843 = vunpack.c.h.b16 %v3584
        %v3844 = vunpack.c.l.b16 %v3585
        %v3845 = vunpack.c.h.b16 %v3585
        %v3846 = vunpack.c.l.b16 %v3586
        %v3847 = vunpack.c.h.b16 %v3586
        %v3848 = vunpack.c.l.b16 %v3587
        %v3849 = vunpack.c.h.b16 %v3587
        %v3850 = vunpack.c.l.b16 %v3588
        %v3851 = vunpack.c.h.b16 %v3588
        %v3852 = vunpack.c.l.b16 %v3589
        %v3853 = vunpack.c.h.b16 %v3589
        %v3854 = vunpack.c.l.b16 %v3590
        %v3855 = vunpack.c.h.b16 %v3590
        %v3856 = vunpack.c.l.b16 %v3591
        %v3857 = vunpack.c.h.b16 %v3591
        %v3858 = vunpack.c.l.b16 %v3592
        %v3859 = vunpack.c.h.b16 %v3592
        %v3860 = vunpack.c.l.b16 %v3593
        %v3861 = vunpack.c.h.b16 %v3593
        %v3862 = vunpack.c.l.b16 %v3594
        %v3863 = vunpack.c.h.b16 %v3594
        %v3864 = vunpack.c.l.b16 %v3595
        %v3865 = vunpack.c.h.b16 %v3595
        %v3866 = vunpack.c.l.b16 %v3596
        %v3867 = vunpack.c.h.b16 %v3596
        %v3868 = vunpack.c.l.b16 %v3597
        %v3869 = vunpack.c.h.b16 %v3597
        %v3870 = vunpack.c.l.b16 %v3598
        %v3871 = vunpack.c.h.b16 %v3598
        %v3872 = vunpack.c.l.b16 %v3599
        %v3873 = vunpack.c.h.b16 %v3599
        %v3874 = vunpack.c.l.b16 %v3600
        %v3875 = vunpack.c.h.b16 %v3600
        %v3876 = vunpack.c.l.b16 %v3601
        %v3877 = vunpack.c.h.b16 %v3601
        %v3878 = vunpack.c.l.b16 %v3602
        %v3879 = vunpack.c.h.b16 %v3602
        %v3880 = vunpack.c.l.b16 %v3603
        %v3881 = vunpack.c.h.b16 %v3603
        %v3882 = vunpack.c.l.b16 %v3604
        %v3883 = vunpack.c.h.b16 %v3604
        %v3884 = vunpack.c.l.b16 %v3605
        %v3885 = vunpack.c.h.b16 %v3605
        %v3886 = vunpack.c.l.b16 %v3606
        %v3887 = vunpack.c.h.b16 %v3606
        %v3888 = vunpack.c.l.b16 %v3607
        %v3889 = vunpack.c.h.b16 %v3607
        %v3890 = vunpack.c.l.b16 %v3608
        %v3891 = vunpack.c.h.b16 %v3608
        %v3892 = vunpack.c.l.b16 %v3609
        %v3893 = vunpack.c.h.b16 %v3609
        %v3894 = vunpack.c.l.b16 %v3610
        %v3895 = vunpack.c.h.b16 %v3610
        %v3896 = vunpack.c.l.b16 %v3611
        %v3897 = vunpack.c.h.b16 %v3611
        %v3898 = vunpack.c.l.b16 %v3612
        %v3899 = vunpack.c.h.b16 %v3612
        %v3900 = vunpack.c.l.b16 %v3613
        %v3901 = vunpack.c.h.b16 %v3613
        %v3902 = vpack.c.b16 %v3712, %v3710
        %v3903 = vpack.c.b16 %v3713, %v3711
        %v3904 = vpack.c.b16 %v3716, %v3714
        %v3905 = vpack.c.b16 %v3717, %v3715
        %v3906 = vpack.c.b16 %v3720, %v3718
        %v3907 = vpack.c.b16 %v3721, %v3719
        %v3908 = vpack.c.b16 %v3724, %v3722
        %v3909 = vpack.c.b16 %v3725, %v3723
        %v3910 = vpack.c.b16 %v3728, %v3726
        %v3911 = vpack.c.b16 %v3729, %v3727
        %v3912 = vpack.c.b16 %v3732, %v3730
        %v3913 = vpack.c.b16 %v3733, %v3731
        %v3914 = vpack.c.b16 %v3736, %v3734
        %v3915 = vpack.c.b16 %v3737, %v3735
        %v3916 = vpack.c.b16 %v3740, %v3738
        %v3917 = vpack.c.b16 %v3741, %v3739
        %v3918 = vpack.c.b16 %v3744, %v3742
        %v3919 = vpack.c.b16 %v3745, %v3743
        %v3920 = vpack.c.b16 %v3748, %v3746
        %v3921 = vpack.c.b16 %v3749, %v3747
        %v3922 = vpack.c.b16 %v3752, %v3750
        %v3923 = vpack.c.b16 %v3753, %v3751
        %v3924 = vpack.c.b16 %v3756, %v3754
        %v3925 = vpack.c.b16 %v3757, %v3755
        %v3926 = vpack.c.b16 %v3760, %v3758
        %v3927 = vpack.c.b16 %v3761, %v3759
        %v3928 = vpack.c.b16 %v3764, %v3762
        %v3929 = vpack.c.b16 %v3765, %v3763
        %v3930 = vpack.c.b16 %v3768, %v3766
        %v3931 = vpack.c.b16 %v3769, %v3767
        %v3932 = vpack.c.b16 %v3772, %v3770
        %v3933 = vpack.c.b16 %v3773, %v3771
        %v3934 = vpack.c.b16 %v3776, %v3774
        %v3935 = vpack.c.b16 %v3777, %v3775
        %v3936 = vpack.c.b16 %v3780, %v3778
        %v3937 = vpack.c.b16 %v3781, %v3779
        %v3938 = vpack.c.b16 %v3784, %v3782
        %v3939 = vpack.c.b16 %v3785, %v3783
        %v3940 = vpack.c.b16 %v3788, %v3786
        %v3941 = vpack.c.b16 %v3789, %v3787
        %v3942 = vpack.c.b16 %v3792, %v3790
        %v3943 = vpack.c.b16 %v3793, %v3791
        %v3944 = vpack.c.b16 %v3796, %v3794
        %v3945 = vpack.c.b16 %v3797, %v3795
        %v3946 = vpack.c.b16 %v3800, %v3798
        %v3947 = vpack.c.b16 %v3801, %v3799
        %v3948 = vpack.c.b16 %v3804, %v3802
        %v3949 = vpack.c.b16 %v3805, %v3803
        %v3950 = vpack.c.b16 %v3808, %v3806
        %v3951 = vpack.c.b16 %v3809, %v3807
        %v3952 = vpack.c.b16 %v3812, %v3810
        %v3953 = vpack.c.b16 %v3813, %v3811
        %v3954 = vpack.c.b16 %v3816, %v3814
        %v3955 = vpack.c.b16 %v3817, %v3815
        %v3956 = vpack.c.b16 %v3820, %v3818
        %v3957 = vpack.c.b16 %v3821, %v3819
        %v3958 = vpack.c.b16 %v3824, %v3822
        %v3959 = vpack.c.b16 %v3825, %v3823
        %v3960 = vpack.c.b16 %v3828, %v3826
        %v3961 = vpack.c.b16 %v3829, %v3827
        %v3962 = vpack.c.b16 %v3832, %v3830
        %v3963 = vpack.c.b16 %v3833, %v3831
        %v3964 = vpack.c.b16 %v3836, %v3834
        %v3965 = vpack.c.b16 %v3837, %v3835
        %v3966 = vpack.c.b16 %v3840, %v3838
        %v3967 = vpack.c.b16 %v3841, %v3839
        %v3968 = vpack.c.b16 %v3844, %v3842
        %v3969 = vpack.c.b16 %v3845, %v3843
        %v3970 = vpack.c.b16 %v3848, %v3846
        %v3971 = vpack.c.b16 %v3849, %v3847
        %v3972 = vpack.c.b16 %v3852, %v3850
        %v3973 = vpack.c.b16 %v3853, %v3851
        %v3974 = vpack.c.b16 %v3856, %v3854
        %v3975 = vpack.c.b16 %v3857, %v3855
        %v3976 = vpack.c.b16 %v3860, %v3858
        %v3977 = vpack.c.b16 %v3861, %v3859
        %v3978 = vpack.c.b16 %v3864, %v3862
        %v3979 = vpack.c.b16 %v3865, %v3863
        %v3980 = vpack.c.b16 %v3868, %v3866
        %v3981 = vpack.c.b16 %v3869, %v3867
        %v3982 = vpack.c.b16 %v3872, %v3870
        %v3983 = vpack.c.b16 %v3873, %v3871
        %v3984 = vpack.c.b16 %v3876, %v3874
        %v3985 = vpack.c.b16 %v3877, %v3875
        %v3986 = vpack.c.b16 %v3880, %v3878
        %v3987 = vpack.c.b16 %v3881, %v3879
        %v3988 = vpack.c.b16 %v3884, %v3882
        %v3989 = vpack.c.b16 %v3885, %v3883
        %v3990 = vpack.c.b16 %v3888, %v3886
        %v3991 = vpack.c.b16 %v3889, %v3887
        %v3992 = vpack.c.b16 %v3892, %v3890
        %v3993 = vpack.c.b16 %v3893, %v3891
        %v3994 = vpack.c.b16 %v3896, %v3894
        %v3995 = vpack.c.b16 %v3897, %v3895
        %v3996 = vpack.c.b16 %v3900, %v3898
        %v3997 = vpack.c.b16 %v3901, %v3899
        %4094 = vmatprep.subr.bf16.mxu0 %v3917
        %4095 = vmatpush1.bf16.msra.mxu0 %v3916
        %4096 = vmatprep.subr.bf16.mxu0 %v3915
        %4097 = vmatpush1.bf16.msra.mxu0 %v3914
        %4098 = vmatprep.subr.bf16.mxu0 %v3913
        %4099 = vmatpush1.bf16.msra.mxu0 %v3912
        %4100 = vmatprep.subr.bf16.mxu0 %v3911
        %4101 = vmatpush1.bf16.msra.mxu0 %v3910
        %4102 = vmatprep.subr.bf16.mxu0 %v3909
        %4103 = vmatpush1.bf16.msra.mxu0 %v3908
        %4104 = vmatprep.subr.bf16.mxu0 %v3907
        %4105 = vmatpush1.bf16.msra.mxu0 %v3906
        %4106 = vmatprep.subr.bf16.mxu0 %v3905
        %4107 = vmatpush1.bf16.msra.mxu0 %v3904
        %4108 = vmatprep.subr.bf16.mxu0 %v3903
        %4109 = vmatpush1.bf16.msra.mxu0 %v3902
        %4110 = vmatprep.subr.bf16.mxu0 %v3933
        %4111 = vmatpush2.bf16.msra.mxu0 %v3932
        %4112 = vmatprep.subr.bf16.mxu0 %v3931
        %4113 = vmatpush2.bf16.msra.mxu0 %v3930
        %4114 = vmatprep.subr.bf16.mxu0 %v3929
        %4115 = vmatpush2.bf16.msra.mxu0 %v3928
        %4116 = vmatprep.subr.bf16.mxu0 %v3927
        %4117 = vmatpush2.bf16.msra.mxu0 %v3926
        %4118 = vmatprep.subr.bf16.mxu0 %v3925
        %4119 = vmatpush2.bf16.msra.mxu0 %v3924
        %4120 = vmatprep.subr.bf16.mxu0 %v3923
        %4121 = vmatpush2.bf16.msra.mxu0 %v3922
        %4122 = vmatprep.subr.bf16.mxu0 %v3921
        %4123 = vmatpush2.bf16.msra.mxu0 %v3920
        %4124 = vmatprep.subr.bf16.mxu0 %v3919
        %4125 = vmatpush2.bf16.msra.mxu0 %v3918
        %4126 = vmatprep.mubr.bf16.mxu0 %v3513
        %4127 = vmatmul.mubr.bf16.gmra.mxu0 %v3512
        %v4128 = vpop.f32.mrf.mxu0
        %v4129 = vadd.f32 0.0, %v4128
        %v4130 = vpop.f32.mrf.mxu0
        %v4131 = vadd.f32 0.0, %v4130
        %v4132 = vpop.f32.mrf.mxu0
        %v4133 = vadd.f32 0.0, %v4132
        %v4134 = vpop.f32.mrf.mxu0
        %v4135 = vadd.f32 0.0, %v4134
        %4136 = vdwg.mxu0
        %4137 = vmatprep.subr.bf16.mxu0 %v3949
        %4138 = vmatpush1.bf16.msra.mxu0 %v3948
        %4139 = vmatprep.subr.bf16.mxu0 %v3947
        %4140 = vmatpush1.bf16.msra.mxu0 %v3946
        %4141 = vmatprep.subr.bf16.mxu0 %v3945
        %4142 = vmatpush1.bf16.msra.mxu0 %v3944
        %4143 = vmatprep.subr.bf16.mxu0 %v3943
        %4144 = vmatpush1.bf16.msra.mxu0 %v3942
        %4145 = vmatprep.subr.bf16.mxu0 %v3941
        %4146 = vmatpush1.bf16.msra.mxu0 %v3940
        %4147 = vmatprep.subr.bf16.mxu0 %v3939
        %4148 = vmatpush1.bf16.msra.mxu0 %v3938
        %4149 = vmatprep.subr.bf16.mxu0 %v3937
        %4150 = vmatpush1.bf16.msra.mxu0 %v3936
        %4151 = vmatprep.subr.bf16.mxu0 %v3935
        %4152 = vmatpush1.bf16.msra.mxu0 %v3934
        %4153 = vmatprep.subr.bf16.mxu0 %v3965
        %4154 = vmatpush2.bf16.msra.mxu0 %v3964
        %4155 = vmatprep.subr.bf16.mxu0 %v3963
        %4156 = vmatpush2.bf16.msra.mxu0 %v3962
        %4157 = vmatprep.subr.bf16.mxu0 %v3961
        %4158 = vmatpush2.bf16.msra.mxu0 %v3960
        %4159 = vmatprep.subr.bf16.mxu0 %v3959
        %4160 = vmatpush2.bf16.msra.mxu0 %v3958
        %4161 = vmatprep.subr.bf16.mxu0 %v3957
        %4162 = vmatpush2.bf16.msra.mxu0 %v3956
        %4163 = vmatprep.subr.bf16.mxu0 %v3955
        %4164 = vmatpush2.bf16.msra.mxu0 %v3954
        %4165 = vmatprep.subr.bf16.mxu0 %v3953
        %4166 = vmatpush2.bf16.msra.mxu0 %v3952
        %4167 = vmatprep.subr.bf16.mxu0 %v3951
        %4168 = vmatpush2.bf16.msra.mxu0 %v3950
        %4169 = vmatprep.mubr.bf16.mxu0 %v3515
        %4170 = vmatmul.mubr.bf16.gmra.mxu0 %v3514
        %v4171 = vpop.f32.mrf.mxu0
        %v4172 = vadd.f32 %v4129, %v4171
        %v4173 = vpop.f32.mrf.mxu0
        %v4174 = vadd.f32 %v4131, %v4173
        %v4175 = vpop.f32.mrf.mxu0
        %v4176 = vadd.f32 %v4133, %v4175
        %v4177 = vpop.f32.mrf.mxu0
        %v4178 = vadd.f32 %v4135, %v4177
        %4179 = vdwg.mxu0
        %4180 = vmatprep.subr.bf16.mxu0 %v3981
        %4181 = vmatpush1.bf16.msra.mxu0 %v3980
        %4182 = vmatprep.subr.bf16.mxu0 %v3979
        %4183 = vmatpush1.bf16.msra.mxu0 %v3978
        %4184 = vmatprep.subr.bf16.mxu0 %v3977
        %4185 = vmatpush1.bf16.msra.mxu0 %v3976
        %4186 = vmatprep.subr.bf16.mxu0 %v3975
        %4187 = vmatpush1.bf16.msra.mxu0 %v3974
        %4188 = vmatprep.subr.bf16.mxu0 %v3973
        %4189 = vmatpush1.bf16.msra.mxu0 %v3972
        %4190 = vmatprep.subr.bf16.mxu0 %v3971
        %4191 = vmatpush1.bf16.msra.mxu0 %v3970
        %4192 = vmatprep.subr.bf16.mxu0 %v3969
        %4193 = vmatpush1.bf16.msra.mxu0 %v3968
        %4194 = vmatprep.subr.bf16.mxu0 %v3967
        %4195 = vmatpush1.bf16.msra.mxu0 %v3966
        %4196 = vmatprep.subr.bf16.mxu0 %v3997
        %4197 = vmatpush2.bf16.msra.mxu0 %v3996
        %4198 = vmatprep.subr.bf16.mxu0 %v3995
        %4199 = vmatpush2.bf16.msra.mxu0 %v3994
        %4200 = vmatprep.subr.bf16.mxu0 %v3993
        %4201 = vmatpush2.bf16.msra.mxu0 %v3992
        %4202 = vmatprep.subr.bf16.mxu0 %v3991
        %4203 = vmatpush2.bf16.msra.mxu0 %v3990
        %4204 = vmatprep.subr.bf16.mxu0 %v3989
        %4205 = vmatpush2.bf16.msra.mxu0 %v3988
        %4206 = vmatprep.subr.bf16.mxu0 %v3987
        %4207 = vmatpush2.bf16.msra.mxu0 %v3986
        %4208 = vmatprep.subr.bf16.mxu0 %v3985
        %4209 = vmatpush2.bf16.msra.mxu0 %v3984
        %4210 = vmatprep.subr.bf16.mxu0 %v3983
        %4211 = vmatpush2.bf16.msra.mxu0 %v3982
        %4212 = vmatprep.mubr.bf16.mxu0 %v3517
        %4213 = vmatmul.mubr.bf16.gmra.mxu0 %v3516
        %v4214 = vpop.f32.mrf.mxu0
        %v4215 = vadd.f32 %v4172, %v4214
        %v4216 = vpop.f32.mrf.mxu0
        %v4217 = vadd.f32 %v4174, %v4216
        %v4218 = vpop.f32.mrf.mxu0
        %v4219 = vadd.f32 %v4176, %v4218
        %v4220 = vpop.f32.mrf.mxu0
        %v4221 = vadd.f32 %v4178, %v4220
        %4222 = vdwg.mxu0
        %v4223 = vadd.f32 %v1964, %v4215
        %v4224 = vadd.f32 %v1965, %v4217
        %v4225 = vadd.f32 %v1966, %v4219
        %v4226 = vadd.f32 %v1967, %v4221
        %4227 = vst [vmem:[%s618] sm:$0xff] %v4223
        %4228 = vst [vmem:[%s618 + $0x8] sm:$0xff] %v4224
        %4229 = vst [vmem:[%s618 + $0x10] sm:$0xff] %v4225
        %4230 = vst [vmem:[%s618 + $0x18] sm:$0xff] %v4226
        %s4231 = sand.u32 %s280, 1
        %s4232 = scalar_lea.sflag [#allocation4], %s4231
        %s4233 = sand.u32 %s280, 1
        %s4234 = smul.addr %s4233, 32
        %s4235 = scalar_lea.vmem [#allocation17], %s4234
        // Predicated region
        $region97: #{tpu_custom_call.1} parent=55 // pred_check
          %p4236 = pneg %p290
        $region98: #{tpu_custom_call.1} parent=55 // pred_check_branch
          %4238 = sbr.rel (%p4236) target = $region100
        $region99: #{tpu_custom_call.1} parent=55 // pred_region
          %s4240 = ssub.s32 512, 512
          %4241 = vsyncadd %s4232, %s4240
          %s4242 = smul.addr %s40, 4
          %s4243 = smul.addr %s4242, 128
          %s4244 = scalar_lea.hbm %s9, %s4243
          %s4245 = sshll.u32 %s4235, 4
          %s4246 = int_to_ptr.vmem [resolvable:$true] %s4245
          %4251 = dma.vmem_to_hbm [thread:$0]  %s4246, 512, %s4244, %s4232, 256, 256, 16
        $region100: #{tpu_custom_call.1} parent=55 // pred_fallthru
          _
      $region56: #{tpu_custom_call.1} parent=5 // pred_fallthru
        _
      %p4252 = scmp.le.s32.totalorder 2, %s31
      // Predicated region
      $region101: #{tpu_custom_call.1} parent=5 // pred_check
        %p4253 = pneg %p4252
      $region102: #{tpu_custom_call.1} parent=5 // pred_check_branch
        %4255 = sbr.rel (%p4253) target = $region104
      $region103: #{tpu_custom_call.1} parent=5 // pred_region
        %s4256 = ssub.s32 %s31, 2
        // Predicated region
        $region105: #{tpu_custom_call.1} parent=103 // pred_check
          %p4257 = pneg %p296
        $region106: #{tpu_custom_call.1} parent=103 // pred_check_branch
          %4259 = sbr.rel (%p4257) target = $region108
        $region107: #{tpu_custom_call.1} parent=103 // pred_region
          %s4260 = sand.u32 %s281, 1
          %s4261 = scalar_lea.sflag [#allocation4], %s4260
          %s4262 = sand.u32 %s281, 1
          %s4263 = smul.addr %s4262, 32
          %s4264 = scalar_lea.vmem [#allocation17], %s4263
          %4265 = dma.done %s4261, 512
        $region108: #{tpu_custom_call.1} parent=103 // pred_fallthru
          _
      $region104: #{tpu_custom_call.1} parent=5 // pred_fallthru
        _
    $region6: #{tpu_custom_call.1} parent=1 // loop_footer
      %s35 = sadd.s32 1, %s31
    $region7: #{tpu_custom_call.1} parent=1 // loop_footer_branch
      %30 = sbr.rel target = $region3
    $region8: #{tpu_custom_call.1} parent=1 // loop_exit
      _
    %4266 = vsyncpa [#allocation3], 1
    %s4267 = scalar_lea.sflag [#allocation3], 1
    %4268 = vsyncpa %s4267, 1
    %4269 = vsyncpa [#allocation6], 1
    %4270 = vsyncpa [#allocation9], 1
    %s4271 = scalar_lea.sflag [#allocation9], 1
    %4272 = vsyncpa %s4271, 1
    %4273 = vsyncpa [#allocation12], 1
    %s4274 = scalar_lea.sflag [#allocation12], 1
    %4275 = vsyncpa %s4274, 1
    %4276 = vsyncpa [#allocation15], 1
    %s4277 = scalar_lea.sflag [#allocation15], 1
    %4278 = vsyncpa %s4277, 1
    %4279 = vsyncpa [#allocation4], 1
    %s4280 = scalar_lea.sflag [#allocation4], 1
    %4281 = vsyncpa %s4280, 1

</llo_original>
